<compile_context>
chip_gen: v5e
topology: v5e:2x2
jax: 0.10.0
libtpu: 0.0.40
codegen_flags: <defaults>
</compile_context>

<pallas_src>
import functools
import math

import jax
import jax.numpy as jnp
from jax import lax
from jax.experimental import pallas as pl
from jax.experimental.pallas import tpu as pltpu


# --------------------- Pallas kernel: fused im2col conv + bias + LeakyReLU ---------------------

def _sn_conv_act_kernel(x_ref, w_ref, b_ref, o_ref, acc_ref, *,
                        kh, kw, stride, ho, wo, negative_slope,
                        apply_activation):
    """One batch image: fused im2col + MXU matmul + bias + LeakyReLU + NCHW store.

    x_ref:   (1, Hp, Wp, Cin)   bf16  padded NHWC activation tile
    w_ref:   (kh*kw, Cin, Cout) bf16  spectral-normalized weight, tap-major
    b_ref:   (1, Cout)          f32   bias row
    o_ref:   (1, Cout, Ho*Wo)   f32   channels-first output, lane-dense last dim
    acc_ref: (Ho*Wo, Cout)      f32   VMEM accumulator scratch
    """
    acc_ref[...] = jnp.zeros_like(acc_ref)
    for i in range(kh):
        for j in range(kw):
            # Tap (i, j): (strided) window over the padded activation, all in VMEM.
            patch = x_ref[0,
                          i:i + (ho - 1) * stride + 1:stride,
                          j:j + (wo - 1) * stride + 1:stride,
                          :]                                  # (Ho, Wo, Cin) bf16
            patch = patch.reshape(ho * wo, patch.shape[-1])   # (Ho*Wo, Cin)
            acc_ref[...] += jnp.dot(patch, w_ref[i * kw + j],
                                    preferred_element_type=jnp.float32)
    out = acc_ref[...] + b_ref[...]                           # (Ho*Wo, Cout) + (1, Cout)
    if apply_activation:
        out = jnp.where(out >= 0.0, out, negative_slope * out)
    # Single in-VMEM transpose -> channels-first, lane-dense (last dim = Ho*Wo).
    o_ref[0] = out.T.astype(o_ref.dtype)


@functools.partial(jax.jit,
                   static_argnames=("kh", "kw", "stride", "padding",
                                    "negative_slope", "apply_activation"))
def conv_with_activation(x_nchw, w_taps, bias, *, kh, kw, stride=1, padding=0,
                         negative_slope=0.2, apply_activation=True):
    """ConvWithActivation_str.forward: spectral-norm Conv2d + LeakyReLU(0.2).

    x: (N, Cin, H, W) fp32 (PyTorch layout). Returns (N, Cout, Ho, Wo) fp32.
    """
    n, cin, _, _ = x_nchw.shape
    n_taps, cin_w, cout = w_taps.shape
    assert n_taps == kh * kw and cin_w == cin and bias.shape == (1, cout)

    # Single boundary layout change (PyTorch NCHW contract): channels-last +
    # bf16 MXU operands; conv zero-padding applied here (one 1x HBM pass).
    x = jnp.transpose(x_nchw, (0, 2, 3, 1)).astype(jnp.bfloat16)
    if padding > 0:
        x = jnp.pad(x, ((0, 0), (padding, padding), (padding, padding), (0, 0)))
    hp, wp = x.shape[1], x.shape[2]
    ho = (hp - kh) // stride + 1
    wo = (wp - kw) // stride + 1

    kernel = functools.partial(
        _sn_conv_act_kernel, kh=kh, kw=kw, stride=stride, ho=ho, wo=wo,
        negative_slope=negative_slope, apply_activation=apply_activation)

    out_flat = pl.pallas_call(
        kernel,
        out_shape=jax.ShapeDtypeStruct((n, cout, ho * wo), jnp.float32),
        grid_spec=pltpu.PrefetchScalarGridSpec(
            num_scalar_prefetch=0,
            grid=(n,),
            in_specs=[
                # per-image padded NHWC activation tile
                pl.BlockSpec((1, hp, wp, cin), lambda b: (b, 0, 0, 0)),
                # grid-invariant weight: fetched once, VMEM-resident
                pl.BlockSpec((kh * kw, cin, cout), lambda b: (0, 0, 0)),
                # grid-invariant bias row
                pl.BlockSpec((1, cout), lambda b: (0, 0)),
            ],
            out_specs=pl.BlockSpec((1, cout, ho * wo), lambda b: (b, 0, 0)),
            scratch_shapes=[pltpu.VMEM((ho * wo, cout), jnp.float32)],
        ),
        compiler_params=pltpu.CompilerParams(
            dimension_semantics=("parallel",)),
    )(x, w_taps, bias)

    # (N, Cout, Ho*Wo) -> (N, Cout, Ho, Wo) is a free row-major reshape.
    return out_flat.reshape(n, cout, ho, wo)


# --------------------- one-time weight preparation (hoisted) ---------------------

def _l2_normalize(v, eps=1e-12):
    return v / (jnp.linalg.norm(v) + eps)


def prepare_conv_params(w, b, n_power_iterations=3, key=None):
    """Spectral-normalize W (sigma via power iteration on W.view(Cout,-1), as
    in torch.nn.utils.spectral_norm), then pre-layout the kernel operands:
      w_taps: (kh*kw, Cin, Cout) bf16, tap-major for the fused im2col kernel
      bias:   (1, Cout) fp32
    """
    cout, cin, kh, kw = w.shape
    w_mat = w.reshape(cout, cin * kh * kw).astype(jnp.float32)
    if key is None:
        key = jax.random.PRNGKey(42)
    u = _l2_normalize(jax.random.normal(key, (cout,), jnp.float32))
    v = _l2_normalize(w_mat.T @ u)          # defined even for 0 power iterations
    for _ in range(n_power_iterations):
        v = _l2_normalize(w_mat.T @ u)
        u = _l2_normalize(w_mat @ v)
    sigma = u @ (w_mat @ v)
    w_sn = w.astype(jnp.float32) / sigma                                   # OIHW fp32
    w_taps = jnp.transpose(w_sn, (2, 3, 1, 0)).reshape(kh * kw, cin, cout)  # tap-major
    return {
        "w_sn": w_sn,                                   # fp32, for the reference path
        "w_taps": w_taps.astype(jnp.bfloat16),          # (kh*kw, Cin, Cout), MXU ready
        "bias": b.astype(jnp.float32).reshape(1, cout),
    }


# --------------------- main ---------------------

if __name__ == "__main__":
    root = jax.random.PRNGKey(0)
    k_w, k_b, k_x, k_u = jax.random.split(root, 4)

    B, Cin, H, W = 2, 64, 16, 16
    Cout, ksz, stride, padding = 128, 3, 1, 1
    neg_slope = 0.2

    # kaiming_normal_ (fan_in) init, as in the module's init loop.
    fan_in = Cin * ksz * ksz
    w = jax.random.normal(k_w, (Cout, Cin, ksz, ksz), jnp.float32) * math.sqrt(2.0 / fan_in)
    b = jax.random.normal(k_b, (Cout,), jnp.float32) * 0.01
    x = jax.random.normal(k_x, (B, Cin, H, W), jnp.float32) * 0.5

    prep = prepare_conv_params(w, b, n_power_iterations=3, key=k_u)

    out = conv_with_activation(x, prep["w_taps"], prep["bias"],
                               kh=ksz, kw=ksz, stride=stride, padding=padding,
                               negative_slope=neg_slope, apply_activation=True)
    out = jax.block_until_ready(out)

    assert out.shape == (B, Cout, H, W), out.shape
    assert bool(jnp.all(jnp.isfinite(out)))

    # fp32 XLA reference with the same spectral-normalized weight.
    ref = lax.conv_general_dilated(
        x, prep["w_sn"], window_strides=(stride, stride),
        padding=[(padding, padding), (padding, padding)],
        dimension_numbers=("NCHW", "OIHW", "NCHW"))
    ref = ref + b.reshape(1, Cout, 1, 1)
    ref = jnp.where(ref >= 0.0, ref, neg_slope * ref)
    max_err = float(jnp.max(jnp.abs(out - ref)))
    assert max_err < 0.1, f"max abs err {max_err}"

    print("KERNEL_OK")
</pallas_src>

<mosaic_0001>
module attributes {stable_mosaic.version = 11 : i64} {
  func.func @_sn_conv_act_kernel(%arg0: i32, %arg1: memref<1x18x18x64xbf16, #tpu.memory_space<vmem>>, %arg2: memref<9x64x128xbf16, #tpu.memory_space<vmem>>, %arg3: memref<1x128xf32, #tpu.memory_space<vmem>>, %arg4: memref<1x128x256xf32, #tpu.memory_space<vmem>>, %arg5: memref<256x128xf32, #tpu.memory_space<vmem>>) attributes {dimension_semantics = [#tpu.dimension_semantics<parallel>], iteration_bounds = array<i64: 2>, scalar_prefetch = 0 : i64, scratch_operands = 1 : i64, tpu.core_type = #tpu.core_type<tc>, window_params = [{transform_indices = @transform_0, window_bounds = array<i64: 1, 18, 18, 64>}, {pipeline_mode = #tpu.pipeline_mode<synchronous>, transform_indices = @transform_1, window_bounds = array<i64: 9, 64, 128>}, {pipeline_mode = #tpu.pipeline_mode<synchronous>, transform_indices = @transform_2, window_bounds = array<i64: 1, 128>}, {transform_indices = @transform_3, window_bounds = array<i64: 1, 128, 256>}]} {
    %cst = arith.constant 0.000000e+00 : f32
    %0 = vector.broadcast %cst : f32 to vector<256x128xf32>
    %c0 = arith.constant 0 : index
    %c0_0 = arith.constant 0 : index
    %1 = vector.load %arg5[%c0, %c0_0] : memref<256x128xf32, #tpu.memory_space<vmem>>, vector<256x128xf32>
    tpu.vector_store %arg5[%c0, %c0_0], %0 {strides = array<i32>} : memref<256x128xf32, #tpu.memory_space<vmem>>, vector<256x128xf32>,
    %c0_1 = arith.constant 0 : index
    %c0_2 = arith.constant 0 : index
    %c0_3 = arith.constant 0 : index
    %c0_4 = arith.constant 0 : index
    %2 = vector.load %arg1[%c0_1, %c0_2, %c0_3, %c0_4] : memref<1x18x18x64xbf16, #tpu.memory_space<vmem>>, vector<1x16x16x64xbf16>
    %3 = vector.shape_cast %2 : vector<1x16x16x64xbf16> to vector<16x16x64xbf16>
    %4 = vector.shape_cast %3 : vector<16x16x64xbf16> to vector<256x64xbf16>
    %c0_5 = arith.constant 0 : index
    %c0_6 = arith.constant 0 : index
    %5 = vector.load %arg5[%c0_5, %c0_6] : memref<256x128xf32, #tpu.memory_space<vmem>>, vector<256x128xf32>
    %c0_7 = arith.constant 0 : index
    %c0_8 = arith.constant 0 : index
    %c0_9 = arith.constant 0 : index
    %6 = vector.load %arg2[%c0_7, %c0_8, %c0_9] : memref<9x64x128xbf16, #tpu.memory_space<vmem>>, vector<1x64x128xbf16>
    %7 = vector.shape_cast %6 : vector<1x64x128xbf16> to vector<64x128xbf16>
    %cst_10 = arith.constant dense<0.000000e+00> : vector<256x128xf32>
    %8 = tpu.matmul %4, %7, %cst_10 {dimension_numbers = #tpu.dot_dimension_numbers<[1], [0], [0], [1], [0, 0, 1, 1], [], []>} : vector<256x64xbf16>, vector<64x128xbf16>, vector<256x128xf32> -> vector<256x128xf32>
    %9 = arith.addf %5, %8 : vector<256x128xf32>
    %c0_11 = arith.constant 0 : index
    %c0_12 = arith.constant 0 : index
    %10 = vector.load %arg5[%c0_11, %c0_12] : memref<256x128xf32, #tpu.memory_space<vmem>>, vector<256x128xf32>
    tpu.vector_store %arg5[%c0_11, %c0_12], %9 {strides = array<i32>} : memref<256x128xf32, #tpu.memory_space<vmem>>, vector<256x128xf32>,
    %c0_13 = arith.constant 0 : index
    %c0_14 = arith.constant 0 : index
    %c1 = arith.constant 1 : index
    %c0_15 = arith.constant 0 : index
    %11 = vector.load %arg1[%c0_13, %c0_14, %c1, %c0_15] : memref<1x18x18x64xbf16, #tpu.memory_space<vmem>>, vector<1x16x16x64xbf16>
    %12 = vector.shape_cast %11 : vector<1x16x16x64xbf16> to vector<16x16x64xbf16>
    %13 = vector.shape_cast %12 : vector<16x16x64xbf16> to vector<256x64xbf16>
    %c0_16 = arith.constant 0 : index
    %c0_17 = arith.constant 0 : index
    %14 = vector.load %arg5[%c0_16, %c0_17] : memref<256x128xf32, #tpu.memory_space<vmem>>, vector<256x128xf32>
    %c1_18 = arith.constant 1 : index
    %c0_19 = arith.constant 0 : index
    %c0_20 = arith.constant 0 : index
    %15 = vector.load %arg2[%c1_18, %c0_19, %c0_20] : memref<9x64x128xbf16, #tpu.memory_space<vmem>>, vector<1x64x128xbf16>
    %16 = vector.shape_cast %15 : vector<1x64x128xbf16> to vector<64x128xbf16>
    %cst_21 = arith.constant dense<0.000000e+00> : vector<256x128xf32>
    %17 = tpu.matmul %13, %16, %cst_21 {dimension_numbers = #tpu.dot_dimension_numbers<[1], [0], [0], [1], [0, 0, 1, 1], [], []>} : vector<256x64xbf16>, vector<64x128xbf16>, vector<256x128xf32> -> vector<256x128xf32>
    %18 = arith.addf %14, %17 : vector<256x128xf32>
    %c0_22 = arith.constant 0 : index
    %c0_23 = arith.constant 0 : index
    %19 = vector.load %arg5[%c0_22, %c0_23] : memref<256x128xf32, #tpu.memory_space<vmem>>, vector<256x128xf32>
    tpu.vector_store %arg5[%c0_22, %c0_23], %18 {strides = array<i32>} : memref<256x128xf32, #tpu.memory_space<vmem>>, vector<256x128xf32>,
    %c0_24 = arith.constant 0 : index
    %c0_25 = arith.constant 0 : index
    %c2 = arith.constant 2 : index
    %c0_26 = arith.constant 0 : index
    %20 = vector.load %arg1[%c0_24, %c0_25, %c2, %c0_26] : memref<1x18x18x64xbf16, #tpu.memory_space<vmem>>, vector<1x16x16x64xbf16>
    %21 = vector.shape_cast %20 : vector<1x16x16x64xbf16> to vector<16x16x64xbf16>
    %22 = vector.shape_cast %21 : vector<16x16x64xbf16> to vector<256x64xbf16>
    %c0_27 = arith.constant 0 : index
    %c0_28 = arith.constant 0 : index
    %23 = vector.load %arg5[%c0_27, %c0_28] : memref<256x128xf32, #tpu.memory_space<vmem>>, vector<256x128xf32>
    %c2_29 = arith.constant 2 : index
    %c0_30 = arith.constant 0 : index
    %c0_31 = arith.constant 0 : index
    %24 = vector.load %arg2[%c2_29, %c0_30, %c0_31] : memref<9x64x128xbf16, #tpu.memory_space<vmem>>, vector<1x64x128xbf16>
    %25 = vector.shape_cast %24 : vector<1x64x128xbf16> to vector<64x128xbf16>
    %cst_32 = arith.constant dense<0.000000e+00> : vector<256x128xf32>
    %26 = tpu.matmul %22, %25, %cst_32 {dimension_numbers = #tpu.dot_dimension_numbers<[1], [0], [0], [1], [0, 0, 1, 1], [], []>} : vector<256x64xbf16>, vector<64x128xbf16>, vector<256x128xf32> -> vector<256x128xf32>
    %27 = arith.addf %23, %26 : vector<256x128xf32>
    %c0_33 = arith.constant 0 : index
    %c0_34 = arith.constant 0 : index
    %28 = vector.load %arg5[%c0_33, %c0_34] : memref<256x128xf32, #tpu.memory_space<vmem>>, vector<256x128xf32>
    tpu.vector_store %arg5[%c0_33, %c0_34], %27 {strides = array<i32>} : memref<256x128xf32, #tpu.memory_space<vmem>>, vector<256x128xf32>,
    %c0_35 = arith.constant 0 : index
    %c1_36 = arith.constant 1 : index
    %c0_37 = arith.constant 0 : index
    %c0_38 = arith.constant 0 : index
    %29 = vector.load %arg1[%c0_35, %c1_36, %c0_37, %c0_38] : memref<1x18x18x64xbf16, #tpu.memory_space<vmem>>, vector<1x16x16x64xbf16>
    %30 = vector.shape_cast %29 : vector<1x16x16x64xbf16> to vector<16x16x64xbf16>
    %31 = vector.shape_cast %30 : vector<16x16x64xbf16> to vector<256x64xbf16>
    %c0_39 = arith.constant 0 : index
    %c0_40 = arith.constant 0 : index
    %32 = vector.load %arg5[%c0_39, %c0_40] : memref<256x128xf32, #tpu.memory_space<vmem>>, vector<256x128xf32>
    %c3 = arith.constant 3 : index
    %c0_41 = arith.constant 0 : index
    %c0_42 = arith.constant 0 : index
    %33 = vector.load %arg2[%c3, %c0_41, %c0_42] : memref<9x64x128xbf16, #tpu.memory_space<vmem>>, vector<1x64x128xbf16>
    %34 = vector.shape_cast %33 : vector<1x64x128xbf16> to vector<64x128xbf16>
    %cst_43 = arith.constant dense<0.000000e+00> : vector<256x128xf32>
    %35 = tpu.matmul %31, %34, %cst_43 {dimension_numbers = #tpu.dot_dimension_numbers<[1], [0], [0], [1], [0, 0, 1, 1], [], []>} : vector<256x64xbf16>, vector<64x128xbf16>, vector<256x128xf32> -> vector<256x128xf32>
    %36 = arith.addf %32, %35 : vector<256x128xf32>
    %c0_44 = arith.constant 0 : index
    %c0_45 = arith.constant 0 : index
    %37 = vector.load %arg5[%c0_44, %c0_45] : memref<256x128xf32, #tpu.memory_space<vmem>>, vector<256x128xf32>
    tpu.vector_store %arg5[%c0_44, %c0_45], %36 {strides = array<i32>} : memref<256x128xf32, #tpu.memory_space<vmem>>, vector<256x128xf32>,
    %c0_46 = arith.constant 0 : index
    %c1_47 = arith.constant 1 : index
    %c1_48 = arith.constant 1 : index
    %c0_49 = arith.constant 0 : index
    %38 = vector.load %arg1[%c0_46, %c1_47, %c1_48, %c0_49] : memref<1x18x18x64xbf16, #tpu.memory_space<vmem>>, vector<1x16x16x64xbf16>
    %39 = vector.shape_cast %38 : vector<1x16x16x64xbf16> to vector<16x16x64xbf16>
    %40 = vector.shape_cast %39 : vector<16x16x64xbf16> to vector<256x64xbf16>
    %c0_50 = arith.constant 0 : index
    %c0_51 = arith.constant 0 : index
    %41 = vector.load %arg5[%c0_50, %c0_51] : memref<256x128xf32, #tpu.memory_space<vmem>>, vector<256x128xf32>
    %c4 = arith.constant 4 : index
    %c0_52 = arith.constant 0 : index
    %c0_53 = arith.constant 0 : index
    %42 = vector.load %arg2[%c4, %c0_52, %c0_53] : memref<9x64x128xbf16, #tpu.memory_space<vmem>>, vector<1x64x128xbf16>
    %43 = vector.shape_cast %42 : vector<1x64x128xbf16> to vector<64x128xbf16>
    %cst_54 = arith.constant dense<0.000000e+00> : vector<256x128xf32>
    %44 = tpu.matmul %40, %43, %cst_54 {dimension_numbers = #tpu.dot_dimension_numbers<[1], [0], [0], [1], [0, 0, 1, 1], [], []>} : vector<256x64xbf16>, vector<64x128xbf16>, vector<256x128xf32> -> vector<256x128xf32>
    %45 = arith.addf %41, %44 : vector<256x128xf32>
    %c0_55 = arith.constant 0 : index
    %c0_56 = arith.constant 0 : index
    %46 = vector.load %arg5[%c0_55, %c0_56] : memref<256x128xf32, #tpu.memory_space<vmem>>, vector<256x128xf32>
    tpu.vector_store %arg5[%c0_55, %c0_56], %45 {strides = array<i32>} : memref<256x128xf32, #tpu.memory_space<vmem>>, vector<256x128xf32>,
    %c0_57 = arith.constant 0 : index
    %c1_58 = arith.constant 1 : index
    %c2_59 = arith.constant 2 : index
    %c0_60 = arith.constant 0 : index
    %47 = vector.load %arg1[%c0_57, %c1_58, %c2_59, %c0_60] : memref<1x18x18x64xbf16, #tpu.memory_space<vmem>>, vector<1x16x16x64xbf16>
    %48 = vector.shape_cast %47 : vector<1x16x16x64xbf16> to vector<16x16x64xbf16>
    %49 = vector.shape_cast %48 : vector<16x16x64xbf16> to vector<256x64xbf16>
    %c0_61 = arith.constant 0 : index
    %c0_62 = arith.constant 0 : index
    %50 = vector.load %arg5[%c0_61, %c0_62] : memref<256x128xf32, #tpu.memory_space<vmem>>, vector<256x128xf32>
    %c5 = arith.constant 5 : index
    %c0_63 = arith.constant 0 : index
    %c0_64 = arith.constant 0 : index
    %51 = vector.load %arg2[%c5, %c0_63, %c0_64] : memref<9x64x128xbf16, #tpu.memory_space<vmem>>, vector<1x64x128xbf16>
    %52 = vector.shape_cast %51 : vector<1x64x128xbf16> to vector<64x128xbf16>
    %cst_65 = arith.constant dense<0.000000e+00> : vector<256x128xf32>
    %53 = tpu.matmul %49, %52, %cst_65 {dimension_numbers = #tpu.dot_dimension_numbers<[1], [0], [0], [1], [0, 0, 1, 1], [], []>} : vector<256x64xbf16>, vector<64x128xbf16>, vector<256x128xf32> -> vector<256x128xf32>
    %54 = arith.addf %50, %53 : vector<256x128xf32>
    %c0_66 = arith.constant 0 : index
    %c0_67 = arith.constant 0 : index
    %55 = vector.load %arg5[%c0_66, %c0_67] : memref<256x128xf32, #tpu.memory_space<vmem>>, vector<256x128xf32>
    tpu.vector_store %arg5[%c0_66, %c0_67], %54 {strides = array<i32>} : memref<256x128xf32, #tpu.memory_space<vmem>>, vector<256x128xf32>,
    %c0_68 = arith.constant 0 : index
    %c2_69 = arith.constant 2 : index
    %c0_70 = arith.constant 0 : index
    %c0_71 = arith.constant 0 : index
    %56 = vector.load %arg1[%c0_68, %c2_69, %c0_70, %c0_71] : memref<1x18x18x64xbf16, #tpu.memory_space<vmem>>, vector<1x16x16x64xbf16>
    %57 = vector.shape_cast %56 : vector<1x16x16x64xbf16> to vector<16x16x64xbf16>
    %58 = vector.shape_cast %57 : vector<16x16x64xbf16> to vector<256x64xbf16>
    %c0_72 = arith.constant 0 : index
    %c0_73 = arith.constant 0 : index
    %59 = vector.load %arg5[%c0_72, %c0_73] : memref<256x128xf32, #tpu.memory_space<vmem>>, vector<256x128xf32>
    %c6 = arith.constant 6 : index
    %c0_74 = arith.constant 0 : index
    %c0_75 = arith.constant 0 : index
    %60 = vector.load %arg2[%c6, %c0_74, %c0_75] : memref<9x64x128xbf16, #tpu.memory_space<vmem>>, vector<1x64x128xbf16>
    %61 = vector.shape_cast %60 : vector<1x64x128xbf16> to vector<64x128xbf16>
    %cst_76 = arith.constant dense<0.000000e+00> : vector<256x128xf32>
    %62 = tpu.matmul %58, %61, %cst_76 {dimension_numbers = #tpu.dot_dimension_numbers<[1], [0], [0], [1], [0, 0, 1, 1], [], []>} : vector<256x64xbf16>, vector<64x128xbf16>, vector<256x128xf32> -> vector<256x128xf32>
    %63 = arith.addf %59, %62 : vector<256x128xf32>
    %c0_77 = arith.constant 0 : index
    %c0_78 = arith.constant 0 : index
    %64 = vector.load %arg5[%c0_77, %c0_78] : memref<256x128xf32, #tpu.memory_space<vmem>>, vector<256x128xf32>
    tpu.vector_store %arg5[%c0_77, %c0_78], %63 {strides = array<i32>} : memref<256x128xf32, #tpu.memory_space<vmem>>, vector<256x128xf32>,
    %c0_79 = arith.constant 0 : index
    %c2_80 = arith.constant 2 : index
    %c1_81 = arith.constant 1 : index
    %c0_82 = arith.constant 0 : index
    %65 = vector.load %arg1[%c0_79, %c2_80, %c1_81, %c0_82] : memref<1x18x18x64xbf16, #tpu.memory_space<vmem>>, vector<1x16x16x64xbf16>
    %66 = vector.shape_cast %65 : vector<1x16x16x64xbf16> to vector<16x16x64xbf16>
    %67 = vector.shape_cast %66 : vector<16x16x64xbf16> to vector<256x64xbf16>
    %c0_83 = arith.constant 0 : index
    %c0_84 = arith.constant 0 : index
    %68 = vector.load %arg5[%c0_83, %c0_84] : memref<256x128xf32, #tpu.memory_space<vmem>>, vector<256x128xf32>
    %c7 = arith.constant 7 : index
    %c0_85 = arith.constant 0 : index
    %c0_86 = arith.constant 0 : index
    %69 = vector.load %arg2[%c7, %c0_85, %c0_86] : memref<9x64x128xbf16, #tpu.memory_space<vmem>>, vector<1x64x128xbf16>
    %70 = vector.shape_cast %69 : vector<1x64x128xbf16> to vector<64x128xbf16>
    %cst_87 = arith.constant dense<0.000000e+00> : vector<256x128xf32>
    %71 = tpu.matmul %67, %70, %cst_87 {dimension_numbers = #tpu.dot_dimension_numbers<[1], [0], [0], [1], [0, 0, 1, 1], [], []>} : vector<256x64xbf16>, vector<64x128xbf16>, vector<256x128xf32> -> vector<256x128xf32>
    %72 = arith.addf %68, %71 : vector<256x128xf32>
    %c0_88 = arith.constant 0 : index
    %c0_89 = arith.constant 0 : index
    %73 = vector.load %arg5[%c0_88, %c0_89] : memref<256x128xf32, #tpu.memory_space<vmem>>, vector<256x128xf32>
    tpu.vector_store %arg5[%c0_88, %c0_89], %72 {strides = array<i32>} : memref<256x128xf32, #tpu.memory_space<vmem>>, vector<256x128xf32>,
    %c0_90 = arith.constant 0 : index
    %c2_91 = arith.constant 2 : index
    %c2_92 = arith.constant 2 : index
    %c0_93 = arith.constant 0 : index
    %74 = vector.load %arg1[%c0_90, %c2_91, %c2_92, %c0_93] : memref<1x18x18x64xbf16, #tpu.memory_space<vmem>>, vector<1x16x16x64xbf16>
    %75 = vector.shape_cast %74 : vector<1x16x16x64xbf16> to vector<16x16x64xbf16>
    %76 = vector.shape_cast %75 : vector<16x16x64xbf16> to vector<256x64xbf16>
    %c0_94 = arith.constant 0 : index
    %c0_95 = arith.constant 0 : index
    %77 = vector.load %arg5[%c0_94, %c0_95] : memref<256x128xf32, #tpu.memory_space<vmem>>, vector<256x128xf32>
    %c8 = arith.constant 8 : index
    %c0_96 = arith.constant 0 : index
    %c0_97 = arith.constant 0 : index
    %78 = vector.load %arg2[%c8, %c0_96, %c0_97] : memref<9x64x128xbf16, #tpu.memory_space<vmem>>, vector<1x64x128xbf16>
    %79 = vector.shape_cast %78 : vector<1x64x128xbf16> to vector<64x128xbf16>
    %cst_98 = arith.constant dense<0.000000e+00> : vector<256x128xf32>
    %80 = tpu.matmul %76, %79, %cst_98 {dimension_numbers = #tpu.dot_dimension_numbers<[1], [0], [0], [1], [0, 0, 1, 1], [], []>} : vector<256x64xbf16>, vector<64x128xbf16>, vector<256x128xf32> -> vector<256x128xf32>
    %81 = arith.addf %77, %80 : vector<256x128xf32>
    %c0_99 = arith.constant 0 : index
    %c0_100 = arith.constant 0 : index
    %82 = vector.load %arg5[%c0_99, %c0_100] : memref<256x128xf32, #tpu.memory_space<vmem>>, vector<256x128xf32>
    tpu.vector_store %arg5[%c0_99, %c0_100], %81 {strides = array<i32>} : memref<256x128xf32, #tpu.memory_space<vmem>>, vector<256x128xf32>,
    %c0_101 = arith.constant 0 : index
    %c0_102 = arith.constant 0 : index
    %83 = vector.load %arg5[%c0_101, %c0_102] : memref<256x128xf32, #tpu.memory_space<vmem>>, vector<256x128xf32>
    %c0_103 = arith.constant 0 : index
    %c0_104 = arith.constant 0 : index
    %84 = vector.load %arg3[%c0_103, %c0_104] : memref<1x128xf32, #tpu.memory_space<vmem>>, vector<1x128xf32>
    %85 = vector.broadcast %84 : vector<1x128xf32> to vector<256x128xf32>
    %86 = arith.addf %83, %85 : vector<256x128xf32>
    %cst_105 = arith.constant 0.000000e+00 : f32
    %87 = vector.broadcast %cst_105 : f32 to vector<256x128xf32>
    %88 = arith.cmpf oge, %86, %87 : vector<256x128xf32>
    %cst_106 = arith.constant 2.000000e-01 : f32
    %89 = vector.broadcast %cst_106 : f32 to vector<256x128xf32>
    %90 = arith.mulf %89, %86 : vector<256x128xf32>
    %91 = arith.select %88, %86, %90 : vector<256x128xi1>, vector<256x128xf32>
    %92 = tpu.transpose %91, [1, 0] : vector<256x128xf32> -> vector<128x256xf32>
    %c0_107 = arith.constant 0 : index
    %c0_108 = arith.constant 0 : index
    %c0_109 = arith.constant 0 : index
    %93 = vector.load %arg4[%c0_107, %c0_108, %c0_109] : memref<1x128x256xf32, #tpu.memory_space<vmem>>, vector<1x128x256xf32>
    %94 = vector.shape_cast %93 : vector<1x128x256xf32> to vector<128x256xf32>
    %95 = vector.shape_cast %92 : vector<128x256xf32> to vector<1x128x256xf32>
    tpu.vector_store %arg4[%c0_107, %c0_108, %c0_109], %95 {strides = array<i32>} : memref<1x128x256xf32, #tpu.memory_space<vmem>>, vector<1x128x256xf32>,
    return
  }
  func.func @transform_0(%arg0: i32) -> (i32, i32, i32, i32) {
    %c0_i32 = arith.constant 0 : i32
    %c0_i32_0 = arith.constant 0 : i32
    %c0_i32_1 = arith.constant 0 : i32
    %c0_i32_2 = arith.constant 0 : i32
    return %arg0, %c0_i32, %c0_i32_0, %c0_i32_1 : i32, i32, i32, i32
  }
  func.func @transform_1(%arg0: i32) -> (i32, i32, i32) {
    %c0_i32 = arith.constant 0 : i32
    %c0_i32_0 = arith.constant 0 : i32
    %c0_i32_1 = arith.constant 0 : i32
    %c0_i32_2 = arith.constant 0 : i32
    return %c0_i32, %c0_i32_0, %c0_i32_1 : i32, i32, i32
  }
  func.func @transform_2(%arg0: i32) -> (i32, i32) {
    %c0_i32 = arith.constant 0 : i32
    %c0_i32_0 = arith.constant 0 : i32
    %c0_i32_1 = arith.constant 0 : i32
    return %c0_i32, %c0_i32_0 : i32, i32
  }
  func.func @transform_3(%arg0: i32) -> (i32, i32, i32) {
    %c0_i32 = arith.constant 0 : i32
    %c0_i32_0 = arith.constant 0 : i32
    %c0_i32_1 = arith.constant 0 : i32
    return %arg0, %c0_i32, %c0_i32_0 : i32, i32, i32
  }
}

</mosaic_0001>

<llo_original>
// kernel: conv_with_activation.1
$region0: #{conv_with_activation.1}
  #allocation0 [shape = 'u32[]', space=smem, size = 0x4, offset = 0x4, fixed_abs, tag = 'smem constant byte address 0x4 - core index']
  #allocation1 [shape = 'u32[72,128]{1,0:T(1,128)}', space=vmem, size = 0x9000, scoped, tag = 'internal scratch']
  #allocation2 [shape = 'f32[256,128]{1,0:T(8,128)}', space=vmem, size = 0x20000, scoped, tag = 'scratch operand']
  %s0 = inlined_call_operand.vmem [shape: bf16[2,18,18,64], index: 0, kind: input, shape index: {}]
  %s1 = inlined_call_operand.vmem [shape: bf16[9,64,128], index: 1, kind: input, shape index: {}]
  %s2 = inlined_call_operand.vmem [shape: f32[1,128], index: 2, kind: input, shape index: {}]
  %s3 = inlined_call_operand.vmem [shape: f32[2,128,256], index: 3, kind: output, shape index: {}]
  %s4 = sld [smem:[#allocation0]]
  $region45: #{conv_with_activation.1} parent=0
    _
  %s6 = ssub.s32 1, %s4
  %s7 = scalar_select 0, %s6, %s4
  loop: start=0, step=1, limit=4
  $region2: #{conv_with_activation.1} parent=0 // loop_pre_header
    _
  $region3: #{conv_with_activation.1} parent=0 // loop_header
    %s9 = sphi 0, %s13
    %p10 = scmp.ge.s32.totalorder %s9, 4
    %s19 = sphi 0, %s21
    %s22 = sphi 0, %s19
    %s23 = sphi 0, %s22
    %s39 = sphi 0, %s23
    %s43 = sphi 0, %s43
    %s45 = sphi 0, %s43
    %s46 = sphi 0, %s45
    %s60 = sphi 0, %s46
    %s64 = sphi 0, %s64
    %s66 = sphi 0, %s64
    %s67 = sphi 0, %s66
    %s81 = sphi 0, %s67
    %s87 = sphi 0, %s89
    %s90 = sphi 0, %s87
    %s91 = sphi 0, %s90
    %s107 = sphi 0, %s91
  $region4: #{conv_with_activation.1} parent=0 // loop_header_branch
    %12 = sbr.rel (%p10) target = $region8
  $region5: #{conv_with_activation.1} parent=0 // loop_body
    %s14 = ssub.s32 %s9, 1
    %s15 = ssub.s32 %s9, 2
    %s16 = sadd.s32 %s9, 1
    %s17 = ssub.s32 %s9, %s16
    %p18 = scmp.eq.s32.totalorder %s17, 0
    %s20 = sadd.s32 %s19, 1
    %s21 = scalar_select %p18, %s19, %s20
    %p24 = pneg %p18
    %p25 = scmp.eq.s32.totalorder %s9, 1
    %p26 = por %p24, %p25
    %p27 = scmp.ne.s32.totalorder %s19, %s22
    %p28 = scmp.eq.s32.totalorder %s9, 0
    %p29 = por %p27, %p28
    %p30 = scmp.ne.s32.totalorder %s19, %s22
    %p31 = scmp.eq.s32.totalorder %s14, 1
    %p32 = por %p30, %p31
    %p33 = scmp.ne.s32.totalorder %s22, %s23
    %p34 = scmp.eq.s32.totalorder %s14, 0
    %p35 = por %p33, %p34
    %p36 = scmp.ne.s32.totalorder %s22, %s23
    %p37 = scmp.eq.s32.totalorder %s15, 1
    %p38 = por %p36, %p37
    %p40 = scmp.ne.s32.totalorder %s23, %s39
    %p41 = scmp.eq.s32.totalorder %s15, 0
    %p42 = por %p40, %p41
    %s44 = sadd.s32 %s43, 1
    %p47 = scmp.eq.s32.totalorder %s9, 1
    %p48 = scmp.ne.s32.totalorder %s43, %s45
    %p49 = scmp.eq.s32.totalorder %s9, 0
    %p50 = por %p48, %p49
    %p51 = scmp.ne.s32.totalorder %s43, %s45
    %p52 = scmp.eq.s32.totalorder %s14, 1
    %p53 = por %p51, %p52
    %p54 = scmp.ne.s32.totalorder %s45, %s46
    %p55 = scmp.eq.s32.totalorder %s14, 0
    %p56 = por %p54, %p55
    %p57 = scmp.ne.s32.totalorder %s45, %s46
    %p58 = scmp.eq.s32.totalorder %s15, 1
    %p59 = por %p57, %p58
    %p61 = scmp.ne.s32.totalorder %s46, %s60
    %p62 = scmp.eq.s32.totalorder %s15, 0
    %p63 = por %p61, %p62
    %s65 = sadd.s32 %s64, 1
    %p68 = scmp.eq.s32.totalorder %s9, 1
    %p69 = scmp.ne.s32.totalorder %s64, %s66
    %p70 = scmp.eq.s32.totalorder %s9, 0
    %p71 = por %p69, %p70
    %p72 = scmp.ne.s32.totalorder %s64, %s66
    %p73 = scmp.eq.s32.totalorder %s14, 1
    %p74 = por %p72, %p73
    %p75 = scmp.ne.s32.totalorder %s66, %s67
    %p76 = scmp.eq.s32.totalorder %s14, 0
    %p77 = por %p75, %p76
    %p78 = scmp.ne.s32.totalorder %s66, %s67
    %p79 = scmp.eq.s32.totalorder %s15, 1
    %p80 = por %p78, %p79
    %p82 = scmp.ne.s32.totalorder %s67, %s81
    %p83 = scmp.eq.s32.totalorder %s15, 0
    %p84 = por %p82, %p83
    %s85 = ssub.s32 %s9, %s16
    %p86 = scmp.eq.s32.totalorder %s85, 0
    %s88 = sadd.s32 %s87, 1
    %s89 = scalar_select %p86, %s87, %s88
    %p92 = pneg %p86
    %p93 = scmp.eq.s32.totalorder %s9, 1
    %p94 = por %p92, %p93
    %p95 = scmp.ne.s32.totalorder %s87, %s90
    %p96 = scmp.eq.s32.totalorder %s9, 0
    %p97 = por %p95, %p96
    %p98 = scmp.ne.s32.totalorder %s87, %s90
    %p99 = scmp.eq.s32.totalorder %s14, 1
    %p100 = por %p98, %p99
    %p101 = scmp.ne.s32.totalorder %s90, %s91
    %p102 = scmp.eq.s32.totalorder %s14, 0
    %p103 = por %p101, %p102
    %p104 = scmp.ne.s32.totalorder %s90, %s91
    %p105 = scmp.eq.s32.totalorder %s15, 1
    %p106 = por %p104, %p105
    %p108 = scmp.ne.s32.totalorder %s91, %s107
    %p109 = scmp.eq.s32.totalorder %s15, 0
    %p110 = por %p108, %p109
    %p111 = scmp.le.s32.totalorder 1, %s9
    %p112 = scmp.lt.s32.totalorder %s9, 3
    %p113 = pnand %p111, %p112
    %p114 = pneg %p113
    // Predicated region
    $region9: #{conv_with_activation.1} parent=5 // pred_check
      _
    $region10: #{conv_with_activation.1} parent=5 // pred_check_branch
      %116 = sbr.rel (%p113) target = $region12
    $region11: #{conv_with_activation.1} parent=5 // pred_region
      %s117 = ssub.s32 %s9, 1
      // Predicated region
      $region13: #{conv_with_activation.1} parent=11 // pred_check
        %p118 = pneg %p56
      $region14: #{conv_with_activation.1} parent=11 // pred_check_branch
        %120 = sbr.rel (%p118) target = $region16
      $region15: #{conv_with_activation.1} parent=11 // pred_region
        _
      $region16: #{conv_with_activation.1} parent=11 // pred_fallthru
        _
      // Predicated region
      $region17: #{conv_with_activation.1} parent=11 // pred_check
        %p121 = pneg %p77
      $region18: #{conv_with_activation.1} parent=11 // pred_check_branch
        %123 = sbr.rel (%p121) target = $region20
      $region19: #{conv_with_activation.1} parent=11 // pred_region
        _
      $region20: #{conv_with_activation.1} parent=11 // pred_fallthru
        _
    $region12: #{conv_with_activation.1} parent=5 // pred_fallthru
      _
    %p124 = scmp.lt.s32.totalorder %s9, 2
    // Predicated region
    $region21: #{conv_with_activation.1} parent=5 // pred_check
      %p125 = pneg %p124
    $region22: #{conv_with_activation.1} parent=5 // pred_check_branch
      %127 = sbr.rel (%p125) target = $region24
    $region23: #{conv_with_activation.1} parent=5 // pred_region
      // Predicated region
      $region25: #{conv_with_activation.1} parent=23 // pred_check
        %p128 = pneg %p29
      $region26: #{conv_with_activation.1} parent=23 // pred_check_branch
        %130 = sbr.rel (%p128) target = $region28
      $region27: #{conv_with_activation.1} parent=23 // pred_region
        %p131 = scmp.lt.s32.totalorder %s9, 1
        %s132 = scalar_select %p131, %s9, 1
        %s133 = smul.addr %s132, 54
        %s134 = smul.addr %s133, 4
        %s135 = scalar_lea.vmem %s0, %s134
      $region28: #{conv_with_activation.1} parent=23 // pred_fallthru
        _
    $region24: #{conv_with_activation.1} parent=5 // pred_fallthru
      _
    %p136 = scmp.le.s32.totalorder 1, %s9
    %p137 = scmp.lt.s32.totalorder %s9, 3
    %p138 = pnand %p136, %p137
    %p139 = pneg %p138
    // Predicated region
    $region29: #{conv_with_activation.1} parent=5 // pred_check
      _
    $region30: #{conv_with_activation.1} parent=5 // pred_check_branch
      %141 = sbr.rel (%p138) target = $region32
    $region31: #{conv_with_activation.1} parent=5 // pred_region
      %s142 = ssub.s32 %s9, 1
      %p143 = scmp.lt.s32.totalorder %s14, 1
      %s144 = scalar_select %p143, %s14, 1
      %s145 = smul.addr %s144, 54
      %s146 = smul.addr %s145, 4
      %s147 = scalar_lea.vmem %s0, %s146
      %p148 = pneg %p35
      %p149 = pneg %p32
      %p150 = pneg %p56
      %p151 = pneg %p53
      %p152 = pneg %p77
      %p153 = pneg %p74
      %p154 = pneg %p103
      %p155 = pneg %p100
      %p156 = scmp.lt.s32.totalorder %s14, 1
      %s157 = scalar_select %p156, %s14, 1
      %s158 = smul.addr %s157, 32
      %s159 = smul.addr %s158, 8
      %s160 = scalar_lea.vmem %s3, %s159
      %p161 = scmp.lt.s32.totalorder %s14, 1
      %s162 = scalar_select %p161, %s14, 1
      %s163 = smul.addr %s162, 54
      %s164 = smul.addr %s163, 4
      %s165 = scalar_lea.vmem %s0, %s164
      %p166 = scmp.lt.s32.totalorder %s14, 1
      %s167 = scalar_select %p166, %s14, 1
      %s168 = smul.addr %s167, 32
      %s169 = smul.addr %s168, 8
      %s170 = scalar_lea.vmem %s3, %s169
      %172 = vst [vmem:[#allocation2] sm:$0xff] 0.0
      %173 = vst [vmem:[#allocation2 + $0x8] sm:$0xff] 0.0
      %174 = vst [vmem:[#allocation2 + $0x10] sm:$0xff] 0.0
      %175 = vst [vmem:[#allocation2 + $0x18] sm:$0xff] 0.0
      %176 = vst [vmem:[#allocation2 + $0x20] sm:$0xff] 0.0
      %177 = vst [vmem:[#allocation2 + $0x28] sm:$0xff] 0.0
      %178 = vst [vmem:[#allocation2 + $0x30] sm:$0xff] 0.0
      %179 = vst [vmem:[#allocation2 + $0x38] sm:$0xff] 0.0
      %180 = vst [vmem:[#allocation2 + $0x40] sm:$0xff] 0.0
      %181 = vst [vmem:[#allocation2 + $0x48] sm:$0xff] 0.0
      %182 = vst [vmem:[#allocation2 + $0x50] sm:$0xff] 0.0
      %183 = vst [vmem:[#allocation2 + $0x58] sm:$0xff] 0.0
      %184 = vst [vmem:[#allocation2 + $0x60] sm:$0xff] 0.0
      %185 = vst [vmem:[#allocation2 + $0x68] sm:$0xff] 0.0
      %186 = vst [vmem:[#allocation2 + $0x70] sm:$0xff] 0.0
      %187 = vst [vmem:[#allocation2 + $0x78] sm:$0xff] 0.0
      %188 = vst [vmem:[#allocation2 + $0x80] sm:$0xff] 0.0
      %189 = vst [vmem:[#allocation2 + $0x88] sm:$0xff] 0.0
      %190 = vst [vmem:[#allocation2 + $0x90] sm:$0xff] 0.0
      %191 = vst [vmem:[#allocation2 + $0x98] sm:$0xff] 0.0
      %192 = vst [vmem:[#allocation2 + $0xa0] sm:$0xff] 0.0
      %193 = vst [vmem:[#allocation2 + $0xa8] sm:$0xff] 0.0
      %194 = vst [vmem:[#allocation2 + $0xb0] sm:$0xff] 0.0
      %195 = vst [vmem:[#allocation2 + $0xb8] sm:$0xff] 0.0
      %196 = vst [vmem:[#allocation2 + $0xc0] sm:$0xff] 0.0
      %197 = vst [vmem:[#allocation2 + $0xc8] sm:$0xff] 0.0
      %198 = vst [vmem:[#allocation2 + $0xd0] sm:$0xff] 0.0
      %199 = vst [vmem:[#allocation2 + $0xd8] sm:$0xff] 0.0
      %200 = vst [vmem:[#allocation2 + $0xe0] sm:$0xff] 0.0
      %201 = vst [vmem:[#allocation2 + $0xe8] sm:$0xff] 0.0
      %202 = vst [vmem:[#allocation2 + $0xf0] sm:$0xff] 0.0
      %203 = vst [vmem:[#allocation2 + $0xf8] sm:$0xff] 0.0
      %v204 = vld [vmem:[%s165] sm:$0xf]
      %v205 = vld [vmem:[%s165 + $0x4] sm:$0xf]
      %v206 = vld [vmem:[%s165 + $0xc] sm:$0xf]
      %v207 = vld [vmem:[%s165 + $0x10] sm:$0xf]
      %v208 = vld [vmem:[%s165 + $0x18] sm:$0xf]
      %v209 = vld [vmem:[%s165 + $0x1c] sm:$0xf]
      %v210 = vld [vmem:[%s165 + $0x24] sm:$0xf]
      %v211 = vld [vmem:[%s165 + $0x28] sm:$0xf]
      %v212 = vld [vmem:[%s165 + $0x30] sm:$0xf]
      %v213 = vld [vmem:[%s165 + $0x34] sm:$0xf]
      %v214 = vld [vmem:[%s165 + $0x3c] sm:$0xf]
      %v215 = vld [vmem:[%s165 + $0x40] sm:$0xf]
      %v216 = vld [vmem:[%s165 + $0x48] sm:$0xf]
      %v217 = vld [vmem:[%s165 + $0x4c] sm:$0xf]
      %v218 = vld [vmem:[%s165 + $0x54] sm:$0xf]
      %v219 = vld [vmem:[%s165 + $0x58] sm:$0xf]
      %v220 = vld [vmem:[%s165 + $0x60] sm:$0xf]
      %v221 = vld [vmem:[%s165 + $0x64] sm:$0xf]
      %v222 = vld [vmem:[%s165 + $0x6c] sm:$0xf]
      %v223 = vld [vmem:[%s165 + $0x70] sm:$0xf]
      %v224 = vld [vmem:[%s165 + $0x78] sm:$0xf]
      %v225 = vld [vmem:[%s165 + $0x7c] sm:$0xf]
      %v226 = vld [vmem:[%s165 + $0x84] sm:$0xf]
      %v227 = vld [vmem:[%s165 + $0x88] sm:$0xf]
      %v228 = vld [vmem:[%s165 + $0x90] sm:$0xf]
      %v229 = vld [vmem:[%s165 + $0x94] sm:$0xf]
      %v230 = vld [vmem:[%s165 + $0x9c] sm:$0xf]
      %v231 = vld [vmem:[%s165 + $0xa0] sm:$0xf]
      %v232 = vld [vmem:[%s165 + $0xa8] sm:$0xf]
      %v233 = vld [vmem:[%s165 + $0xac] sm:$0xf]
      %v234 = vld [vmem:[%s165 + $0xb4] sm:$0xf]
      %v235 = vld [vmem:[%s165 + $0xb8] sm:$0xf]
      %v236 = vld [vmem:[#allocation2] sm:$0xff]
      %v237 = vld [vmem:[#allocation2 + $0x8] sm:$0xff]
      %v238 = vld [vmem:[#allocation2 + $0x10] sm:$0xff]
      %v239 = vld [vmem:[#allocation2 + $0x18] sm:$0xff]
      %v240 = vld [vmem:[#allocation2 + $0x20] sm:$0xff]
      %v241 = vld [vmem:[#allocation2 + $0x28] sm:$0xff]
      %v242 = vld [vmem:[#allocation2 + $0x30] sm:$0xff]
      %v243 = vld [vmem:[#allocation2 + $0x38] sm:$0xff]
      %v244 = vld [vmem:[#allocation2 + $0x40] sm:$0xff]
      %v245 = vld [vmem:[#allocation2 + $0x48] sm:$0xff]
      %v246 = vld [vmem:[#allocation2 + $0x50] sm:$0xff]
      %v247 = vld [vmem:[#allocation2 + $0x58] sm:$0xff]
      %v248 = vld [vmem:[#allocation2 + $0x60] sm:$0xff]
      %v249 = vld [vmem:[#allocation2 + $0x68] sm:$0xff]
      %v250 = vld [vmem:[#allocation2 + $0x70] sm:$0xff]
      %v251 = vld [vmem:[#allocation2 + $0x78] sm:$0xff]
      %v252 = vld [vmem:[#allocation2 + $0x80] sm:$0xff]
      %v253 = vld [vmem:[#allocation2 + $0x88] sm:$0xff]
      %v254 = vld [vmem:[#allocation2 + $0x90] sm:$0xff]
      %v255 = vld [vmem:[#allocation2 + $0x98] sm:$0xff]
      %v256 = vld [vmem:[#allocation2 + $0xa0] sm:$0xff]
      %v257 = vld [vmem:[#allocation2 + $0xa8] sm:$0xff]
      %v258 = vld [vmem:[#allocation2 + $0xb0] sm:$0xff]
      %v259 = vld [vmem:[#allocation2 + $0xb8] sm:$0xff]
      %v260 = vld [vmem:[#allocation2 + $0xc0] sm:$0xff]
      %v261 = vld [vmem:[#allocation2 + $0xc8] sm:$0xff]
      %v262 = vld [vmem:[#allocation2 + $0xd0] sm:$0xff]
      %v263 = vld [vmem:[#allocation2 + $0xd8] sm:$0xff]
      %v264 = vld [vmem:[#allocation2 + $0xe0] sm:$0xff]
      %v265 = vld [vmem:[#allocation2 + $0xe8] sm:$0xff]
      %v266 = vld [vmem:[#allocation2 + $0xf0] sm:$0xff]
      %v267 = vld [vmem:[#allocation2 + $0xf8] sm:$0xff]
      %v268 = vld [vmem:[%s1] sm:$0xf]
      %v269 = vld [vmem:[%s1 + $0x4] sm:$0xf]
      %v270 = vld [vmem:[%s1 + $0x8] sm:$0xf]
      %v271 = vld [vmem:[%s1 + $0xc] sm:$0xf]
      %v272 = vld [vmem:[%s1 + $0x10] sm:$0xf]
      %v273 = vld [vmem:[%s1 + $0x14] sm:$0xf]
      %v274 = vld [vmem:[%s1 + $0x18] sm:$0xf]
      %v275 = vld [vmem:[%s1 + $0x1c] sm:$0xf]
      %v308 = vunpack.c.l.b16 %v204
      %v309 = vunpack.c.l.b16 %v205
      %v310 = vunpack.c.l.b16 %v206
      %v311 = vunpack.c.l.b16 %v207
      %v312 = vunpack.c.l.b16 %v208
      %v313 = vunpack.c.l.b16 %v209
      %v314 = vunpack.c.l.b16 %v210
      %v315 = vunpack.c.l.b16 %v211
      %v316 = vunpack.c.l.b16 %v212
      %v317 = vunpack.c.l.b16 %v213
      %v318 = vunpack.c.l.b16 %v214
      %v319 = vunpack.c.l.b16 %v215
      %v320 = vunpack.c.l.b16 %v216
      %v321 = vunpack.c.l.b16 %v217
      %v322 = vunpack.c.l.b16 %v218
      %v323 = vunpack.c.l.b16 %v219
      %v324 = vunpack.c.l.b16 %v220
      %v325 = vunpack.c.l.b16 %v221
      %v326 = vunpack.c.l.b16 %v222
      %v327 = vunpack.c.l.b16 %v223
      %v328 = vunpack.c.l.b16 %v224
      %v329 = vunpack.c.l.b16 %v225
      %v330 = vunpack.c.l.b16 %v226
      %v331 = vunpack.c.l.b16 %v227
      %v332 = vunpack.c.l.b16 %v228
      %v333 = vunpack.c.l.b16 %v229
      %v334 = vunpack.c.l.b16 %v230
      %v335 = vunpack.c.l.b16 %v231
      %v336 = vunpack.c.l.b16 %v232
      %v337 = vunpack.c.l.b16 %v233
      %v338 = vunpack.c.l.b16 %v234
      %v339 = vunpack.c.l.b16 %v235
      %v340 = vpack.c.b16 %v309, %v308
      %v341 = vpack.c.b16 %v311, %v310
      %v342 = vpack.c.b16 %v313, %v312
      %v343 = vpack.c.b16 %v315, %v314
      %v344 = vpack.c.b16 %v317, %v316
      %v345 = vpack.c.b16 %v319, %v318
      %v346 = vpack.c.b16 %v321, %v320
      %v347 = vpack.c.b16 %v323, %v322
      %v348 = vpack.c.b16 %v325, %v324
      %v349 = vpack.c.b16 %v327, %v326
      %v350 = vpack.c.b16 %v329, %v328
      %v351 = vpack.c.b16 %v331, %v330
      %v352 = vpack.c.b16 %v333, %v332
      %v353 = vpack.c.b16 %v335, %v334
      %v354 = vpack.c.b16 %v337, %v336
      %v355 = vpack.c.b16 %v339, %v338
      %v364 = vunpack.c.l.b16 %v268
      %v365 = vunpack.c.l.b16 %v269
      %v366 = vunpack.c.l.b16 %v270
      %v367 = vunpack.c.l.b16 %v271
      %v368 = vunpack.c.l.b16 %v272
      %v369 = vunpack.c.l.b16 %v273
      %v370 = vunpack.c.l.b16 %v274
      %v371 = vunpack.c.l.b16 %v275
      %v372 = vpack.c.b16 %v365, %v364
      %v373 = vpack.c.b16 %v367, %v366
      %v374 = vpack.c.b16 %v369, %v368
      %v375 = vpack.c.b16 %v371, %v370
      %vm380 = vcmask 523264
      %v382 = vsel %vm380, %v340, 0
      %v385 = vsel %vm380, %v341, 0
      %v388 = vsel %vm380, %v342, 0
      %v391 = vsel %vm380, %v343, 0
      %v394 = vsel %vm380, %v344, 0
      %v397 = vsel %vm380, %v345, 0
      %v400 = vsel %vm380, %v346, 0
      %v403 = vsel %vm380, %v347, 0
      %v406 = vsel %vm380, %v348, 0
      %v409 = vsel %vm380, %v349, 0
      %v412 = vsel %vm380, %v350, 0
      %v415 = vsel %vm380, %v351, 0
      %v418 = vsel %vm380, %v352, 0
      %v421 = vsel %vm380, %v353, 0
      %v424 = vsel %vm380, %v354, 0
      %v427 = vsel %vm380, %v355, 0
      %429 = vmatpush.bf16.msra.mxu0 0
      %430 = vmatpush.bf16.msra.mxu0 0
      %431 = vmatpush.bf16.msra.mxu0 0
      %432 = vmatpush.bf16.msra.mxu0 0
      %433 = vmatpush.bf16.msra.mxu0 %v375
      %434 = vmatpush.bf16.msra.mxu0 %v374
      %435 = vmatpush.bf16.msra.mxu0 %v373
      %436 = vmatpush.bf16.msra.mxu0 %v372
      %437 = vmatmul.bf16.gmra.mxu0 %v382
      %v438 = vpop.f32.mrf.mxu0
      %v439 = vadd.f32 0.0, %v438
      %v440 = vpop.f32.mrf.mxu0
      %v441 = vadd.f32 0.0, %v440
      %442 = vmatmul.bf16.gmra.mxu0 %v385
      %v443 = vpop.f32.mrf.mxu0
      %v444 = vadd.f32 0.0, %v443
      %v445 = vpop.f32.mrf.mxu0
      %v446 = vadd.f32 0.0, %v445
      %447 = vmatmul.bf16.gmra.mxu0 %v388
      %v448 = vpop.f32.mrf.mxu0
      %v449 = vadd.f32 0.0, %v448
      %v450 = vpop.f32.mrf.mxu0
      %v451 = vadd.f32 0.0, %v450
      %452 = vmatmul.bf16.gmra.mxu0 %v391
      %v453 = vpop.f32.mrf.mxu0
      %v454 = vadd.f32 0.0, %v453
      %v455 = vpop.f32.mrf.mxu0
      %v456 = vadd.f32 0.0, %v455
      %457 = vmatmul.bf16.gmra.mxu0 %v394
      %v458 = vpop.f32.mrf.mxu0
      %v459 = vadd.f32 0.0, %v458
      %v460 = vpop.f32.mrf.mxu0
      %v461 = vadd.f32 0.0, %v460
      %462 = vmatmul.bf16.gmra.mxu0 %v397
      %v463 = vpop.f32.mrf.mxu0
      %v464 = vadd.f32 0.0, %v463
      %v465 = vpop.f32.mrf.mxu0
      %v466 = vadd.f32 0.0, %v465
      %467 = vmatmul.bf16.gmra.mxu0 %v400
      %v468 = vpop.f32.mrf.mxu0
      %v469 = vadd.f32 0.0, %v468
      %v470 = vpop.f32.mrf.mxu0
      %v471 = vadd.f32 0.0, %v470
      %472 = vmatmul.bf16.gmra.mxu0 %v403
      %v473 = vpop.f32.mrf.mxu0
      %v474 = vadd.f32 0.0, %v473
      %v475 = vpop.f32.mrf.mxu0
      %v476 = vadd.f32 0.0, %v475
      %477 = vmatmul.bf16.gmra.mxu0 %v406
      %v478 = vpop.f32.mrf.mxu0
      %v479 = vadd.f32 0.0, %v478
      %v480 = vpop.f32.mrf.mxu0
      %v481 = vadd.f32 0.0, %v480
      %482 = vmatmul.bf16.gmra.mxu0 %v409
      %v483 = vpop.f32.mrf.mxu0
      %v484 = vadd.f32 0.0, %v483
      %v485 = vpop.f32.mrf.mxu0
      %v486 = vadd.f32 0.0, %v485
      %487 = vmatmul.bf16.gmra.mxu0 %v412
      %v488 = vpop.f32.mrf.mxu0
      %v489 = vadd.f32 0.0, %v488
      %v490 = vpop.f32.mrf.mxu0
      %v491 = vadd.f32 0.0, %v490
      %492 = vmatmul.bf16.gmra.mxu0 %v415
      %v493 = vpop.f32.mrf.mxu0
      %v494 = vadd.f32 0.0, %v493
      %v495 = vpop.f32.mrf.mxu0
      %v496 = vadd.f32 0.0, %v495
      %497 = vmatmul.bf16.gmra.mxu0 %v418
      %v498 = vpop.f32.mrf.mxu0
      %v499 = vadd.f32 0.0, %v498
      %v500 = vpop.f32.mrf.mxu0
      %v501 = vadd.f32 0.0, %v500
      %502 = vmatmul.bf16.gmra.mxu0 %v421
      %v503 = vpop.f32.mrf.mxu0
      %v504 = vadd.f32 0.0, %v503
      %v505 = vpop.f32.mrf.mxu0
      %v506 = vadd.f32 0.0, %v505
      %507 = vmatmul.bf16.gmra.mxu0 %v424
      %v508 = vpop.f32.mrf.mxu0
      %v509 = vadd.f32 0.0, %v508
      %v510 = vpop.f32.mrf.mxu0
      %v511 = vadd.f32 0.0, %v510
      %512 = vmatmul.bf16.gmra.mxu0 %v427
      %v513 = vpop.f32.mrf.mxu0
      %v514 = vadd.f32 0.0, %v513
      %v515 = vpop.f32.mrf.mxu0
      %v516 = vadd.f32 0.0, %v515
      %517 = vdwg.mxu0
      %v518 = vadd.f32 %v236, %v439
      %v519 = vadd.f32 %v237, %v441
      %v520 = vadd.f32 %v238, %v444
      %v521 = vadd.f32 %v239, %v446
      %v522 = vadd.f32 %v240, %v449
      %v523 = vadd.f32 %v241, %v451
      %v524 = vadd.f32 %v242, %v454
      %v525 = vadd.f32 %v243, %v456
      %v526 = vadd.f32 %v244, %v459
      %v527 = vadd.f32 %v245, %v461
      %v528 = vadd.f32 %v246, %v464
      %v529 = vadd.f32 %v247, %v466
      %v530 = vadd.f32 %v248, %v469
      %v531 = vadd.f32 %v249, %v471
      %v532 = vadd.f32 %v250, %v474
      %v533 = vadd.f32 %v251, %v476
      %v534 = vadd.f32 %v252, %v479
      %v535 = vadd.f32 %v253, %v481
      %v536 = vadd.f32 %v254, %v484
      %v537 = vadd.f32 %v255, %v486
      %v538 = vadd.f32 %v256, %v489
      %v539 = vadd.f32 %v257, %v491
      %v540 = vadd.f32 %v258, %v494
      %v541 = vadd.f32 %v259, %v496
      %v542 = vadd.f32 %v260, %v499
      %v543 = vadd.f32 %v261, %v501
      %v544 = vadd.f32 %v262, %v504
      %v545 = vadd.f32 %v263, %v506
      %v546 = vadd.f32 %v264, %v509
      %v547 = vadd.f32 %v265, %v511
      %v548 = vadd.f32 %v266, %v514
      %v549 = vadd.f32 %v267, %v516
      %550 = vst [vmem:[#allocation2] sm:$0xff] %v518
      %551 = vst [vmem:[#allocation2 + $0x8] sm:$0xff] %v519
      %552 = vst [vmem:[#allocation2 + $0x10] sm:$0xff] %v520
      %553 = vst [vmem:[#allocation2 + $0x18] sm:$0xff] %v521
      %554 = vst [vmem:[#allocation2 + $0x20] sm:$0xff] %v522
      %555 = vst [vmem:[#allocation2 + $0x28] sm:$0xff] %v523
      %556 = vst [vmem:[#allocation2 + $0x30] sm:$0xff] %v524
      %557 = vst [vmem:[#allocation2 + $0x38] sm:$0xff] %v525
      %558 = vst [vmem:[#allocation2 + $0x40] sm:$0xff] %v526
      %559 = vst [vmem:[#allocation2 + $0x48] sm:$0xff] %v527
      %560 = vst [vmem:[#allocation2 + $0x50] sm:$0xff] %v528
      %561 = vst [vmem:[#allocation2 + $0x58] sm:$0xff] %v529
      %562 = vst [vmem:[#allocation2 + $0x60] sm:$0xff] %v530
      %563 = vst [vmem:[#allocation2 + $0x68] sm:$0xff] %v531
      %564 = vst [vmem:[#allocation2 + $0x70] sm:$0xff] %v532
      %565 = vst [vmem:[#allocation2 + $0x78] sm:$0xff] %v533
      %566 = vst [vmem:[#allocation2 + $0x80] sm:$0xff] %v534
      %567 = vst [vmem:[#allocation2 + $0x88] sm:$0xff] %v535
      %568 = vst [vmem:[#allocation2 + $0x90] sm:$0xff] %v536
      %569 = vst [vmem:[#allocation2 + $0x98] sm:$0xff] %v537
      %570 = vst [vmem:[#allocation2 + $0xa0] sm:$0xff] %v538
      %571 = vst [vmem:[#allocation2 + $0xa8] sm:$0xff] %v539
      %572 = vst [vmem:[#allocation2 + $0xb0] sm:$0xff] %v540
      %573 = vst [vmem:[#allocation2 + $0xb8] sm:$0xff] %v541
      %574 = vst [vmem:[#allocation2 + $0xc0] sm:$0xff] %v542
      %575 = vst [vmem:[#allocation2 + $0xc8] sm:$0xff] %v543
      %576 = vst [vmem:[#allocation2 + $0xd0] sm:$0xff] %v544
      %577 = vst [vmem:[#allocation2 + $0xd8] sm:$0xff] %v545
      %578 = vst [vmem:[#allocation2 + $0xe0] sm:$0xff] %v546
      %579 = vst [vmem:[#allocation2 + $0xe8] sm:$0xff] %v547
      %580 = vst [vmem:[#allocation2 + $0xf0] sm:$0xff] %v548
      %581 = vst [vmem:[#allocation2 + $0xf8] sm:$0xff] %v549
      %v582 = vld [vmem:[%s165] sm:$0xf]
      %v583 = vld [vmem:[%s165 + $0x4] sm:$0xf]
      %v584 = vld [vmem:[%s165 + $0x8] sm:$0x1]
      %v585 = vld [vmem:[%s165 + $0xc] sm:$0xf]
      %v586 = vld [vmem:[%s165 + $0x10] sm:$0xf]
      %v587 = vld [vmem:[%s165 + $0x14] sm:$0x1]
      %v588 = vld [vmem:[%s165 + $0x18] sm:$0xf]
      %v589 = vld [vmem:[%s165 + $0x1c] sm:$0xf]
      %v590 = vld [vmem:[%s165 + $0x20] sm:$0x1]
      %v591 = vld [vmem:[%s165 + $0x24] sm:$0xf]
      %v592 = vld [vmem:[%s165 + $0x28] sm:$0xf]
      %v593 = vld [vmem:[%s165 + $0x2c] sm:$0x1]
      %v594 = vld [vmem:[%s165 + $0x30] sm:$0xf]
      %v595 = vld [vmem:[%s165 + $0x34] sm:$0xf]
      %v596 = vld [vmem:[%s165 + $0x38] sm:$0x1]
      %v597 = vld [vmem:[%s165 + $0x3c] sm:$0xf]
      %v598 = vld [vmem:[%s165 + $0x40] sm:$0xf]
      %v599 = vld [vmem:[%s165 + $0x44] sm:$0x1]
      %v600 = vld [vmem:[%s165 + $0x48] sm:$0xf]
      %v601 = vld [vmem:[%s165 + $0x4c] sm:$0xf]
      %v602 = vld [vmem:[%s165 + $0x50] sm:$0x1]
      %v603 = vld [vmem:[%s165 + $0x54] sm:$0xf]
      %v604 = vld [vmem:[%s165 + $0x58] sm:$0xf]
      %v605 = vld [vmem:[%s165 + $0x5c] sm:$0x1]
      %v606 = vld [vmem:[%s165 + $0x60] sm:$0xf]
      %v607 = vld [vmem:[%s165 + $0x64] sm:$0xf]
      %v608 = vld [vmem:[%s165 + $0x68] sm:$0x1]
      %v609 = vld [vmem:[%s165 + $0x6c] sm:$0xf]
      %v610 = vld [vmem:[%s165 + $0x70] sm:$0xf]
      %v611 = vld [vmem:[%s165 + $0x74] sm:$0x1]
      %v612 = vld [vmem:[%s165 + $0x78] sm:$0xf]
      %v613 = vld [vmem:[%s165 + $0x7c] sm:$0xf]
      %v614 = vld [vmem:[%s165 + $0x80] sm:$0x1]
      %v615 = vld [vmem:[%s165 + $0x84] sm:$0xf]
      %v616 = vld [vmem:[%s165 + $0x88] sm:$0xf]
      %v617 = vld [vmem:[%s165 + $0x8c] sm:$0x1]
      %v618 = vld [vmem:[%s165 + $0x90] sm:$0xf]
      %v619 = vld [vmem:[%s165 + $0x94] sm:$0xf]
      %v620 = vld [vmem:[%s165 + $0x98] sm:$0x1]
      %v621 = vld [vmem:[%s165 + $0x9c] sm:$0xf]
      %v622 = vld [vmem:[%s165 + $0xa0] sm:$0xf]
      %v623 = vld [vmem:[%s165 + $0xa4] sm:$0x1]
      %v624 = vld [vmem:[%s165 + $0xa8] sm:$0xf]
      %v625 = vld [vmem:[%s165 + $0xac] sm:$0xf]
      %v626 = vld [vmem:[%s165 + $0xb0] sm:$0x1]
      %v627 = vld [vmem:[%s165 + $0xb4] sm:$0xf]
      %v628 = vld [vmem:[%s165 + $0xb8] sm:$0xf]
      %v629 = vld [vmem:[%s165 + $0xbc] sm:$0x1]
      %vm630 = vsmask.f32 3328
      %vm631 = vsmask.f32 7440
      %vm632 = vmor %vm630, %vm631
      %v634 = vshrl.u32 %v582, 16
      %v636 = vrot.slane %v634, 4
      %v637 = vshll.u32 %v582, 16
      %v639 = vrot.slane %v637, 5
      %v640 = vor.u32 %v636, %v639
      %v641 = vrot.slane %v640, 4
      %v643 = vshll.u32 %v583, 16
      %v645 = vrot.slane %v643, 5
      %v646 = vsel %vm632, %v641, %v645
      %v647 = vshrl.u32 %v583, 16
      %v649 = vrot.slane %v647, 4
      %v650 = vor.u32 %v649, %v645
      %v651 = vrot.slane %v650, 4
      %v653 = vshll.u32 %v584, 16
      %v655 = vrot.slane %v653, 5
      %v656 = vsel %vm632, %v651, %v655
      %v658 = vshrl.u32 %v585, 16
      %v660 = vrot.slane %v658, 4
      %v661 = vshll.u32 %v585, 16
      %v663 = vrot.slane %v661, 5
      %v664 = vor.u32 %v660, %v663
      %v665 = vrot.slane %v664, 4
      %v667 = vshll.u32 %v586, 16
      %v669 = vrot.slane %v667, 5
      %v670 = vsel %vm632, %v665, %v669
      %v671 = vshrl.u32 %v586, 16
      %v673 = vrot.slane %v671, 4
      %v674 = vor.u32 %v673, %v669
      %v675 = vrot.slane %v674, 4
      %v677 = vshll.u32 %v587, 16
      %v679 = vrot.slane %v677, 5
      %v680 = vsel %vm632, %v675, %v679
      %v682 = vshrl.u32 %v588, 16
      %v684 = vrot.slane %v682, 4
      %v685 = vshll.u32 %v588, 16
      %v687 = vrot.slane %v685, 5
      %v688 = vor.u32 %v684, %v687
      %v689 = vrot.slane %v688, 4
      %v691 = vshll.u32 %v589, 16
      %v693 = vrot.slane %v691, 5
      %v694 = vsel %vm632, %v689, %v693
      %v695 = vshrl.u32 %v589, 16
      %v697 = vrot.slane %v695, 4
      %v698 = vor.u32 %v697, %v693
      %v699 = vrot.slane %v698, 4
      %v701 = vshll.u32 %v590, 16
      %v703 = vrot.slane %v701, 5
      %v704 = vsel %vm632, %v699, %v703
      %v706 = vshrl.u32 %v591, 16
      %v708 = vrot.slane %v706, 4
      %v709 = vshll.u32 %v591, 16
      %v711 = vrot.slane %v709, 5
      %v712 = vor.u32 %v708, %v711
      %v713 = vrot.slane %v712, 4
      %v715 = vshll.u32 %v592, 16
      %v717 = vrot.slane %v715, 5
      %v718 = vsel %vm632, %v713, %v717
      %v719 = vshrl.u32 %v592, 16
      %v721 = vrot.slane %v719, 4
      %v722 = vor.u32 %v721, %v717
      %v723 = vrot.slane %v722, 4
      %v725 = vshll.u32 %v593, 16
      %v727 = vrot.slane %v725, 5
      %v728 = vsel %vm632, %v723, %v727
      %v730 = vshrl.u32 %v594, 16
      %v732 = vrot.slane %v730, 4
      %v733 = vshll.u32 %v594, 16
      %v735 = vrot.slane %v733, 5
      %v736 = vor.u32 %v732, %v735
      %v737 = vrot.slane %v736, 4
      %v739 = vshll.u32 %v595, 16
      %v741 = vrot.slane %v739, 5
      %v742 = vsel %vm632, %v737, %v741
      %v743 = vshrl.u32 %v595, 16
      %v745 = vrot.slane %v743, 4
      %v746 = vor.u32 %v745, %v741
      %v747 = vrot.slane %v746, 4
      %v749 = vshll.u32 %v596, 16
      %v751 = vrot.slane %v749, 5
      %v752 = vsel %vm632, %v747, %v751
      %v754 = vshrl.u32 %v597, 16
      %v756 = vrot.slane %v754, 4
      %v757 = vshll.u32 %v597, 16
      %v759 = vrot.slane %v757, 5
      %v760 = vor.u32 %v756, %v759
      %v761 = vrot.slane %v760, 4
      %v763 = vshll.u32 %v598, 16
      %v765 = vrot.slane %v763, 5
      %v766 = vsel %vm632, %v761, %v765
      %v767 = vshrl.u32 %v598, 16
      %v769 = vrot.slane %v767, 4
      %v770 = vor.u32 %v769, %v765
      %v771 = vrot.slane %v770, 4
      %v773 = vshll.u32 %v599, 16
      %v775 = vrot.slane %v773, 5
      %v776 = vsel %vm632, %v771, %v775
      %v778 = vshrl.u32 %v600, 16
      %v780 = vrot.slane %v778, 4
      %v781 = vshll.u32 %v600, 16
      %v783 = vrot.slane %v781, 5
      %v784 = vor.u32 %v780, %v783
      %v785 = vrot.slane %v784, 4
      %v787 = vshll.u32 %v601, 16
      %v789 = vrot.slane %v787, 5
      %v790 = vsel %vm632, %v785, %v789
      %v791 = vshrl.u32 %v601, 16
      %v793 = vrot.slane %v791, 4
      %v794 = vor.u32 %v793, %v789
      %v795 = vrot.slane %v794, 4
      %v797 = vshll.u32 %v602, 16
      %v799 = vrot.slane %v797, 5
      %v800 = vsel %vm632, %v795, %v799
      %v802 = vshrl.u32 %v603, 16
      %v804 = vrot.slane %v802, 4
      %v805 = vshll.u32 %v603, 16
      %v807 = vrot.slane %v805, 5
      %v808 = vor.u32 %v804, %v807
      %v809 = vrot.slane %v808, 4
      %v811 = vshll.u32 %v604, 16
      %v813 = vrot.slane %v811, 5
      %v814 = vsel %vm632, %v809, %v813
      %v815 = vshrl.u32 %v604, 16
      %v817 = vrot.slane %v815, 4
      %v818 = vor.u32 %v817, %v813
      %v819 = vrot.slane %v818, 4
      %v821 = vshll.u32 %v605, 16
      %v823 = vrot.slane %v821, 5
      %v824 = vsel %vm632, %v819, %v823
      %v826 = vshrl.u32 %v606, 16
      %v828 = vrot.slane %v826, 4
      %v829 = vshll.u32 %v606, 16
      %v831 = vrot.slane %v829, 5
      %v832 = vor.u32 %v828, %v831
      %v833 = vrot.slane %v832, 4
      %v835 = vshll.u32 %v607, 16
      %v837 = vrot.slane %v835, 5
      %v838 = vsel %vm632, %v833, %v837
      %v839 = vshrl.u32 %v607, 16
      %v841 = vrot.slane %v839, 4
      %v842 = vor.u32 %v841, %v837
      %v843 = vrot.slane %v842, 4
      %v845 = vshll.u32 %v608, 16
      %v847 = vrot.slane %v845, 5
      %v848 = vsel %vm632, %v843, %v847
      %v850 = vshrl.u32 %v609, 16
      %v852 = vrot.slane %v850, 4
      %v853 = vshll.u32 %v609, 16
      %v855 = vrot.slane %v853, 5
      %v856 = vor.u32 %v852, %v855
      %v857 = vrot.slane %v856, 4
      %v859 = vshll.u32 %v610, 16
      %v861 = vrot.slane %v859, 5
      %v862 = vsel %vm632, %v857, %v861
      %v863 = vshrl.u32 %v610, 16
      %v865 = vrot.slane %v863, 4
      %v866 = vor.u32 %v865, %v861
      %v867 = vrot.slane %v866, 4
      %v869 = vshll.u32 %v611, 16
      %v871 = vrot.slane %v869, 5
      %v872 = vsel %vm632, %v867, %v871
      %v874 = vshrl.u32 %v612, 16
      %v876 = vrot.slane %v874, 4
      %v877 = vshll.u32 %v612, 16
      %v879 = vrot.slane %v877, 5
      %v880 = vor.u32 %v876, %v879
      %v881 = vrot.slane %v880, 4
      %v883 = vshll.u32 %v613, 16
      %v885 = vrot.slane %v883, 5
      %v886 = vsel %vm632, %v881, %v885
      %v887 = vshrl.u32 %v613, 16
      %v889 = vrot.slane %v887, 4
      %v890 = vor.u32 %v889, %v885
      %v891 = vrot.slane %v890, 4
      %v893 = vshll.u32 %v614, 16
      %v895 = vrot.slane %v893, 5
      %v896 = vsel %vm632, %v891, %v895
      %v898 = vshrl.u32 %v615, 16
      %v900 = vrot.slane %v898, 4
      %v901 = vshll.u32 %v615, 16
      %v903 = vrot.slane %v901, 5
      %v904 = vor.u32 %v900, %v903
      %v905 = vrot.slane %v904, 4
      %v907 = vshll.u32 %v616, 16
      %v909 = vrot.slane %v907, 5
      %v910 = vsel %vm632, %v905, %v909
      %v911 = vshrl.u32 %v616, 16
      %v913 = vrot.slane %v911, 4
      %v914 = vor.u32 %v913, %v909
      %v915 = vrot.slane %v914, 4
      %v917 = vshll.u32 %v617, 16
      %v919 = vrot.slane %v917, 5
      %v920 = vsel %vm632, %v915, %v919
      %v922 = vshrl.u32 %v618, 16
      %v924 = vrot.slane %v922, 4
      %v925 = vshll.u32 %v618, 16
      %v927 = vrot.slane %v925, 5
      %v928 = vor.u32 %v924, %v927
      %v929 = vrot.slane %v928, 4
      %v931 = vshll.u32 %v619, 16
      %v933 = vrot.slane %v931, 5
      %v934 = vsel %vm632, %v929, %v933
      %v935 = vshrl.u32 %v619, 16
      %v937 = vrot.slane %v935, 4
      %v938 = vor.u32 %v937, %v933
      %v939 = vrot.slane %v938, 4
      %v941 = vshll.u32 %v620, 16
      %v943 = vrot.slane %v941, 5
      %v944 = vsel %vm632, %v939, %v943
      %v946 = vshrl.u32 %v621, 16
      %v948 = vrot.slane %v946, 4
      %v949 = vshll.u32 %v621, 16
      %v951 = vrot.slane %v949, 5
      %v952 = vor.u32 %v948, %v951
      %v953 = vrot.slane %v952, 4
      %v955 = vshll.u32 %v622, 16
      %v957 = vrot.slane %v955, 5
      %v958 = vsel %vm632, %v953, %v957
      %v959 = vshrl.u32 %v622, 16
      %v961 = vrot.slane %v959, 4
      %v962 = vor.u32 %v961, %v957
      %v963 = vrot.slane %v962, 4
      %v965 = vshll.u32 %v623, 16
      %v967 = vrot.slane %v965, 5
      %v968 = vsel %vm632, %v963, %v967
      %v970 = vshrl.u32 %v624, 16
      %v972 = vrot.slane %v970, 4
      %v973 = vshll.u32 %v624, 16
      %v975 = vrot.slane %v973, 5
      %v976 = vor.u32 %v972, %v975
      %v977 = vrot.slane %v976, 4
      %v979 = vshll.u32 %v625, 16
      %v981 = vrot.slane %v979, 5
      %v982 = vsel %vm632, %v977, %v981
      %v983 = vshrl.u32 %v625, 16
      %v985 = vrot.slane %v983, 4
      %v986 = vor.u32 %v985, %v981
      %v987 = vrot.slane %v986, 4
      %v989 = vshll.u32 %v626, 16
      %v991 = vrot.slane %v989, 5
      %v992 = vsel %vm632, %v987, %v991
      %v994 = vshrl.u32 %v627, 16
      %v996 = vrot.slane %v994, 4
      %v997 = vshll.u32 %v627, 16
      %v999 = vrot.slane %v997, 5
      %v1000 = vor.u32 %v996, %v999
      %v1001 = vrot.slane %v1000, 4
      %v1003 = vshll.u32 %v628, 16
      %v1005 = vrot.slane %v1003, 5
      %v1006 = vsel %vm632, %v1001, %v1005
      %v1007 = vshrl.u32 %v628, 16
      %v1009 = vrot.slane %v1007, 4
      %v1010 = vor.u32 %v1009, %v1005
      %v1011 = vrot.slane %v1010, 4
      %v1013 = vshll.u32 %v629, 16
      %v1015 = vrot.slane %v1013, 5
      %v1016 = vsel %vm632, %v1011, %v1015
      %v1017 = vld [vmem:[#allocation2] sm:$0xff]
      %v1018 = vld [vmem:[#allocation2 + $0x8] sm:$0xff]
      %v1019 = vld [vmem:[#allocation2 + $0x10] sm:$0xff]
      %v1020 = vld [vmem:[#allocation2 + $0x18] sm:$0xff]
      %v1021 = vld [vmem:[#allocation2 + $0x20] sm:$0xff]
      %v1022 = vld [vmem:[#allocation2 + $0x28] sm:$0xff]
      %v1023 = vld [vmem:[#allocation2 + $0x30] sm:$0xff]
      %v1024 = vld [vmem:[#allocation2 + $0x38] sm:$0xff]
      %v1025 = vld [vmem:[#allocation2 + $0x40] sm:$0xff]
      %v1026 = vld [vmem:[#allocation2 + $0x48] sm:$0xff]
      %v1027 = vld [vmem:[#allocation2 + $0x50] sm:$0xff]
      %v1028 = vld [vmem:[#allocation2 + $0x58] sm:$0xff]
      %v1029 = vld [vmem:[#allocation2 + $0x60] sm:$0xff]
      %v1030 = vld [vmem:[#allocation2 + $0x68] sm:$0xff]
      %v1031 = vld [vmem:[#allocation2 + $0x70] sm:$0xff]
      %v1032 = vld [vmem:[#allocation2 + $0x78] sm:$0xff]
      %v1033 = vld [vmem:[#allocation2 + $0x80] sm:$0xff]
      %v1034 = vld [vmem:[#allocation2 + $0x88] sm:$0xff]
      %v1035 = vld [vmem:[#allocation2 + $0x90] sm:$0xff]
      %v1036 = vld [vmem:[#allocation2 + $0x98] sm:$0xff]
      %v1037 = vld [vmem:[#allocation2 + $0xa0] sm:$0xff]
      %v1038 = vld [vmem:[#allocation2 + $0xa8] sm:$0xff]
      %v1039 = vld [vmem:[#allocation2 + $0xb0] sm:$0xff]
      %v1040 = vld [vmem:[#allocation2 + $0xb8] sm:$0xff]
      %v1041 = vld [vmem:[#allocation2 + $0xc0] sm:$0xff]
      %v1042 = vld [vmem:[#allocation2 + $0xc8] sm:$0xff]
      %v1043 = vld [vmem:[#allocation2 + $0xd0] sm:$0xff]
      %v1044 = vld [vmem:[#allocation2 + $0xd8] sm:$0xff]
      %v1045 = vld [vmem:[#allocation2 + $0xe0] sm:$0xff]
      %v1046 = vld [vmem:[#allocation2 + $0xe8] sm:$0xff]
      %v1047 = vld [vmem:[#allocation2 + $0xf0] sm:$0xff]
      %v1048 = vld [vmem:[#allocation2 + $0xf8] sm:$0xff]
      %s1049 = scalar_lea.vmem %s1, 32
      %v1050 = vld [vmem:[%s1049] sm:$0xf]
      %v1051 = vld [vmem:[%s1049 + $0x4] sm:$0xf]
      %v1052 = vld [vmem:[%s1049 + $0x8] sm:$0xf]
      %v1053 = vld [vmem:[%s1049 + $0xc] sm:$0xf]
      %v1054 = vld [vmem:[%s1049 + $0x10] sm:$0xf]
      %v1055 = vld [vmem:[%s1049 + $0x14] sm:$0xf]
      %v1056 = vld [vmem:[%s1049 + $0x18] sm:$0xf]
      %v1057 = vld [vmem:[%s1049 + $0x1c] sm:$0xf]
      %v1058 = vunpack.c.l.b16 %v646
      %v1059 = vunpack.c.l.b16 %v656
      %v1060 = vunpack.c.l.b16 %v670
      %v1061 = vunpack.c.l.b16 %v680
      %v1062 = vunpack.c.l.b16 %v694
      %v1063 = vunpack.c.l.b16 %v704
      %v1064 = vunpack.c.l.b16 %v718
      %v1065 = vunpack.c.l.b16 %v728
      %v1066 = vunpack.c.l.b16 %v742
      %v1067 = vunpack.c.l.b16 %v752
      %v1068 = vunpack.c.l.b16 %v766
      %v1069 = vunpack.c.l.b16 %v776
      %v1070 = vunpack.c.l.b16 %v790
      %v1071 = vunpack.c.l.b16 %v800
      %v1072 = vunpack.c.l.b16 %v814
      %v1073 = vunpack.c.l.b16 %v824
      %v1074 = vunpack.c.l.b16 %v838
      %v1075 = vunpack.c.l.b16 %v848
      %v1076 = vunpack.c.l.b16 %v862
      %v1077 = vunpack.c.l.b16 %v872
      %v1078 = vunpack.c.l.b16 %v886
      %v1079 = vunpack.c.l.b16 %v896
      %v1080 = vunpack.c.l.b16 %v910
      %v1081 = vunpack.c.l.b16 %v920
      %v1082 = vunpack.c.l.b16 %v934
      %v1083 = vunpack.c.l.b16 %v944
      %v1084 = vunpack.c.l.b16 %v958
      %v1085 = vunpack.c.l.b16 %v968
      %v1086 = vunpack.c.l.b16 %v982
      %v1087 = vunpack.c.l.b16 %v992
      %v1088 = vunpack.c.l.b16 %v1006
      %v1089 = vunpack.c.l.b16 %v1016
      %v1090 = vpack.c.b16 %v1059, %v1058
      %v1091 = vpack.c.b16 %v1061, %v1060
      %v1092 = vpack.c.b16 %v1063, %v1062
      %v1093 = vpack.c.b16 %v1065, %v1064
      %v1094 = vpack.c.b16 %v1067, %v1066
      %v1095 = vpack.c.b16 %v1069, %v1068
      %v1096 = vpack.c.b16 %v1071, %v1070
      %v1097 = vpack.c.b16 %v1073, %v1072
      %v1098 = vpack.c.b16 %v1075, %v1074
      %v1099 = vpack.c.b16 %v1077, %v1076
      %v1100 = vpack.c.b16 %v1079, %v1078
      %v1101 = vpack.c.b16 %v1081, %v1080
      %v1102 = vpack.c.b16 %v1083, %v1082
      %v1103 = vpack.c.b16 %v1085, %v1084
      %v1104 = vpack.c.b16 %v1087, %v1086
      %v1105 = vpack.c.b16 %v1089, %v1088
      %v1114 = vunpack.c.l.b16 %v1050
      %v1115 = vunpack.c.l.b16 %v1051
      %v1116 = vunpack.c.l.b16 %v1052
      %v1117 = vunpack.c.l.b16 %v1053
      %v1118 = vunpack.c.l.b16 %v1054
      %v1119 = vunpack.c.l.b16 %v1055
      %v1120 = vunpack.c.l.b16 %v1056
      %v1121 = vunpack.c.l.b16 %v1057
      %v1122 = vpack.c.b16 %v1115, %v1114
      %v1123 = vpack.c.b16 %v1117, %v1116
      %v1124 = vpack.c.b16 %v1119, %v1118
      %v1125 = vpack.c.b16 %v1121, %v1120
      %v1131 = vsel %vm380, %v1090, 0
      %v1134 = vsel %vm380, %v1091, 0
      %v1137 = vsel %vm380, %v1092, 0
      %v1140 = vsel %vm380, %v1093, 0
      %v1143 = vsel %vm380, %v1094, 0
      %v1146 = vsel %vm380, %v1095, 0
      %v1149 = vsel %vm380, %v1096, 0
      %v1152 = vsel %vm380, %v1097, 0
      %v1155 = vsel %vm380, %v1098, 0
      %v1158 = vsel %vm380, %v1099, 0
      %v1161 = vsel %vm380, %v1100, 0
      %v1164 = vsel %vm380, %v1101, 0
      %v1167 = vsel %vm380, %v1102, 0
      %v1170 = vsel %vm380, %v1103, 0
      %v1173 = vsel %vm380, %v1104, 0
      %v1176 = vsel %vm380, %v1105, 0
      %1178 = vmatpush.bf16.msra.mxu0 0
      %1179 = vmatpush.bf16.msra.mxu0 0
      %1180 = vmatpush.bf16.msra.mxu0 0
      %1181 = vmatpush.bf16.msra.mxu0 0
      %1182 = vmatpush.bf16.msra.mxu0 %v1125
      %1183 = vmatpush.bf16.msra.mxu0 %v1124
      %1184 = vmatpush.bf16.msra.mxu0 %v1123
      %1185 = vmatpush.bf16.msra.mxu0 %v1122
      %1186 = vmatmul.bf16.gmra.mxu0 %v1131
      %v1187 = vpop.f32.mrf.mxu0
      %v1188 = vadd.f32 0.0, %v1187
      %v1189 = vpop.f32.mrf.mxu0
      %v1190 = vadd.f32 0.0, %v1189
      %1191 = vmatmul.bf16.gmra.mxu0 %v1134
      %v1192 = vpop.f32.mrf.mxu0
      %v1193 = vadd.f32 0.0, %v1192
      %v1194 = vpop.f32.mrf.mxu0
      %v1195 = vadd.f32 0.0, %v1194
      %1196 = vmatmul.bf16.gmra.mxu0 %v1137
      %v1197 = vpop.f32.mrf.mxu0
      %v1198 = vadd.f32 0.0, %v1197
      %v1199 = vpop.f32.mrf.mxu0
      %v1200 = vadd.f32 0.0, %v1199
      %1201 = vmatmul.bf16.gmra.mxu0 %v1140
      %v1202 = vpop.f32.mrf.mxu0
      %v1203 = vadd.f32 0.0, %v1202
      %v1204 = vpop.f32.mrf.mxu0
      %v1205 = vadd.f32 0.0, %v1204
      %1206 = vmatmul.bf16.gmra.mxu0 %v1143
      %v1207 = vpop.f32.mrf.mxu0
      %v1208 = vadd.f32 0.0, %v1207
      %v1209 = vpop.f32.mrf.mxu0
      %v1210 = vadd.f32 0.0, %v1209
      %1211 = vmatmul.bf16.gmra.mxu0 %v1146
      %v1212 = vpop.f32.mrf.mxu0
      %v1213 = vadd.f32 0.0, %v1212
      %v1214 = vpop.f32.mrf.mxu0
      %v1215 = vadd.f32 0.0, %v1214
      %1216 = vmatmul.bf16.gmra.mxu0 %v1149
      %v1217 = vpop.f32.mrf.mxu0
      %v1218 = vadd.f32 0.0, %v1217
      %v1219 = vpop.f32.mrf.mxu0
      %v1220 = vadd.f32 0.0, %v1219
      %1221 = vmatmul.bf16.gmra.mxu0 %v1152
      %v1222 = vpop.f32.mrf.mxu0
      %v1223 = vadd.f32 0.0, %v1222
      %v1224 = vpop.f32.mrf.mxu0
      %v1225 = vadd.f32 0.0, %v1224
      %1226 = vmatmul.bf16.gmra.mxu0 %v1155
      %v1227 = vpop.f32.mrf.mxu0
      %v1228 = vadd.f32 0.0, %v1227
      %v1229 = vpop.f32.mrf.mxu0
      %v1230 = vadd.f32 0.0, %v1229
      %1231 = vmatmul.bf16.gmra.mxu0 %v1158
      %v1232 = vpop.f32.mrf.mxu0
      %v1233 = vadd.f32 0.0, %v1232
      %v1234 = vpop.f32.mrf.mxu0
      %v1235 = vadd.f32 0.0, %v1234
      %1236 = vmatmul.bf16.gmra.mxu0 %v1161
      %v1237 = vpop.f32.mrf.mxu0
      %v1238 = vadd.f32 0.0, %v1237
      %v1239 = vpop.f32.mrf.mxu0
      %v1240 = vadd.f32 0.0, %v1239
      %1241 = vmatmul.bf16.gmra.mxu0 %v1164
      %v1242 = vpop.f32.mrf.mxu0
      %v1243 = vadd.f32 0.0, %v1242
      %v1244 = vpop.f32.mrf.mxu0
      %v1245 = vadd.f32 0.0, %v1244
      %1246 = vmatmul.bf16.gmra.mxu0 %v1167
      %v1247 = vpop.f32.mrf.mxu0
      %v1248 = vadd.f32 0.0, %v1247
      %v1249 = vpop.f32.mrf.mxu0
      %v1250 = vadd.f32 0.0, %v1249
      %1251 = vmatmul.bf16.gmra.mxu0 %v1170
      %v1252 = vpop.f32.mrf.mxu0
      %v1253 = vadd.f32 0.0, %v1252
      %v1254 = vpop.f32.mrf.mxu0
      %v1255 = vadd.f32 0.0, %v1254
      %1256 = vmatmul.bf16.gmra.mxu0 %v1173
      %v1257 = vpop.f32.mrf.mxu0
      %v1258 = vadd.f32 0.0, %v1257
      %v1259 = vpop.f32.mrf.mxu0
      %v1260 = vadd.f32 0.0, %v1259
      %1261 = vmatmul.bf16.gmra.mxu0 %v1176
      %v1262 = vpop.f32.mrf.mxu0
      %v1263 = vadd.f32 0.0, %v1262
      %v1264 = vpop.f32.mrf.mxu0
      %v1265 = vadd.f32 0.0, %v1264
      %1266 = vdwg.mxu0
      %v1267 = vadd.f32 %v1017, %v1188
      %v1268 = vadd.f32 %v1018, %v1190
      %v1269 = vadd.f32 %v1019, %v1193
      %v1270 = vadd.f32 %v1020, %v1195
      %v1271 = vadd.f32 %v1021, %v1198
      %v1272 = vadd.f32 %v1022, %v1200
      %v1273 = vadd.f32 %v1023, %v1203
      %v1274 = vadd.f32 %v1024, %v1205
      %v1275 = vadd.f32 %v1025, %v1208
      %v1276 = vadd.f32 %v1026, %v1210
      %v1277 = vadd.f32 %v1027, %v1213
      %v1278 = vadd.f32 %v1028, %v1215
      %v1279 = vadd.f32 %v1029, %v1218
      %v1280 = vadd.f32 %v1030, %v1220
      %v1281 = vadd.f32 %v1031, %v1223
      %v1282 = vadd.f32 %v1032, %v1225
      %v1283 = vadd.f32 %v1033, %v1228
      %v1284 = vadd.f32 %v1034, %v1230
      %v1285 = vadd.f32 %v1035, %v1233
      %v1286 = vadd.f32 %v1036, %v1235
      %v1287 = vadd.f32 %v1037, %v1238
      %v1288 = vadd.f32 %v1038, %v1240
      %v1289 = vadd.f32 %v1039, %v1243
      %v1290 = vadd.f32 %v1040, %v1245
      %v1291 = vadd.f32 %v1041, %v1248
      %v1292 = vadd.f32 %v1042, %v1250
      %v1293 = vadd.f32 %v1043, %v1253
      %v1294 = vadd.f32 %v1044, %v1255
      %v1295 = vadd.f32 %v1045, %v1258
      %v1296 = vadd.f32 %v1046, %v1260
      %v1297 = vadd.f32 %v1047, %v1263
      %v1298 = vadd.f32 %v1048, %v1265
      %1299 = vst [vmem:[#allocation2] sm:$0xff] %v1267
      %1300 = vst [vmem:[#allocation2 + $0x8] sm:$0xff] %v1268
      %1301 = vst [vmem:[#allocation2 + $0x10] sm:$0xff] %v1269
      %1302 = vst [vmem:[#allocation2 + $0x18] sm:$0xff] %v1270
      %1303 = vst [vmem:[#allocation2 + $0x20] sm:$0xff] %v1271
      %1304 = vst [vmem:[#allocation2 + $0x28] sm:$0xff] %v1272
      %1305 = vst [vmem:[#allocation2 + $0x30] sm:$0xff] %v1273
      %1306 = vst [vmem:[#allocation2 + $0x38] sm:$0xff] %v1274
      %1307 = vst [vmem:[#allocation2 + $0x40] sm:$0xff] %v1275
      %1308 = vst [vmem:[#allocation2 + $0x48] sm:$0xff] %v1276
      %1309 = vst [vmem:[#allocation2 + $0x50] sm:$0xff] %v1277
      %1310 = vst [vmem:[#allocation2 + $0x58] sm:$0xff] %v1278
      %1311 = vst [vmem:[#allocation2 + $0x60] sm:$0xff] %v1279
      %1312 = vst [vmem:[#allocation2 + $0x68] sm:$0xff] %v1280
      %1313 = vst [vmem:[#allocation2 + $0x70] sm:$0xff] %v1281
      %1314 = vst [vmem:[#allocation2 + $0x78] sm:$0xff] %v1282
      %1315 = vst [vmem:[#allocation2 + $0x80] sm:$0xff] %v1283
      %1316 = vst [vmem:[#allocation2 + $0x88] sm:$0xff] %v1284
      %1317 = vst [vmem:[#allocation2 + $0x90] sm:$0xff] %v1285
      %1318 = vst [vmem:[#allocation2 + $0x98] sm:$0xff] %v1286
      %1319 = vst [vmem:[#allocation2 + $0xa0] sm:$0xff] %v1287
      %1320 = vst [vmem:[#allocation2 + $0xa8] sm:$0xff] %v1288
      %1321 = vst [vmem:[#allocation2 + $0xb0] sm:$0xff] %v1289
      %1322 = vst [vmem:[#allocation2 + $0xb8] sm:$0xff] %v1290
      %1323 = vst [vmem:[#allocation2 + $0xc0] sm:$0xff] %v1291
      %1324 = vst [vmem:[#allocation2 + $0xc8] sm:$0xff] %v1292
      %1325 = vst [vmem:[#allocation2 + $0xd0] sm:$0xff] %v1293
      %1326 = vst [vmem:[#allocation2 + $0xd8] sm:$0xff] %v1294
      %1327 = vst [vmem:[#allocation2 + $0xe0] sm:$0xff] %v1295
      %1328 = vst [vmem:[#allocation2 + $0xe8] sm:$0xff] %v1296
      %1329 = vst [vmem:[#allocation2 + $0xf0] sm:$0xff] %v1297
      %1330 = vst [vmem:[#allocation2 + $0xf8] sm:$0xff] %v1298
      %v1331 = vld [vmem:[%s165] sm:$0xe]
      %v1332 = vld [vmem:[%s165 + $0x4] sm:$0xf]
      %v1333 = vld [vmem:[%s165 + $0x8] sm:$0x1]
      %v1334 = vld [vmem:[%s165 + $0xc] sm:$0xe]
      %v1335 = vld [vmem:[%s165 + $0x10] sm:$0xf]
      %v1336 = vld [vmem:[%s165 + $0x14] sm:$0x1]
      %v1337 = vld [vmem:[%s165 + $0x18] sm:$0xe]
      %v1338 = vld [vmem:[%s165 + $0x1c] sm:$0xf]
      %v1339 = vld [vmem:[%s165 + $0x20] sm:$0x1]
      %v1340 = vld [vmem:[%s165 + $0x24] sm:$0xe]
      %v1341 = vld [vmem:[%s165 + $0x28] sm:$0xf]
      %v1342 = vld [vmem:[%s165 + $0x2c] sm:$0x1]
      %v1343 = vld [vmem:[%s165 + $0x30] sm:$0xe]
      %v1344 = vld [vmem:[%s165 + $0x34] sm:$0xf]
      %v1345 = vld [vmem:[%s165 + $0x38] sm:$0x1]
      %v1346 = vld [vmem:[%s165 + $0x3c] sm:$0xe]
      %v1347 = vld [vmem:[%s165 + $0x40] sm:$0xf]
      %v1348 = vld [vmem:[%s165 + $0x44] sm:$0x1]
      %v1349 = vld [vmem:[%s165 + $0x48] sm:$0xe]
      %v1350 = vld [vmem:[%s165 + $0x4c] sm:$0xf]
      %v1351 = vld [vmem:[%s165 + $0x50] sm:$0x1]
      %v1352 = vld [vmem:[%s165 + $0x54] sm:$0xe]
      %v1353 = vld [vmem:[%s165 + $0x58] sm:$0xf]
      %v1354 = vld [vmem:[%s165 + $0x5c] sm:$0x1]
      %v1355 = vld [vmem:[%s165 + $0x60] sm:$0xe]
      %v1356 = vld [vmem:[%s165 + $0x64] sm:$0xf]
      %v1357 = vld [vmem:[%s165 + $0x68] sm:$0x1]
      %v1358 = vld [vmem:[%s165 + $0x6c] sm:$0xe]
      %v1359 = vld [vmem:[%s165 + $0x70] sm:$0xf]
      %v1360 = vld [vmem:[%s165 + $0x74] sm:$0x1]
      %v1361 = vld [vmem:[%s165 + $0x78] sm:$0xe]
      %v1362 = vld [vmem:[%s165 + $0x7c] sm:$0xf]
      %v1363 = vld [vmem:[%s165 + $0x80] sm:$0x1]
      %v1364 = vld [vmem:[%s165 + $0x84] sm:$0xe]
      %v1365 = vld [vmem:[%s165 + $0x88] sm:$0xf]
      %v1366 = vld [vmem:[%s165 + $0x8c] sm:$0x1]
      %v1367 = vld [vmem:[%s165 + $0x90] sm:$0xe]
      %v1368 = vld [vmem:[%s165 + $0x94] sm:$0xf]
      %v1369 = vld [vmem:[%s165 + $0x98] sm:$0x1]
      %v1370 = vld [vmem:[%s165 + $0x9c] sm:$0xe]
      %v1371 = vld [vmem:[%s165 + $0xa0] sm:$0xf]
      %v1372 = vld [vmem:[%s165 + $0xa4] sm:$0x1]
      %v1373 = vld [vmem:[%s165 + $0xa8] sm:$0xe]
      %v1374 = vld [vmem:[%s165 + $0xac] sm:$0xf]
      %v1375 = vld [vmem:[%s165 + $0xb0] sm:$0x1]
      %v1376 = vld [vmem:[%s165 + $0xb4] sm:$0xe]
      %v1377 = vld [vmem:[%s165 + $0xb8] sm:$0xf]
      %v1378 = vld [vmem:[%s165 + $0xbc] sm:$0x1]
      %vm1427 = vcmask 1042432
      %vm1428 = vcmask 1046532
      %vm1429 = vmor %vm1427, %vm1428
      %v1430 = vrot.slane %v1331, 5
      %v1431 = vrot.slane %v1430, 4
      %v1432 = vrot.slane %v1332, 5
      %v1433 = vsel %vm1429, %v1431, %v1432
      %v1434 = vrot.slane %v1432, 4
      %v1435 = vrot.slane %v1333, 5
      %v1436 = vsel %vm1429, %v1434, %v1435
      %v1437 = vrot.slane %v1334, 5
      %v1438 = vrot.slane %v1437, 4
      %v1439 = vrot.slane %v1335, 5
      %v1440 = vsel %vm1429, %v1438, %v1439
      %v1441 = vrot.slane %v1439, 4
      %v1442 = vrot.slane %v1336, 5
      %v1443 = vsel %vm1429, %v1441, %v1442
      %v1444 = vrot.slane %v1337, 5
      %v1445 = vrot.slane %v1444, 4
      %v1446 = vrot.slane %v1338, 5
      %v1447 = vsel %vm1429, %v1445, %v1446
      %v1448 = vrot.slane %v1446, 4
      %v1449 = vrot.slane %v1339, 5
      %v1450 = vsel %vm1429, %v1448, %v1449
      %v1451 = vrot.slane %v1340, 5
      %v1452 = vrot.slane %v1451, 4
      %v1453 = vrot.slane %v1341, 5
      %v1454 = vsel %vm1429, %v1452, %v1453
      %v1455 = vrot.slane %v1453, 4
      %v1456 = vrot.slane %v1342, 5
      %v1457 = vsel %vm1429, %v1455, %v1456
      %v1458 = vrot.slane %v1343, 5
      %v1459 = vrot.slane %v1458, 4
      %v1460 = vrot.slane %v1344, 5
      %v1461 = vsel %vm1429, %v1459, %v1460
      %v1462 = vrot.slane %v1460, 4
      %v1463 = vrot.slane %v1345, 5
      %v1464 = vsel %vm1429, %v1462, %v1463
      %v1465 = vrot.slane %v1346, 5
      %v1466 = vrot.slane %v1465, 4
      %v1467 = vrot.slane %v1347, 5
      %v1468 = vsel %vm1429, %v1466, %v1467
      %v1469 = vrot.slane %v1467, 4
      %v1470 = vrot.slane %v1348, 5
      %v1471 = vsel %vm1429, %v1469, %v1470
      %v1472 = vrot.slane %v1349, 5
      %v1473 = vrot.slane %v1472, 4
      %v1474 = vrot.slane %v1350, 5
      %v1475 = vsel %vm1429, %v1473, %v1474
      %v1476 = vrot.slane %v1474, 4
      %v1477 = vrot.slane %v1351, 5
      %v1478 = vsel %vm1429, %v1476, %v1477
      %v1479 = vrot.slane %v1352, 5
      %v1480 = vrot.slane %v1479, 4
      %v1481 = vrot.slane %v1353, 5
      %v1482 = vsel %vm1429, %v1480, %v1481
      %v1483 = vrot.slane %v1481, 4
      %v1484 = vrot.slane %v1354, 5
      %v1485 = vsel %vm1429, %v1483, %v1484
      %v1486 = vrot.slane %v1355, 5
      %v1487 = vrot.slane %v1486, 4
      %v1488 = vrot.slane %v1356, 5
      %v1489 = vsel %vm1429, %v1487, %v1488
      %v1490 = vrot.slane %v1488, 4
      %v1491 = vrot.slane %v1357, 5
      %v1492 = vsel %vm1429, %v1490, %v1491
      %v1493 = vrot.slane %v1358, 5
      %v1494 = vrot.slane %v1493, 4
      %v1495 = vrot.slane %v1359, 5
      %v1496 = vsel %vm1429, %v1494, %v1495
      %v1497 = vrot.slane %v1495, 4
      %v1498 = vrot.slane %v1360, 5
      %v1499 = vsel %vm1429, %v1497, %v1498
      %v1500 = vrot.slane %v1361, 5
      %v1501 = vrot.slane %v1500, 4
      %v1502 = vrot.slane %v1362, 5
      %v1503 = vsel %vm1429, %v1501, %v1502
      %v1504 = vrot.slane %v1502, 4
      %v1505 = vrot.slane %v1363, 5
      %v1506 = vsel %vm1429, %v1504, %v1505
      %v1507 = vrot.slane %v1364, 5
      %v1508 = vrot.slane %v1507, 4
      %v1509 = vrot.slane %v1365, 5
      %v1510 = vsel %vm1429, %v1508, %v1509
      %v1511 = vrot.slane %v1509, 4
      %v1512 = vrot.slane %v1366, 5
      %v1513 = vsel %vm1429, %v1511, %v1512
      %v1514 = vrot.slane %v1367, 5
      %v1515 = vrot.slane %v1514, 4
      %v1516 = vrot.slane %v1368, 5
      %v1517 = vsel %vm1429, %v1515, %v1516
      %v1518 = vrot.slane %v1516, 4
      %v1519 = vrot.slane %v1369, 5
      %v1520 = vsel %vm1429, %v1518, %v1519
      %v1521 = vrot.slane %v1370, 5
      %v1522 = vrot.slane %v1521, 4
      %v1523 = vrot.slane %v1371, 5
      %v1524 = vsel %vm1429, %v1522, %v1523
      %v1525 = vrot.slane %v1523, 4
      %v1526 = vrot.slane %v1372, 5
      %v1527 = vsel %vm1429, %v1525, %v1526
      %v1528 = vrot.slane %v1373, 5
      %v1529 = vrot.slane %v1528, 4
      %v1530 = vrot.slane %v1374, 5
      %v1531 = vsel %vm1429, %v1529, %v1530
      %v1532 = vrot.slane %v1530, 4
      %v1533 = vrot.slane %v1375, 5
      %v1534 = vsel %vm1429, %v1532, %v1533
      %v1535 = vrot.slane %v1376, 5
      %v1536 = vrot.slane %v1535, 4
      %v1537 = vrot.slane %v1377, 5
      %v1538 = vsel %vm1429, %v1536, %v1537
      %v1539 = vrot.slane %v1537, 4
      %v1540 = vrot.slane %v1378, 5
      %v1541 = vsel %vm1429, %v1539, %v1540
      %v1542 = vld [vmem:[#allocation2] sm:$0xff]
      %v1543 = vld [vmem:[#allocation2 + $0x8] sm:$0xff]
      %v1544 = vld [vmem:[#allocation2 + $0x10] sm:$0xff]
      %v1545 = vld [vmem:[#allocation2 + $0x18] sm:$0xff]
      %v1546 = vld [vmem:[#allocation2 + $0x20] sm:$0xff]
      %v1547 = vld [vmem:[#allocation2 + $0x28] sm:$0xff]
      %v1548 = vld [vmem:[#allocation2 + $0x30] sm:$0xff]
      %v1549 = vld [vmem:[#allocation2 + $0x38] sm:$0xff]
      %v1550 = vld [vmem:[#allocation2 + $0x40] sm:$0xff]
      %v1551 = vld [vmem:[#allocation2 + $0x48] sm:$0xff]
      %v1552 = vld [vmem:[#allocation2 + $0x50] sm:$0xff]
      %v1553 = vld [vmem:[#allocation2 + $0x58] sm:$0xff]
      %v1554 = vld [vmem:[#allocation2 + $0x60] sm:$0xff]
      %v1555 = vld [vmem:[#allocation2 + $0x68] sm:$0xff]
      %v1556 = vld [vmem:[#allocation2 + $0x70] sm:$0xff]
      %v1557 = vld [vmem:[#allocation2 + $0x78] sm:$0xff]
      %v1558 = vld [vmem:[#allocation2 + $0x80] sm:$0xff]
      %v1559 = vld [vmem:[#allocation2 + $0x88] sm:$0xff]
      %v1560 = vld [vmem:[#allocation2 + $0x90] sm:$0xff]
      %v1561 = vld [vmem:[#allocation2 + $0x98] sm:$0xff]
      %v1562 = vld [vmem:[#allocation2 + $0xa0] sm:$0xff]
      %v1563 = vld [vmem:[#allocation2 + $0xa8] sm:$0xff]
      %v1564 = vld [vmem:[#allocation2 + $0xb0] sm:$0xff]
      %v1565 = vld [vmem:[#allocation2 + $0xb8] sm:$0xff]
      %v1566 = vld [vmem:[#allocation2 + $0xc0] sm:$0xff]
      %v1567 = vld [vmem:[#allocation2 + $0xc8] sm:$0xff]
      %v1568 = vld [vmem:[#allocation2 + $0xd0] sm:$0xff]
      %v1569 = vld [vmem:[#allocation2 + $0xd8] sm:$0xff]
      %v1570 = vld [vmem:[#allocation2 + $0xe0] sm:$0xff]
      %v1571 = vld [vmem:[#allocation2 + $0xe8] sm:$0xff]
      %v1572 = vld [vmem:[#allocation2 + $0xf0] sm:$0xff]
      %v1573 = vld [vmem:[#allocation2 + $0xf8] sm:$0xff]
      %s1574 = scalar_lea.vmem %s1, 64
      %v1575 = vld [vmem:[%s1574] sm:$0xf]
      %v1576 = vld [vmem:[%s1574 + $0x4] sm:$0xf]
      %v1577 = vld [vmem:[%s1574 + $0x8] sm:$0xf]
      %v1578 = vld [vmem:[%s1574 + $0xc] sm:$0xf]
      %v1579 = vld [vmem:[%s1574 + $0x10] sm:$0xf]
      %v1580 = vld [vmem:[%s1574 + $0x14] sm:$0xf]
      %v1581 = vld [vmem:[%s1574 + $0x18] sm:$0xf]
      %v1582 = vld [vmem:[%s1574 + $0x1c] sm:$0xf]
      %v1583 = vunpack.c.l.b16 %v1433
      %v1584 = vunpack.c.l.b16 %v1436
      %v1585 = vunpack.c.l.b16 %v1440
      %v1586 = vunpack.c.l.b16 %v1443
      %v1587 = vunpack.c.l.b16 %v1447
      %v1588 = vunpack.c.l.b16 %v1450
      %v1589 = vunpack.c.l.b16 %v1454
      %v1590 = vunpack.c.l.b16 %v1457
      %v1591 = vunpack.c.l.b16 %v1461
      %v1592 = vunpack.c.l.b16 %v1464
      %v1593 = vunpack.c.l.b16 %v1468
      %v1594 = vunpack.c.l.b16 %v1471
      %v1595 = vunpack.c.l.b16 %v1475
      %v1596 = vunpack.c.l.b16 %v1478
      %v1597 = vunpack.c.l.b16 %v1482
      %v1598 = vunpack.c.l.b16 %v1485
      %v1599 = vunpack.c.l.b16 %v1489
      %v1600 = vunpack.c.l.b16 %v1492
      %v1601 = vunpack.c.l.b16 %v1496
      %v1602 = vunpack.c.l.b16 %v1499
      %v1603 = vunpack.c.l.b16 %v1503
      %v1604 = vunpack.c.l.b16 %v1506
      %v1605 = vunpack.c.l.b16 %v1510
      %v1606 = vunpack.c.l.b16 %v1513
      %v1607 = vunpack.c.l.b16 %v1517
      %v1608 = vunpack.c.l.b16 %v1520
      %v1609 = vunpack.c.l.b16 %v1524
      %v1610 = vunpack.c.l.b16 %v1527
      %v1611 = vunpack.c.l.b16 %v1531
      %v1612 = vunpack.c.l.b16 %v1534
      %v1613 = vunpack.c.l.b16 %v1538
      %v1614 = vunpack.c.l.b16 %v1541
      %v1615 = vpack.c.b16 %v1584, %v1583
      %v1616 = vpack.c.b16 %v1586, %v1585
      %v1617 = vpack.c.b16 %v1588, %v1587
      %v1618 = vpack.c.b16 %v1590, %v1589
      %v1619 = vpack.c.b16 %v1592, %v1591
      %v1620 = vpack.c.b16 %v1594, %v1593
      %v1621 = vpack.c.b16 %v1596, %v1595
      %v1622 = vpack.c.b16 %v1598, %v1597
      %v1623 = vpack.c.b16 %v1600, %v1599
      %v1624 = vpack.c.b16 %v1602, %v1601
      %v1625 = vpack.c.b16 %v1604, %v1603
      %v1626 = vpack.c.b16 %v1606, %v1605
      %v1627 = vpack.c.b16 %v1608, %v1607
      %v1628 = vpack.c.b16 %v1610, %v1609
      %v1629 = vpack.c.b16 %v1612, %v1611
      %v1630 = vpack.c.b16 %v1614, %v1613
      %v1639 = vunpack.c.l.b16 %v1575
      %v1640 = vunpack.c.l.b16 %v1576
      %v1641 = vunpack.c.l.b16 %v1577
      %v1642 = vunpack.c.l.b16 %v1578
      %v1643 = vunpack.c.l.b16 %v1579
      %v1644 = vunpack.c.l.b16 %v1580
      %v1645 = vunpack.c.l.b16 %v1581
      %v1646 = vunpack.c.l.b16 %v1582
      %v1647 = vpack.c.b16 %v1640, %v1639
      %v1648 = vpack.c.b16 %v1642, %v1641
      %v1649 = vpack.c.b16 %v1644, %v1643
      %v1650 = vpack.c.b16 %v1646, %v1645
      %v1656 = vsel %vm380, %v1615, 0
      %v1659 = vsel %vm380, %v1616, 0
      %v1662 = vsel %vm380, %v1617, 0
      %v1665 = vsel %vm380, %v1618, 0
      %v1668 = vsel %vm380, %v1619, 0
      %v1671 = vsel %vm380, %v1620, 0
      %v1674 = vsel %vm380, %v1621, 0
      %v1677 = vsel %vm380, %v1622, 0
      %v1680 = vsel %vm380, %v1623, 0
      %v1683 = vsel %vm380, %v1624, 0
      %v1686 = vsel %vm380, %v1625, 0
      %v1689 = vsel %vm380, %v1626, 0
      %v1692 = vsel %vm380, %v1627, 0
      %v1695 = vsel %vm380, %v1628, 0
      %v1698 = vsel %vm380, %v1629, 0
      %v1701 = vsel %vm380, %v1630, 0
      %1703 = vmatpush.bf16.msra.mxu0 0
      %1704 = vmatpush.bf16.msra.mxu0 0
      %1705 = vmatpush.bf16.msra.mxu0 0
      %1706 = vmatpush.bf16.msra.mxu0 0
      %1707 = vmatpush.bf16.msra.mxu0 %v1650
      %1708 = vmatpush.bf16.msra.mxu0 %v1649
      %1709 = vmatpush.bf16.msra.mxu0 %v1648
      %1710 = vmatpush.bf16.msra.mxu0 %v1647
      %1711 = vmatmul.bf16.gmra.mxu0 %v1656
      %v1712 = vpop.f32.mrf.mxu0
      %v1713 = vadd.f32 0.0, %v1712
      %v1714 = vpop.f32.mrf.mxu0
      %v1715 = vadd.f32 0.0, %v1714
      %1716 = vmatmul.bf16.gmra.mxu0 %v1659
      %v1717 = vpop.f32.mrf.mxu0
      %v1718 = vadd.f32 0.0, %v1717
      %v1719 = vpop.f32.mrf.mxu0
      %v1720 = vadd.f32 0.0, %v1719
      %1721 = vmatmul.bf16.gmra.mxu0 %v1662
      %v1722 = vpop.f32.mrf.mxu0
      %v1723 = vadd.f32 0.0, %v1722
      %v1724 = vpop.f32.mrf.mxu0
      %v1725 = vadd.f32 0.0, %v1724
      %1726 = vmatmul.bf16.gmra.mxu0 %v1665
      %v1727 = vpop.f32.mrf.mxu0
      %v1728 = vadd.f32 0.0, %v1727
      %v1729 = vpop.f32.mrf.mxu0
      %v1730 = vadd.f32 0.0, %v1729
      %1731 = vmatmul.bf16.gmra.mxu0 %v1668
      %v1732 = vpop.f32.mrf.mxu0
      %v1733 = vadd.f32 0.0, %v1732
      %v1734 = vpop.f32.mrf.mxu0
      %v1735 = vadd.f32 0.0, %v1734
      %1736 = vmatmul.bf16.gmra.mxu0 %v1671
      %v1737 = vpop.f32.mrf.mxu0
      %v1738 = vadd.f32 0.0, %v1737
      %v1739 = vpop.f32.mrf.mxu0
      %v1740 = vadd.f32 0.0, %v1739
      %1741 = vmatmul.bf16.gmra.mxu0 %v1674
      %v1742 = vpop.f32.mrf.mxu0
      %v1743 = vadd.f32 0.0, %v1742
      %v1744 = vpop.f32.mrf.mxu0
      %v1745 = vadd.f32 0.0, %v1744
      %1746 = vmatmul.bf16.gmra.mxu0 %v1677
      %v1747 = vpop.f32.mrf.mxu0
      %v1748 = vadd.f32 0.0, %v1747
      %v1749 = vpop.f32.mrf.mxu0
      %v1750 = vadd.f32 0.0, %v1749
      %1751 = vmatmul.bf16.gmra.mxu0 %v1680
      %v1752 = vpop.f32.mrf.mxu0
      %v1753 = vadd.f32 0.0, %v1752
      %v1754 = vpop.f32.mrf.mxu0
      %v1755 = vadd.f32 0.0, %v1754
      %1756 = vmatmul.bf16.gmra.mxu0 %v1683
      %v1757 = vpop.f32.mrf.mxu0
      %v1758 = vadd.f32 0.0, %v1757
      %v1759 = vpop.f32.mrf.mxu0
      %v1760 = vadd.f32 0.0, %v1759
      %1761 = vmatmul.bf16.gmra.mxu0 %v1686
      %v1762 = vpop.f32.mrf.mxu0
      %v1763 = vadd.f32 0.0, %v1762
      %v1764 = vpop.f32.mrf.mxu0
      %v1765 = vadd.f32 0.0, %v1764
      %1766 = vmatmul.bf16.gmra.mxu0 %v1689
      %v1767 = vpop.f32.mrf.mxu0
      %v1768 = vadd.f32 0.0, %v1767
      %v1769 = vpop.f32.mrf.mxu0
      %v1770 = vadd.f32 0.0, %v1769
      %1771 = vmatmul.bf16.gmra.mxu0 %v1692
      %v1772 = vpop.f32.mrf.mxu0
      %v1773 = vadd.f32 0.0, %v1772
      %v1774 = vpop.f32.mrf.mxu0
      %v1775 = vadd.f32 0.0, %v1774
      %1776 = vmatmul.bf16.gmra.mxu0 %v1695
      %v1777 = vpop.f32.mrf.mxu0
      %v1778 = vadd.f32 0.0, %v1777
      %v1779 = vpop.f32.mrf.mxu0
      %v1780 = vadd.f32 0.0, %v1779
      %1781 = vmatmul.bf16.gmra.mxu0 %v1698
      %v1782 = vpop.f32.mrf.mxu0
      %v1783 = vadd.f32 0.0, %v1782
      %v1784 = vpop.f32.mrf.mxu0
      %v1785 = vadd.f32 0.0, %v1784
      %1786 = vmatmul.bf16.gmra.mxu0 %v1701
      %v1787 = vpop.f32.mrf.mxu0
      %v1788 = vadd.f32 0.0, %v1787
      %v1789 = vpop.f32.mrf.mxu0
      %v1790 = vadd.f32 0.0, %v1789
      %1791 = vdwg.mxu0
      %v1792 = vadd.f32 %v1542, %v1713
      %v1793 = vadd.f32 %v1543, %v1715
      %v1794 = vadd.f32 %v1544, %v1718
      %v1795 = vadd.f32 %v1545, %v1720
      %v1796 = vadd.f32 %v1546, %v1723
      %v1797 = vadd.f32 %v1547, %v1725
      %v1798 = vadd.f32 %v1548, %v1728
      %v1799 = vadd.f32 %v1549, %v1730
      %v1800 = vadd.f32 %v1550, %v1733
      %v1801 = vadd.f32 %v1551, %v1735
      %v1802 = vadd.f32 %v1552, %v1738
      %v1803 = vadd.f32 %v1553, %v1740
      %v1804 = vadd.f32 %v1554, %v1743
      %v1805 = vadd.f32 %v1555, %v1745
      %v1806 = vadd.f32 %v1556, %v1748
      %v1807 = vadd.f32 %v1557, %v1750
      %v1808 = vadd.f32 %v1558, %v1753
      %v1809 = vadd.f32 %v1559, %v1755
      %v1810 = vadd.f32 %v1560, %v1758
      %v1811 = vadd.f32 %v1561, %v1760
      %v1812 = vadd.f32 %v1562, %v1763
      %v1813 = vadd.f32 %v1563, %v1765
      %v1814 = vadd.f32 %v1564, %v1768
      %v1815 = vadd.f32 %v1565, %v1770
      %v1816 = vadd.f32 %v1566, %v1773
      %v1817 = vadd.f32 %v1567, %v1775
      %v1818 = vadd.f32 %v1568, %v1778
      %v1819 = vadd.f32 %v1569, %v1780
      %v1820 = vadd.f32 %v1570, %v1783
      %v1821 = vadd.f32 %v1571, %v1785
      %v1822 = vadd.f32 %v1572, %v1788
      %v1823 = vadd.f32 %v1573, %v1790
      %1824 = vst [vmem:[#allocation2] sm:$0xff] %v1792
      %1825 = vst [vmem:[#allocation2 + $0x8] sm:$0xff] %v1793
      %1826 = vst [vmem:[#allocation2 + $0x10] sm:$0xff] %v1794
      %1827 = vst [vmem:[#allocation2 + $0x18] sm:$0xff] %v1795
      %1828 = vst [vmem:[#allocation2 + $0x20] sm:$0xff] %v1796
      %1829 = vst [vmem:[#allocation2 + $0x28] sm:$0xff] %v1797
      %1830 = vst [vmem:[#allocation2 + $0x30] sm:$0xff] %v1798
      %1831 = vst [vmem:[#allocation2 + $0x38] sm:$0xff] %v1799
      %1832 = vst [vmem:[#allocation2 + $0x40] sm:$0xff] %v1800
      %1833 = vst [vmem:[#allocation2 + $0x48] sm:$0xff] %v1801
      %1834 = vst [vmem:[#allocation2 + $0x50] sm:$0xff] %v1802
      %1835 = vst [vmem:[#allocation2 + $0x58] sm:$0xff] %v1803
      %1836 = vst [vmem:[#allocation2 + $0x60] sm:$0xff] %v1804
      %1837 = vst [vmem:[#allocation2 + $0x68] sm:$0xff] %v1805
      %1838 = vst [vmem:[#allocation2 + $0x70] sm:$0xff] %v1806
      %1839 = vst [vmem:[#allocation2 + $0x78] sm:$0xff] %v1807
      %1840 = vst [vmem:[#allocation2 + $0x80] sm:$0xff] %v1808
      %1841 = vst [vmem:[#allocation2 + $0x88] sm:$0xff] %v1809
      %1842 = vst [vmem:[#allocation2 + $0x90] sm:$0xff] %v1810
      %1843 = vst [vmem:[#allocation2 + $0x98] sm:$0xff] %v1811
      %1844 = vst [vmem:[#allocation2 + $0xa0] sm:$0xff] %v1812
      %1845 = vst [vmem:[#allocation2 + $0xa8] sm:$0xff] %v1813
      %1846 = vst [vmem:[#allocation2 + $0xb0] sm:$0xff] %v1814
      %1847 = vst [vmem:[#allocation2 + $0xb8] sm:$0xff] %v1815
      %1848 = vst [vmem:[#allocation2 + $0xc0] sm:$0xff] %v1816
      %1849 = vst [vmem:[#allocation2 + $0xc8] sm:$0xff] %v1817
      %1850 = vst [vmem:[#allocation2 + $0xd0] sm:$0xff] %v1818
      %1851 = vst [vmem:[#allocation2 + $0xd8] sm:$0xff] %v1819
      %1852 = vst [vmem:[#allocation2 + $0xe0] sm:$0xff] %v1820
      %1853 = vst [vmem:[#allocation2 + $0xe8] sm:$0xff] %v1821
      %1854 = vst [vmem:[#allocation2 + $0xf0] sm:$0xff] %v1822
      %1855 = vst [vmem:[#allocation2 + $0xf8] sm:$0xff] %v1823
      %s1856 = scalar_lea.vmem %s165, 12
      %v1857 = vld [vmem:[%s1856] sm:$0xf]
      %v1858 = vld [vmem:[%s1856 + $0x4] sm:$0xf]
      %v1859 = vld [vmem:[%s1856 + $0xc] sm:$0xf]
      %v1860 = vld [vmem:[%s1856 + $0x10] sm:$0xf]
      %v1861 = vld [vmem:[%s1856 + $0x18] sm:$0xf]
      %v1862 = vld [vmem:[%s1856 + $0x1c] sm:$0xf]
      %v1863 = vld [vmem:[%s1856 + $0x24] sm:$0xf]
      %v1864 = vld [vmem:[%s1856 + $0x28] sm:$0xf]
      %v1865 = vld [vmem:[%s1856 + $0x30] sm:$0xf]
      %v1866 = vld [vmem:[%s1856 + $0x34] sm:$0xf]
      %v1867 = vld [vmem:[%s1856 + $0x3c] sm:$0xf]
      %v1868 = vld [vmem:[%s1856 + $0x40] sm:$0xf]
      %v1869 = vld [vmem:[%s1856 + $0x48] sm:$0xf]
      %v1870 = vld [vmem:[%s1856 + $0x4c] sm:$0xf]
      %v1871 = vld [vmem:[%s1856 + $0x54] sm:$0xf]
      %v1872 = vld [vmem:[%s1856 + $0x58] sm:$0xf]
      %v1873 = vld [vmem:[%s1856 + $0x60] sm:$0xf]
      %v1874 = vld [vmem:[%s1856 + $0x64] sm:$0xf]
      %v1875 = vld [vmem:[%s1856 + $0x6c] sm:$0xf]
      %v1876 = vld [vmem:[%s1856 + $0x70] sm:$0xf]
      %v1877 = vld [vmem:[%s1856 + $0x78] sm:$0xf]
      %v1878 = vld [vmem:[%s1856 + $0x7c] sm:$0xf]
      %v1879 = vld [vmem:[%s1856 + $0x84] sm:$0xf]
      %v1880 = vld [vmem:[%s1856 + $0x88] sm:$0xf]
      %v1881 = vld [vmem:[%s1856 + $0x90] sm:$0xf]
      %v1882 = vld [vmem:[%s1856 + $0x94] sm:$0xf]
      %v1883 = vld [vmem:[%s1856 + $0x9c] sm:$0xf]
      %v1884 = vld [vmem:[%s1856 + $0xa0] sm:$0xf]
      %v1885 = vld [vmem:[%s1856 + $0xa8] sm:$0xf]
      %v1886 = vld [vmem:[%s1856 + $0xac] sm:$0xf]
      %v1887 = vld [vmem:[%s1856 + $0xb4] sm:$0xf]
      %v1888 = vld [vmem:[%s1856 + $0xb8] sm:$0xf]
      %v1889 = vld [vmem:[#allocation2] sm:$0xff]
      %v1890 = vld [vmem:[#allocation2 + $0x8] sm:$0xff]
      %v1891 = vld [vmem:[#allocation2 + $0x10] sm:$0xff]
      %v1892 = vld [vmem:[#allocation2 + $0x18] sm:$0xff]
      %v1893 = vld [vmem:[#allocation2 + $0x20] sm:$0xff]
      %v1894 = vld [vmem:[#allocation2 + $0x28] sm:$0xff]
      %v1895 = vld [vmem:[#allocation2 + $0x30] sm:$0xff]
      %v1896 = vld [vmem:[#allocation2 + $0x38] sm:$0xff]
      %v1897 = vld [vmem:[#allocation2 + $0x40] sm:$0xff]
      %v1898 = vld [vmem:[#allocation2 + $0x48] sm:$0xff]
      %v1899 = vld [vmem:[#allocation2 + $0x50] sm:$0xff]
      %v1900 = vld [vmem:[#allocation2 + $0x58] sm:$0xff]
      %v1901 = vld [vmem:[#allocation2 + $0x60] sm:$0xff]
      %v1902 = vld [vmem:[#allocation2 + $0x68] sm:$0xff]
      %v1903 = vld [vmem:[#allocation2 + $0x70] sm:$0xff]
      %v1904 = vld [vmem:[#allocation2 + $0x78] sm:$0xff]
      %v1905 = vld [vmem:[#allocation2 + $0x80] sm:$0xff]
      %v1906 = vld [vmem:[#allocation2 + $0x88] sm:$0xff]
      %v1907 = vld [vmem:[#allocation2 + $0x90] sm:$0xff]
      %v1908 = vld [vmem:[#allocation2 + $0x98] sm:$0xff]
      %v1909 = vld [vmem:[#allocation2 + $0xa0] sm:$0xff]
      %v1910 = vld [vmem:[#allocation2 + $0xa8] sm:$0xff]
      %v1911 = vld [vmem:[#allocation2 + $0xb0] sm:$0xff]
      %v1912 = vld [vmem:[#allocation2 + $0xb8] sm:$0xff]
      %v1913 = vld [vmem:[#allocation2 + $0xc0] sm:$0xff]
      %v1914 = vld [vmem:[#allocation2 + $0xc8] sm:$0xff]
      %v1915 = vld [vmem:[#allocation2 + $0xd0] sm:$0xff]
      %v1916 = vld [vmem:[#allocation2 + $0xd8] sm:$0xff]
      %v1917 = vld [vmem:[#allocation2 + $0xe0] sm:$0xff]
      %v1918 = vld [vmem:[#allocation2 + $0xe8] sm:$0xff]
      %v1919 = vld [vmem:[#allocation2 + $0xf0] sm:$0xff]
      %v1920 = vld [vmem:[#allocation2 + $0xf8] sm:$0xff]
      %s1921 = scalar_lea.vmem %s1, 96
      %v1922 = vld [vmem:[%s1921] sm:$0xf]
      %v1923 = vld [vmem:[%s1921 + $0x4] sm:$0xf]
      %v1924 = vld [vmem:[%s1921 + $0x8] sm:$0xf]
      %v1925 = vld [vmem:[%s1921 + $0xc] sm:$0xf]
      %v1926 = vld [vmem:[%s1921 + $0x10] sm:$0xf]
      %v1927 = vld [vmem:[%s1921 + $0x14] sm:$0xf]
      %v1928 = vld [vmem:[%s1921 + $0x18] sm:$0xf]
      %v1929 = vld [vmem:[%s1921 + $0x1c] sm:$0xf]
      %v1962 = vunpack.c.l.b16 %v1857
      %v1963 = vunpack.c.l.b16 %v1858
      %v1964 = vunpack.c.l.b16 %v1859
      %v1965 = vunpack.c.l.b16 %v1860
      %v1966 = vunpack.c.l.b16 %v1861
      %v1967 = vunpack.c.l.b16 %v1862
      %v1968 = vunpack.c.l.b16 %v1863
      %v1969 = vunpack.c.l.b16 %v1864
      %v1970 = vunpack.c.l.b16 %v1865
      %v1971 = vunpack.c.l.b16 %v1866
      %v1972 = vunpack.c.l.b16 %v1867
      %v1973 = vunpack.c.l.b16 %v1868
      %v1974 = vunpack.c.l.b16 %v1869
      %v1975 = vunpack.c.l.b16 %v1870
      %v1976 = vunpack.c.l.b16 %v1871
      %v1977 = vunpack.c.l.b16 %v1872
      %v1978 = vunpack.c.l.b16 %v1873
      %v1979 = vunpack.c.l.b16 %v1874
      %v1980 = vunpack.c.l.b16 %v1875
      %v1981 = vunpack.c.l.b16 %v1876
      %v1982 = vunpack.c.l.b16 %v1877
      %v1983 = vunpack.c.l.b16 %v1878
      %v1984 = vunpack.c.l.b16 %v1879
      %v1985 = vunpack.c.l.b16 %v1880
      %v1986 = vunpack.c.l.b16 %v1881
      %v1987 = vunpack.c.l.b16 %v1882
      %v1988 = vunpack.c.l.b16 %v1883
      %v1989 = vunpack.c.l.b16 %v1884
      %v1990 = vunpack.c.l.b16 %v1885
      %v1991 = vunpack.c.l.b16 %v1886
      %v1992 = vunpack.c.l.b16 %v1887
      %v1993 = vunpack.c.l.b16 %v1888
      %v1994 = vpack.c.b16 %v1963, %v1962
      %v1995 = vpack.c.b16 %v1965, %v1964
      %v1996 = vpack.c.b16 %v1967, %v1966
      %v1997 = vpack.c.b16 %v1969, %v1968
      %v1998 = vpack.c.b16 %v1971, %v1970
      %v1999 = vpack.c.b16 %v1973, %v1972
      %v2000 = vpack.c.b16 %v1975, %v1974
      %v2001 = vpack.c.b16 %v1977, %v1976
      %v2002 = vpack.c.b16 %v1979, %v1978
      %v2003 = vpack.c.b16 %v1981, %v1980
      %v2004 = vpack.c.b16 %v1983, %v1982
      %v2005 = vpack.c.b16 %v1985, %v1984
      %v2006 = vpack.c.b16 %v1987, %v1986
      %v2007 = vpack.c.b16 %v1989, %v1988
      %v2008 = vpack.c.b16 %v1991, %v1990
      %v2009 = vpack.c.b16 %v1993, %v1992
      %v2018 = vunpack.c.l.b16 %v1922
      %v2019 = vunpack.c.l.b16 %v1923
      %v2020 = vunpack.c.l.b16 %v1924
      %v2021 = vunpack.c.l.b16 %v1925
      %v2022 = vunpack.c.l.b16 %v1926
      %v2023 = vunpack.c.l.b16 %v1927
      %v2024 = vunpack.c.l.b16 %v1928
      %v2025 = vunpack.c.l.b16 %v1929
      %v2026 = vpack.c.b16 %v2019, %v2018
      %v2027 = vpack.c.b16 %v2021, %v2020
      %v2028 = vpack.c.b16 %v2023, %v2022
      %v2029 = vpack.c.b16 %v2025, %v2024
      %v2035 = vsel %vm380, %v1994, 0
      %v2038 = vsel %vm380, %v1995, 0
      %v2041 = vsel %vm380, %v1996, 0
      %v2044 = vsel %vm380, %v1997, 0
      %v2047 = vsel %vm380, %v1998, 0
      %v2050 = vsel %vm380, %v1999, 0
      %v2053 = vsel %vm380, %v2000, 0
      %v2056 = vsel %vm380, %v2001, 0
      %v2059 = vsel %vm380, %v2002, 0
      %v2062 = vsel %vm380, %v2003, 0
      %v2065 = vsel %vm380, %v2004, 0
      %v2068 = vsel %vm380, %v2005, 0
      %v2071 = vsel %vm380, %v2006, 0
      %v2074 = vsel %vm380, %v2007, 0
      %v2077 = vsel %vm380, %v2008, 0
      %v2080 = vsel %vm380, %v2009, 0
      %2082 = vmatpush.bf16.msra.mxu0 0
      %2083 = vmatpush.bf16.msra.mxu0 0
      %2084 = vmatpush.bf16.msra.mxu0 0
      %2085 = vmatpush.bf16.msra.mxu0 0
      %2086 = vmatpush.bf16.msra.mxu0 %v2029
      %2087 = vmatpush.bf16.msra.mxu0 %v2028
      %2088 = vmatpush.bf16.msra.mxu0 %v2027
      %2089 = vmatpush.bf16.msra.mxu0 %v2026
      %2090 = vmatmul.bf16.gmra.mxu0 %v2035
      %v2091 = vpop.f32.mrf.mxu0
      %v2092 = vadd.f32 0.0, %v2091
      %v2093 = vpop.f32.mrf.mxu0
      %v2094 = vadd.f32 0.0, %v2093
      %2095 = vmatmul.bf16.gmra.mxu0 %v2038
      %v2096 = vpop.f32.mrf.mxu0
      %v2097 = vadd.f32 0.0, %v2096
      %v2098 = vpop.f32.mrf.mxu0
      %v2099 = vadd.f32 0.0, %v2098
      %2100 = vmatmul.bf16.gmra.mxu0 %v2041
      %v2101 = vpop.f32.mrf.mxu0
      %v2102 = vadd.f32 0.0, %v2101
      %v2103 = vpop.f32.mrf.mxu0
      %v2104 = vadd.f32 0.0, %v2103
      %2105 = vmatmul.bf16.gmra.mxu0 %v2044
      %v2106 = vpop.f32.mrf.mxu0
      %v2107 = vadd.f32 0.0, %v2106
      %v2108 = vpop.f32.mrf.mxu0
      %v2109 = vadd.f32 0.0, %v2108
      %2110 = vmatmul.bf16.gmra.mxu0 %v2047
      %v2111 = vpop.f32.mrf.mxu0
      %v2112 = vadd.f32 0.0, %v2111
      %v2113 = vpop.f32.mrf.mxu0
      %v2114 = vadd.f32 0.0, %v2113
      %2115 = vmatmul.bf16.gmra.mxu0 %v2050
      %v2116 = vpop.f32.mrf.mxu0
      %v2117 = vadd.f32 0.0, %v2116
      %v2118 = vpop.f32.mrf.mxu0
      %v2119 = vadd.f32 0.0, %v2118
      %2120 = vmatmul.bf16.gmra.mxu0 %v2053
      %v2121 = vpop.f32.mrf.mxu0
      %v2122 = vadd.f32 0.0, %v2121
      %v2123 = vpop.f32.mrf.mxu0
      %v2124 = vadd.f32 0.0, %v2123
      %2125 = vmatmul.bf16.gmra.mxu0 %v2056
      %v2126 = vpop.f32.mrf.mxu0
      %v2127 = vadd.f32 0.0, %v2126
      %v2128 = vpop.f32.mrf.mxu0
      %v2129 = vadd.f32 0.0, %v2128
      %2130 = vmatmul.bf16.gmra.mxu0 %v2059
      %v2131 = vpop.f32.mrf.mxu0
      %v2132 = vadd.f32 0.0, %v2131
      %v2133 = vpop.f32.mrf.mxu0
      %v2134 = vadd.f32 0.0, %v2133
      %2135 = vmatmul.bf16.gmra.mxu0 %v2062
      %v2136 = vpop.f32.mrf.mxu0
      %v2137 = vadd.f32 0.0, %v2136
      %v2138 = vpop.f32.mrf.mxu0
      %v2139 = vadd.f32 0.0, %v2138
      %2140 = vmatmul.bf16.gmra.mxu0 %v2065
      %v2141 = vpop.f32.mrf.mxu0
      %v2142 = vadd.f32 0.0, %v2141
      %v2143 = vpop.f32.mrf.mxu0
      %v2144 = vadd.f32 0.0, %v2143
      %2145 = vmatmul.bf16.gmra.mxu0 %v2068
      %v2146 = vpop.f32.mrf.mxu0
      %v2147 = vadd.f32 0.0, %v2146
      %v2148 = vpop.f32.mrf.mxu0
      %v2149 = vadd.f32 0.0, %v2148
      %2150 = vmatmul.bf16.gmra.mxu0 %v2071
      %v2151 = vpop.f32.mrf.mxu0
      %v2152 = vadd.f32 0.0, %v2151
      %v2153 = vpop.f32.mrf.mxu0
      %v2154 = vadd.f32 0.0, %v2153
      %2155 = vmatmul.bf16.gmra.mxu0 %v2074
      %v2156 = vpop.f32.mrf.mxu0
      %v2157 = vadd.f32 0.0, %v2156
      %v2158 = vpop.f32.mrf.mxu0
      %v2159 = vadd.f32 0.0, %v2158
      %2160 = vmatmul.bf16.gmra.mxu0 %v2077
      %v2161 = vpop.f32.mrf.mxu0
      %v2162 = vadd.f32 0.0, %v2161
      %v2163 = vpop.f32.mrf.mxu0
      %v2164 = vadd.f32 0.0, %v2163
      %2165 = vmatmul.bf16.gmra.mxu0 %v2080
      %v2166 = vpop.f32.mrf.mxu0
      %v2167 = vadd.f32 0.0, %v2166
      %v2168 = vpop.f32.mrf.mxu0
      %v2169 = vadd.f32 0.0, %v2168
      %2170 = vdwg.mxu0
      %v2171 = vadd.f32 %v1889, %v2092
      %v2172 = vadd.f32 %v1890, %v2094
      %v2173 = vadd.f32 %v1891, %v2097
      %v2174 = vadd.f32 %v1892, %v2099
      %v2175 = vadd.f32 %v1893, %v2102
      %v2176 = vadd.f32 %v1894, %v2104
      %v2177 = vadd.f32 %v1895, %v2107
      %v2178 = vadd.f32 %v1896, %v2109
      %v2179 = vadd.f32 %v1897, %v2112
      %v2180 = vadd.f32 %v1898, %v2114
      %v2181 = vadd.f32 %v1899, %v2117
      %v2182 = vadd.f32 %v1900, %v2119
      %v2183 = vadd.f32 %v1901, %v2122
      %v2184 = vadd.f32 %v1902, %v2124
      %v2185 = vadd.f32 %v1903, %v2127
      %v2186 = vadd.f32 %v1904, %v2129
      %v2187 = vadd.f32 %v1905, %v2132
      %v2188 = vadd.f32 %v1906, %v2134
      %v2189 = vadd.f32 %v1907, %v2137
      %v2190 = vadd.f32 %v1908, %v2139
      %v2191 = vadd.f32 %v1909, %v2142
      %v2192 = vadd.f32 %v1910, %v2144
      %v2193 = vadd.f32 %v1911, %v2147
      %v2194 = vadd.f32 %v1912, %v2149
      %v2195 = vadd.f32 %v1913, %v2152
      %v2196 = vadd.f32 %v1914, %v2154
      %v2197 = vadd.f32 %v1915, %v2157
      %v2198 = vadd.f32 %v1916, %v2159
      %v2199 = vadd.f32 %v1917, %v2162
      %v2200 = vadd.f32 %v1918, %v2164
      %v2201 = vadd.f32 %v1919, %v2167
      %v2202 = vadd.f32 %v1920, %v2169
      %2203 = vst [vmem:[#allocation2] sm:$0xff] %v2171
      %2204 = vst [vmem:[#allocation2 + $0x8] sm:$0xff] %v2172
      %2205 = vst [vmem:[#allocation2 + $0x10] sm:$0xff] %v2173
      %2206 = vst [vmem:[#allocation2 + $0x18] sm:$0xff] %v2174
      %2207 = vst [vmem:[#allocation2 + $0x20] sm:$0xff] %v2175
      %2208 = vst [vmem:[#allocation2 + $0x28] sm:$0xff] %v2176
      %2209 = vst [vmem:[#allocation2 + $0x30] sm:$0xff] %v2177
      %2210 = vst [vmem:[#allocation2 + $0x38] sm:$0xff] %v2178
      %2211 = vst [vmem:[#allocation2 + $0x40] sm:$0xff] %v2179
      %2212 = vst [vmem:[#allocation2 + $0x48] sm:$0xff] %v2180
      %2213 = vst [vmem:[#allocation2 + $0x50] sm:$0xff] %v2181
      %2214 = vst [vmem:[#allocation2 + $0x58] sm:$0xff] %v2182
      %2215 = vst [vmem:[#allocation2 + $0x60] sm:$0xff] %v2183
      %2216 = vst [vmem:[#allocation2 + $0x68] sm:$0xff] %v2184
      %2217 = vst [vmem:[#allocation2 + $0x70] sm:$0xff] %v2185
      %2218 = vst [vmem:[#allocation2 + $0x78] sm:$0xff] %v2186
      %2219 = vst [vmem:[#allocation2 + $0x80] sm:$0xff] %v2187
      %2220 = vst [vmem:[#allocation2 + $0x88] sm:$0xff] %v2188
      %2221 = vst [vmem:[#allocation2 + $0x90] sm:$0xff] %v2189
      %2222 = vst [vmem:[#allocation2 + $0x98] sm:$0xff] %v2190
      %2223 = vst [vmem:[#allocation2 + $0xa0] sm:$0xff] %v2191
      %2224 = vst [vmem:[#allocation2 + $0xa8] sm:$0xff] %v2192
      %2225 = vst [vmem:[#allocation2 + $0xb0] sm:$0xff] %v2193
      %2226 = vst [vmem:[#allocation2 + $0xb8] sm:$0xff] %v2194
      %2227 = vst [vmem:[#allocation2 + $0xc0] sm:$0xff] %v2195
      %2228 = vst [vmem:[#allocation2 + $0xc8] sm:$0xff] %v2196
      %2229 = vst [vmem:[#allocation2 + $0xd0] sm:$0xff] %v2197
      %2230 = vst [vmem:[#allocation2 + $0xd8] sm:$0xff] %v2198
      %2231 = vst [vmem:[#allocation2 + $0xe0] sm:$0xff] %v2199
      %2232 = vst [vmem:[#allocation2 + $0xe8] sm:$0xff] %v2200
      %2233 = vst [vmem:[#allocation2 + $0xf0] sm:$0xff] %v2201
      %2234 = vst [vmem:[#allocation2 + $0xf8] sm:$0xff] %v2202
      %v2235 = vld [vmem:[%s1856] sm:$0xf]
      %v2236 = vld [vmem:[%s1856 + $0x4] sm:$0xf]
      %v2237 = vld [vmem:[%s1856 + $0x8] sm:$0x1]
      %v2238 = vld [vmem:[%s1856 + $0xc] sm:$0xf]
      %v2239 = vld [vmem:[%s1856 + $0x10] sm:$0xf]
      %v2240 = vld [vmem:[%s1856 + $0x14] sm:$0x1]
      %v2241 = vld [vmem:[%s1856 + $0x18] sm:$0xf]
      %v2242 = vld [vmem:[%s1856 + $0x1c] sm:$0xf]
      %v2243 = vld [vmem:[%s1856 + $0x20] sm:$0x1]
      %v2244 = vld [vmem:[%s1856 + $0x24] sm:$0xf]
      %v2245 = vld [vmem:[%s1856 + $0x28] sm:$0xf]
      %v2246 = vld [vmem:[%s1856 + $0x2c] sm:$0x1]
      %v2247 = vld [vmem:[%s1856 + $0x30] sm:$0xf]
      %v2248 = vld [vmem:[%s1856 + $0x34] sm:$0xf]
      %v2249 = vld [vmem:[%s1856 + $0x38] sm:$0x1]
      %v2250 = vld [vmem:[%s1856 + $0x3c] sm:$0xf]
      %v2251 = vld [vmem:[%s1856 + $0x40] sm:$0xf]
      %v2252 = vld [vmem:[%s1856 + $0x44] sm:$0x1]
      %v2253 = vld [vmem:[%s1856 + $0x48] sm:$0xf]
      %v2254 = vld [vmem:[%s1856 + $0x4c] sm:$0xf]
      %v2255 = vld [vmem:[%s1856 + $0x50] sm:$0x1]
      %v2256 = vld [vmem:[%s1856 + $0x54] sm:$0xf]
      %v2257 = vld [vmem:[%s1856 + $0x58] sm:$0xf]
      %v2258 = vld [vmem:[%s1856 + $0x5c] sm:$0x1]
      %v2259 = vld [vmem:[%s1856 + $0x60] sm:$0xf]
      %v2260 = vld [vmem:[%s1856 + $0x64] sm:$0xf]
      %v2261 = vld [vmem:[%s1856 + $0x68] sm:$0x1]
      %v2262 = vld [vmem:[%s1856 + $0x6c] sm:$0xf]
      %v2263 = vld [vmem:[%s1856 + $0x70] sm:$0xf]
      %v2264 = vld [vmem:[%s1856 + $0x74] sm:$0x1]
      %v2265 = vld [vmem:[%s1856 + $0x78] sm:$0xf]
      %v2266 = vld [vmem:[%s1856 + $0x7c] sm:$0xf]
      %v2267 = vld [vmem:[%s1856 + $0x80] sm:$0x1]
      %v2268 = vld [vmem:[%s1856 + $0x84] sm:$0xf]
      %v2269 = vld [vmem:[%s1856 + $0x88] sm:$0xf]
      %v2270 = vld [vmem:[%s1856 + $0x8c] sm:$0x1]
      %v2271 = vld [vmem:[%s1856 + $0x90] sm:$0xf]
      %v2272 = vld [vmem:[%s1856 + $0x94] sm:$0xf]
      %v2273 = vld [vmem:[%s1856 + $0x98] sm:$0x1]
      %v2274 = vld [vmem:[%s1856 + $0x9c] sm:$0xf]
      %v2275 = vld [vmem:[%s1856 + $0xa0] sm:$0xf]
      %v2276 = vld [vmem:[%s1856 + $0xa4] sm:$0x1]
      %v2277 = vld [vmem:[%s1856 + $0xa8] sm:$0xf]
      %v2278 = vld [vmem:[%s1856 + $0xac] sm:$0xf]
      %v2279 = vld [vmem:[%s1856 + $0xb0] sm:$0x1]
      %v2280 = vld [vmem:[%s1856 + $0xb4] sm:$0xf]
      %v2281 = vld [vmem:[%s1856 + $0xb8] sm:$0xf]
      %v2282 = vld [vmem:[%s1856 + $0xbc] sm:$0x1]
      %v2284 = vshrl.u32 %v2235, 16
      %v2286 = vrot.slane %v2284, 4
      %v2287 = vshll.u32 %v2235, 16
      %v2289 = vrot.slane %v2287, 5
      %v2290 = vor.u32 %v2286, %v2289
      %v2291 = vrot.slane %v2290, 4
      %v2293 = vshll.u32 %v2236, 16
      %v2295 = vrot.slane %v2293, 5
      %v2296 = vsel %vm632, %v2291, %v2295
      %v2297 = vshrl.u32 %v2236, 16
      %v2299 = vrot.slane %v2297, 4
      %v2300 = vor.u32 %v2299, %v2295
      %v2301 = vrot.slane %v2300, 4
      %v2303 = vshll.u32 %v2237, 16
      %v2305 = vrot.slane %v2303, 5
      %v2306 = vsel %vm632, %v2301, %v2305
      %v2308 = vshrl.u32 %v2238, 16
      %v2310 = vrot.slane %v2308, 4
      %v2311 = vshll.u32 %v2238, 16
      %v2313 = vrot.slane %v2311, 5
      %v2314 = vor.u32 %v2310, %v2313
      %v2315 = vrot.slane %v2314, 4
      %v2317 = vshll.u32 %v2239, 16
      %v2319 = vrot.slane %v2317, 5
      %v2320 = vsel %vm632, %v2315, %v2319
      %v2321 = vshrl.u32 %v2239, 16
      %v2323 = vrot.slane %v2321, 4
      %v2324 = vor.u32 %v2323, %v2319
      %v2325 = vrot.slane %v2324, 4
      %v2327 = vshll.u32 %v2240, 16
      %v2329 = vrot.slane %v2327, 5
      %v2330 = vsel %vm632, %v2325, %v2329
      %v2332 = vshrl.u32 %v2241, 16
      %v2334 = vrot.slane %v2332, 4
      %v2335 = vshll.u32 %v2241, 16
      %v2337 = vrot.slane %v2335, 5
      %v2338 = vor.u32 %v2334, %v2337
      %v2339 = vrot.slane %v2338, 4
      %v2341 = vshll.u32 %v2242, 16
      %v2343 = vrot.slane %v2341, 5
      %v2344 = vsel %vm632, %v2339, %v2343
      %v2345 = vshrl.u32 %v2242, 16
      %v2347 = vrot.slane %v2345, 4
      %v2348 = vor.u32 %v2347, %v2343
      %v2349 = vrot.slane %v2348, 4
      %v2351 = vshll.u32 %v2243, 16
      %v2353 = vrot.slane %v2351, 5
      %v2354 = vsel %vm632, %v2349, %v2353
      %v2356 = vshrl.u32 %v2244, 16
      %v2358 = vrot.slane %v2356, 4
      %v2359 = vshll.u32 %v2244, 16
      %v2361 = vrot.slane %v2359, 5
      %v2362 = vor.u32 %v2358, %v2361
      %v2363 = vrot.slane %v2362, 4
      %v2365 = vshll.u32 %v2245, 16
      %v2367 = vrot.slane %v2365, 5
      %v2368 = vsel %vm632, %v2363, %v2367
      %v2369 = vshrl.u32 %v2245, 16
      %v2371 = vrot.slane %v2369, 4
      %v2372 = vor.u32 %v2371, %v2367
      %v2373 = vrot.slane %v2372, 4
      %v2375 = vshll.u32 %v2246, 16
      %v2377 = vrot.slane %v2375, 5
      %v2378 = vsel %vm632, %v2373, %v2377
      %v2380 = vshrl.u32 %v2247, 16
      %v2382 = vrot.slane %v2380, 4
      %v2383 = vshll.u32 %v2247, 16
      %v2385 = vrot.slane %v2383, 5
      %v2386 = vor.u32 %v2382, %v2385
      %v2387 = vrot.slane %v2386, 4
      %v2389 = vshll.u32 %v2248, 16
      %v2391 = vrot.slane %v2389, 5
      %v2392 = vsel %vm632, %v2387, %v2391
      %v2393 = vshrl.u32 %v2248, 16
      %v2395 = vrot.slane %v2393, 4
      %v2396 = vor.u32 %v2395, %v2391
      %v2397 = vrot.slane %v2396, 4
      %v2399 = vshll.u32 %v2249, 16
      %v2401 = vrot.slane %v2399, 5
      %v2402 = vsel %vm632, %v2397, %v2401
      %v2404 = vshrl.u32 %v2250, 16
      %v2406 = vrot.slane %v2404, 4
      %v2407 = vshll.u32 %v2250, 16
      %v2409 = vrot.slane %v2407, 5
      %v2410 = vor.u32 %v2406, %v2409
      %v2411 = vrot.slane %v2410, 4
      %v2413 = vshll.u32 %v2251, 16
      %v2415 = vrot.slane %v2413, 5
      %v2416 = vsel %vm632, %v2411, %v2415
      %v2417 = vshrl.u32 %v2251, 16
      %v2419 = vrot.slane %v2417, 4
      %v2420 = vor.u32 %v2419, %v2415
      %v2421 = vrot.slane %v2420, 4
      %v2423 = vshll.u32 %v2252, 16
      %v2425 = vrot.slane %v2423, 5
      %v2426 = vsel %vm632, %v2421, %v2425
      %v2428 = vshrl.u32 %v2253, 16
      %v2430 = vrot.slane %v2428, 4
      %v2431 = vshll.u32 %v2253, 16
      %v2433 = vrot.slane %v2431, 5
      %v2434 = vor.u32 %v2430, %v2433
      %v2435 = vrot.slane %v2434, 4
      %v2437 = vshll.u32 %v2254, 16
      %v2439 = vrot.slane %v2437, 5
      %v2440 = vsel %vm632, %v2435, %v2439
      %v2441 = vshrl.u32 %v2254, 16
      %v2443 = vrot.slane %v2441, 4
      %v2444 = vor.u32 %v2443, %v2439
      %v2445 = vrot.slane %v2444, 4
      %v2447 = vshll.u32 %v2255, 16
      %v2449 = vrot.slane %v2447, 5
      %v2450 = vsel %vm632, %v2445, %v2449
      %v2452 = vshrl.u32 %v2256, 16
      %v2454 = vrot.slane %v2452, 4
      %v2455 = vshll.u32 %v2256, 16
      %v2457 = vrot.slane %v2455, 5
      %v2458 = vor.u32 %v2454, %v2457
      %v2459 = vrot.slane %v2458, 4
      %v2461 = vshll.u32 %v2257, 16
      %v2463 = vrot.slane %v2461, 5
      %v2464 = vsel %vm632, %v2459, %v2463
      %v2465 = vshrl.u32 %v2257, 16
      %v2467 = vrot.slane %v2465, 4
      %v2468 = vor.u32 %v2467, %v2463
      %v2469 = vrot.slane %v2468, 4
      %v2471 = vshll.u32 %v2258, 16
      %v2473 = vrot.slane %v2471, 5
      %v2474 = vsel %vm632, %v2469, %v2473
      %v2476 = vshrl.u32 %v2259, 16
      %v2478 = vrot.slane %v2476, 4
      %v2479 = vshll.u32 %v2259, 16
      %v2481 = vrot.slane %v2479, 5
      %v2482 = vor.u32 %v2478, %v2481
      %v2483 = vrot.slane %v2482, 4
      %v2485 = vshll.u32 %v2260, 16
      %v2487 = vrot.slane %v2485, 5
      %v2488 = vsel %vm632, %v2483, %v2487
      %v2489 = vshrl.u32 %v2260, 16
      %v2491 = vrot.slane %v2489, 4
      %v2492 = vor.u32 %v2491, %v2487
      %v2493 = vrot.slane %v2492, 4
      %v2495 = vshll.u32 %v2261, 16
      %v2497 = vrot.slane %v2495, 5
      %v2498 = vsel %vm632, %v2493, %v2497
      %v2500 = vshrl.u32 %v2262, 16
      %v2502 = vrot.slane %v2500, 4
      %v2503 = vshll.u32 %v2262, 16
      %v2505 = vrot.slane %v2503, 5
      %v2506 = vor.u32 %v2502, %v2505
      %v2507 = vrot.slane %v2506, 4
      %v2509 = vshll.u32 %v2263, 16
      %v2511 = vrot.slane %v2509, 5
      %v2512 = vsel %vm632, %v2507, %v2511
      %v2513 = vshrl.u32 %v2263, 16
      %v2515 = vrot.slane %v2513, 4
      %v2516 = vor.u32 %v2515, %v2511
      %v2517 = vrot.slane %v2516, 4
      %v2519 = vshll.u32 %v2264, 16
      %v2521 = vrot.slane %v2519, 5
      %v2522 = vsel %vm632, %v2517, %v2521
      %v2524 = vshrl.u32 %v2265, 16
      %v2526 = vrot.slane %v2524, 4
      %v2527 = vshll.u32 %v2265, 16
      %v2529 = vrot.slane %v2527, 5
      %v2530 = vor.u32 %v2526, %v2529
      %v2531 = vrot.slane %v2530, 4
      %v2533 = vshll.u32 %v2266, 16
      %v2535 = vrot.slane %v2533, 5
      %v2536 = vsel %vm632, %v2531, %v2535
      %v2537 = vshrl.u32 %v2266, 16
      %v2539 = vrot.slane %v2537, 4
      %v2540 = vor.u32 %v2539, %v2535
      %v2541 = vrot.slane %v2540, 4
      %v2543 = vshll.u32 %v2267, 16
      %v2545 = vrot.slane %v2543, 5
      %v2546 = vsel %vm632, %v2541, %v2545
      %v2548 = vshrl.u32 %v2268, 16
      %v2550 = vrot.slane %v2548, 4
      %v2551 = vshll.u32 %v2268, 16
      %v2553 = vrot.slane %v2551, 5
      %v2554 = vor.u32 %v2550, %v2553
      %v2555 = vrot.slane %v2554, 4
      %v2557 = vshll.u32 %v2269, 16
      %v2559 = vrot.slane %v2557, 5
      %v2560 = vsel %vm632, %v2555, %v2559
      %v2561 = vshrl.u32 %v2269, 16
      %v2563 = vrot.slane %v2561, 4
      %v2564 = vor.u32 %v2563, %v2559
      %v2565 = vrot.slane %v2564, 4
      %v2567 = vshll.u32 %v2270, 16
      %v2569 = vrot.slane %v2567, 5
      %v2570 = vsel %vm632, %v2565, %v2569
      %v2572 = vshrl.u32 %v2271, 16
      %v2574 = vrot.slane %v2572, 4
      %v2575 = vshll.u32 %v2271, 16
      %v2577 = vrot.slane %v2575, 5
      %v2578 = vor.u32 %v2574, %v2577
      %v2579 = vrot.slane %v2578, 4
      %v2581 = vshll.u32 %v2272, 16
      %v2583 = vrot.slane %v2581, 5
      %v2584 = vsel %vm632, %v2579, %v2583
      %v2585 = vshrl.u32 %v2272, 16
      %v2587 = vrot.slane %v2585, 4
      %v2588 = vor.u32 %v2587, %v2583
      %v2589 = vrot.slane %v2588, 4
      %v2591 = vshll.u32 %v2273, 16
      %v2593 = vrot.slane %v2591, 5
      %v2594 = vsel %vm632, %v2589, %v2593
      %v2596 = vshrl.u32 %v2274, 16
      %v2598 = vrot.slane %v2596, 4
      %v2599 = vshll.u32 %v2274, 16
      %v2601 = vrot.slane %v2599, 5
      %v2602 = vor.u32 %v2598, %v2601
      %v2603 = vrot.slane %v2602, 4
      %v2605 = vshll.u32 %v2275, 16
      %v2607 = vrot.slane %v2605, 5
      %v2608 = vsel %vm632, %v2603, %v2607
      %v2609 = vshrl.u32 %v2275, 16
      %v2611 = vrot.slane %v2609, 4
      %v2612 = vor.u32 %v2611, %v2607
      %v2613 = vrot.slane %v2612, 4
      %v2615 = vshll.u32 %v2276, 16
      %v2617 = vrot.slane %v2615, 5
      %v2618 = vsel %vm632, %v2613, %v2617
      %v2620 = vshrl.u32 %v2277, 16
      %v2622 = vrot.slane %v2620, 4
      %v2623 = vshll.u32 %v2277, 16
      %v2625 = vrot.slane %v2623, 5
      %v2626 = vor.u32 %v2622, %v2625
      %v2627 = vrot.slane %v2626, 4
      %v2629 = vshll.u32 %v2278, 16
      %v2631 = vrot.slane %v2629, 5
      %v2632 = vsel %vm632, %v2627, %v2631
      %v2633 = vshrl.u32 %v2278, 16
      %v2635 = vrot.slane %v2633, 4
      %v2636 = vor.u32 %v2635, %v2631
      %v2637 = vrot.slane %v2636, 4
      %v2639 = vshll.u32 %v2279, 16
      %v2641 = vrot.slane %v2639, 5
      %v2642 = vsel %vm632, %v2637, %v2641
      %v2644 = vshrl.u32 %v2280, 16
      %v2646 = vrot.slane %v2644, 4
      %v2647 = vshll.u32 %v2280, 16
      %v2649 = vrot.slane %v2647, 5
      %v2650 = vor.u32 %v2646, %v2649
      %v2651 = vrot.slane %v2650, 4
      %v2653 = vshll.u32 %v2281, 16
      %v2655 = vrot.slane %v2653, 5
      %v2656 = vsel %vm632, %v2651, %v2655
      %v2657 = vshrl.u32 %v2281, 16
      %v2659 = vrot.slane %v2657, 4
      %v2660 = vor.u32 %v2659, %v2655
      %v2661 = vrot.slane %v2660, 4
      %v2663 = vshll.u32 %v2282, 16
      %v2665 = vrot.slane %v2663, 5
      %v2666 = vsel %vm632, %v2661, %v2665
      %v2667 = vld [vmem:[#allocation2] sm:$0xff]
      %v2668 = vld [vmem:[#allocation2 + $0x8] sm:$0xff]
      %v2669 = vld [vmem:[#allocation2 + $0x10] sm:$0xff]
      %v2670 = vld [vmem:[#allocation2 + $0x18] sm:$0xff]
      %v2671 = vld [vmem:[#allocation2 + $0x20] sm:$0xff]
      %v2672 = vld [vmem:[#allocation2 + $0x28] sm:$0xff]
      %v2673 = vld [vmem:[#allocation2 + $0x30] sm:$0xff]
      %v2674 = vld [vmem:[#allocation2 + $0x38] sm:$0xff]
      %v2675 = vld [vmem:[#allocation2 + $0x40] sm:$0xff]
      %v2676 = vld [vmem:[#allocation2 + $0x48] sm:$0xff]
      %v2677 = vld [vmem:[#allocation2 + $0x50] sm:$0xff]
      %v2678 = vld [vmem:[#allocation2 + $0x58] sm:$0xff]
      %v2679 = vld [vmem:[#allocation2 + $0x60] sm:$0xff]
      %v2680 = vld [vmem:[#allocation2 + $0x68] sm:$0xff]
      %v2681 = vld [vmem:[#allocation2 + $0x70] sm:$0xff]
      %v2682 = vld [vmem:[#allocation2 + $0x78] sm:$0xff]
      %v2683 = vld [vmem:[#allocation2 + $0x80] sm:$0xff]
      %v2684 = vld [vmem:[#allocation2 + $0x88] sm:$0xff]
      %v2685 = vld [vmem:[#allocation2 + $0x90] sm:$0xff]
      %v2686 = vld [vmem:[#allocation2 + $0x98] sm:$0xff]
      %v2687 = vld [vmem:[#allocation2 + $0xa0] sm:$0xff]
      %v2688 = vld [vmem:[#allocation2 + $0xa8] sm:$0xff]
      %v2689 = vld [vmem:[#allocation2 + $0xb0] sm:$0xff]
      %v2690 = vld [vmem:[#allocation2 + $0xb8] sm:$0xff]
      %v2691 = vld [vmem:[#allocation2 + $0xc0] sm:$0xff]
      %v2692 = vld [vmem:[#allocation2 + $0xc8] sm:$0xff]
      %v2693 = vld [vmem:[#allocation2 + $0xd0] sm:$0xff]
      %v2694 = vld [vmem:[#allocation2 + $0xd8] sm:$0xff]
      %v2695 = vld [vmem:[#allocation2 + $0xe0] sm:$0xff]
      %v2696 = vld [vmem:[#allocation2 + $0xe8] sm:$0xff]
      %v2697 = vld [vmem:[#allocation2 + $0xf0] sm:$0xff]
      %v2698 = vld [vmem:[#allocation2 + $0xf8] sm:$0xff]
      %s2699 = scalar_lea.vmem %s1, 128
      %v2700 = vld [vmem:[%s2699] sm:$0xf]
      %v2701 = vld [vmem:[%s2699 + $0x4] sm:$0xf]
      %v2702 = vld [vmem:[%s2699 + $0x8] sm:$0xf]
      %v2703 = vld [vmem:[%s2699 + $0xc] sm:$0xf]
      %v2704 = vld [vmem:[%s2699 + $0x10] sm:$0xf]
      %v2705 = vld [vmem:[%s2699 + $0x14] sm:$0xf]
      %v2706 = vld [vmem:[%s2699 + $0x18] sm:$0xf]
      %v2707 = vld [vmem:[%s2699 + $0x1c] sm:$0xf]
      %v2708 = vunpack.c.l.b16 %v2296
      %v2709 = vunpack.c.l.b16 %v2306
      %v2710 = vunpack.c.l.b16 %v2320
      %v2711 = vunpack.c.l.b16 %v2330
      %v2712 = vunpack.c.l.b16 %v2344
      %v2713 = vunpack.c.l.b16 %v2354
      %v2714 = vunpack.c.l.b16 %v2368
      %v2715 = vunpack.c.l.b16 %v2378
      %v2716 = vunpack.c.l.b16 %v2392
      %v2717 = vunpack.c.l.b16 %v2402
      %v2718 = vunpack.c.l.b16 %v2416
      %v2719 = vunpack.c.l.b16 %v2426
      %v2720 = vunpack.c.l.b16 %v2440
      %v2721 = vunpack.c.l.b16 %v2450
      %v2722 = vunpack.c.l.b16 %v2464
      %v2723 = vunpack.c.l.b16 %v2474
      %v2724 = vunpack.c.l.b16 %v2488
      %v2725 = vunpack.c.l.b16 %v2498
      %v2726 = vunpack.c.l.b16 %v2512
      %v2727 = vunpack.c.l.b16 %v2522
      %v2728 = vunpack.c.l.b16 %v2536
      %v2729 = vunpack.c.l.b16 %v2546
      %v2730 = vunpack.c.l.b16 %v2560
      %v2731 = vunpack.c.l.b16 %v2570
      %v2732 = vunpack.c.l.b16 %v2584
      %v2733 = vunpack.c.l.b16 %v2594
      %v2734 = vunpack.c.l.b16 %v2608
      %v2735 = vunpack.c.l.b16 %v2618
      %v2736 = vunpack.c.l.b16 %v2632
      %v2737 = vunpack.c.l.b16 %v2642
      %v2738 = vunpack.c.l.b16 %v2656
      %v2739 = vunpack.c.l.b16 %v2666
      %v2740 = vpack.c.b16 %v2709, %v2708
      %v2741 = vpack.c.b16 %v2711, %v2710
      %v2742 = vpack.c.b16 %v2713, %v2712
      %v2743 = vpack.c.b16 %v2715, %v2714
      %v2744 = vpack.c.b16 %v2717, %v2716
      %v2745 = vpack.c.b16 %v2719, %v2718
      %v2746 = vpack.c.b16 %v2721, %v2720
      %v2747 = vpack.c.b16 %v2723, %v2722
      %v2748 = vpack.c.b16 %v2725, %v2724
      %v2749 = vpack.c.b16 %v2727, %v2726
      %v2750 = vpack.c.b16 %v2729, %v2728
      %v2751 = vpack.c.b16 %v2731, %v2730
      %v2752 = vpack.c.b16 %v2733, %v2732
      %v2753 = vpack.c.b16 %v2735, %v2734
      %v2754 = vpack.c.b16 %v2737, %v2736
      %v2755 = vpack.c.b16 %v2739, %v2738
      %v2764 = vunpack.c.l.b16 %v2700
      %v2765 = vunpack.c.l.b16 %v2701
      %v2766 = vunpack.c.l.b16 %v2702
      %v2767 = vunpack.c.l.b16 %v2703
      %v2768 = vunpack.c.l.b16 %v2704
      %v2769 = vunpack.c.l.b16 %v2705
      %v2770 = vunpack.c.l.b16 %v2706
      %v2771 = vunpack.c.l.b16 %v2707
      %v2772 = vpack.c.b16 %v2765, %v2764
      %v2773 = vpack.c.b16 %v2767, %v2766
      %v2774 = vpack.c.b16 %v2769, %v2768
      %v2775 = vpack.c.b16 %v2771, %v2770
      %v2781 = vsel %vm380, %v2740, 0
      %v2784 = vsel %vm380, %v2741, 0
      %v2787 = vsel %vm380, %v2742, 0
      %v2790 = vsel %vm380, %v2743, 0
      %v2793 = vsel %vm380, %v2744, 0
      %v2796 = vsel %vm380, %v2745, 0
      %v2799 = vsel %vm380, %v2746, 0
      %v2802 = vsel %vm380, %v2747, 0
      %v2805 = vsel %vm380, %v2748, 0
      %v2808 = vsel %vm380, %v2749, 0
      %v2811 = vsel %vm380, %v2750, 0
      %v2814 = vsel %vm380, %v2751, 0
      %v2817 = vsel %vm380, %v2752, 0
      %v2820 = vsel %vm380, %v2753, 0
      %v2823 = vsel %vm380, %v2754, 0
      %v2826 = vsel %vm380, %v2755, 0
      %2828 = vmatpush.bf16.msra.mxu0 0
      %2829 = vmatpush.bf16.msra.mxu0 0
      %2830 = vmatpush.bf16.msra.mxu0 0
      %2831 = vmatpush.bf16.msra.mxu0 0
      %2832 = vmatpush.bf16.msra.mxu0 %v2775
      %2833 = vmatpush.bf16.msra.mxu0 %v2774
      %2834 = vmatpush.bf16.msra.mxu0 %v2773
      %2835 = vmatpush.bf16.msra.mxu0 %v2772
      %2836 = vmatmul.bf16.gmra.mxu0 %v2781
      %v2837 = vpop.f32.mrf.mxu0
      %v2838 = vadd.f32 0.0, %v2837
      %v2839 = vpop.f32.mrf.mxu0
      %v2840 = vadd.f32 0.0, %v2839
      %2841 = vmatmul.bf16.gmra.mxu0 %v2784
      %v2842 = vpop.f32.mrf.mxu0
      %v2843 = vadd.f32 0.0, %v2842
      %v2844 = vpop.f32.mrf.mxu0
      %v2845 = vadd.f32 0.0, %v2844
      %2846 = vmatmul.bf16.gmra.mxu0 %v2787
      %v2847 = vpop.f32.mrf.mxu0
      %v2848 = vadd.f32 0.0, %v2847
      %v2849 = vpop.f32.mrf.mxu0
      %v2850 = vadd.f32 0.0, %v2849
      %2851 = vmatmul.bf16.gmra.mxu0 %v2790
      %v2852 = vpop.f32.mrf.mxu0
      %v2853 = vadd.f32 0.0, %v2852
      %v2854 = vpop.f32.mrf.mxu0
      %v2855 = vadd.f32 0.0, %v2854
      %2856 = vmatmul.bf16.gmra.mxu0 %v2793
      %v2857 = vpop.f32.mrf.mxu0
      %v2858 = vadd.f32 0.0, %v2857
      %v2859 = vpop.f32.mrf.mxu0
      %v2860 = vadd.f32 0.0, %v2859
      %2861 = vmatmul.bf16.gmra.mxu0 %v2796
      %v2862 = vpop.f32.mrf.mxu0
      %v2863 = vadd.f32 0.0, %v2862
      %v2864 = vpop.f32.mrf.mxu0
      %v2865 = vadd.f32 0.0, %v2864
      %2866 = vmatmul.bf16.gmra.mxu0 %v2799
      %v2867 = vpop.f32.mrf.mxu0
      %v2868 = vadd.f32 0.0, %v2867
      %v2869 = vpop.f32.mrf.mxu0
      %v2870 = vadd.f32 0.0, %v2869
      %2871 = vmatmul.bf16.gmra.mxu0 %v2802
      %v2872 = vpop.f32.mrf.mxu0
      %v2873 = vadd.f32 0.0, %v2872
      %v2874 = vpop.f32.mrf.mxu0
      %v2875 = vadd.f32 0.0, %v2874
      %2876 = vmatmul.bf16.gmra.mxu0 %v2805
      %v2877 = vpop.f32.mrf.mxu0
      %v2878 = vadd.f32 0.0, %v2877
      %v2879 = vpop.f32.mrf.mxu0
      %v2880 = vadd.f32 0.0, %v2879
      %2881 = vmatmul.bf16.gmra.mxu0 %v2808
      %v2882 = vpop.f32.mrf.mxu0
      %v2883 = vadd.f32 0.0, %v2882
      %v2884 = vpop.f32.mrf.mxu0
      %v2885 = vadd.f32 0.0, %v2884
      %2886 = vmatmul.bf16.gmra.mxu0 %v2811
      %v2887 = vpop.f32.mrf.mxu0
      %v2888 = vadd.f32 0.0, %v2887
      %v2889 = vpop.f32.mrf.mxu0
      %v2890 = vadd.f32 0.0, %v2889
      %2891 = vmatmul.bf16.gmra.mxu0 %v2814
      %v2892 = vpop.f32.mrf.mxu0
      %v2893 = vadd.f32 0.0, %v2892
      %v2894 = vpop.f32.mrf.mxu0
      %v2895 = vadd.f32 0.0, %v2894
      %2896 = vmatmul.bf16.gmra.mxu0 %v2817
      %v2897 = vpop.f32.mrf.mxu0
      %v2898 = vadd.f32 0.0, %v2897
      %v2899 = vpop.f32.mrf.mxu0
      %v2900 = vadd.f32 0.0, %v2899
      %2901 = vmatmul.bf16.gmra.mxu0 %v2820
      %v2902 = vpop.f32.mrf.mxu0
      %v2903 = vadd.f32 0.0, %v2902
      %v2904 = vpop.f32.mrf.mxu0
      %v2905 = vadd.f32 0.0, %v2904
      %2906 = vmatmul.bf16.gmra.mxu0 %v2823
      %v2907 = vpop.f32.mrf.mxu0
      %v2908 = vadd.f32 0.0, %v2907
      %v2909 = vpop.f32.mrf.mxu0
      %v2910 = vadd.f32 0.0, %v2909
      %2911 = vmatmul.bf16.gmra.mxu0 %v2826
      %v2912 = vpop.f32.mrf.mxu0
      %v2913 = vadd.f32 0.0, %v2912
      %v2914 = vpop.f32.mrf.mxu0
      %v2915 = vadd.f32 0.0, %v2914
      %2916 = vdwg.mxu0
      %v2917 = vadd.f32 %v2667, %v2838
      %v2918 = vadd.f32 %v2668, %v2840
      %v2919 = vadd.f32 %v2669, %v2843
      %v2920 = vadd.f32 %v2670, %v2845
      %v2921 = vadd.f32 %v2671, %v2848
      %v2922 = vadd.f32 %v2672, %v2850
      %v2923 = vadd.f32 %v2673, %v2853
      %v2924 = vadd.f32 %v2674, %v2855
      %v2925 = vadd.f32 %v2675, %v2858
      %v2926 = vadd.f32 %v2676, %v2860
      %v2927 = vadd.f32 %v2677, %v2863
      %v2928 = vadd.f32 %v2678, %v2865
      %v2929 = vadd.f32 %v2679, %v2868
      %v2930 = vadd.f32 %v2680, %v2870
      %v2931 = vadd.f32 %v2681, %v2873
      %v2932 = vadd.f32 %v2682, %v2875
      %v2933 = vadd.f32 %v2683, %v2878
      %v2934 = vadd.f32 %v2684, %v2880
      %v2935 = vadd.f32 %v2685, %v2883
      %v2936 = vadd.f32 %v2686, %v2885
      %v2937 = vadd.f32 %v2687, %v2888
      %v2938 = vadd.f32 %v2688, %v2890
      %v2939 = vadd.f32 %v2689, %v2893
      %v2940 = vadd.f32 %v2690, %v2895
      %v2941 = vadd.f32 %v2691, %v2898
      %v2942 = vadd.f32 %v2692, %v2900
      %v2943 = vadd.f32 %v2693, %v2903
      %v2944 = vadd.f32 %v2694, %v2905
      %v2945 = vadd.f32 %v2695, %v2908
      %v2946 = vadd.f32 %v2696, %v2910
      %v2947 = vadd.f32 %v2697, %v2913
      %v2948 = vadd.f32 %v2698, %v2915
      %2949 = vst [vmem:[#allocation2] sm:$0xff] %v2917
      %2950 = vst [vmem:[#allocation2 + $0x8] sm:$0xff] %v2918
      %2951 = vst [vmem:[#allocation2 + $0x10] sm:$0xff] %v2919
      %2952 = vst [vmem:[#allocation2 + $0x18] sm:$0xff] %v2920
      %2953 = vst [vmem:[#allocation2 + $0x20] sm:$0xff] %v2921
      %2954 = vst [vmem:[#allocation2 + $0x28] sm:$0xff] %v2922
      %2955 = vst [vmem:[#allocation2 + $0x30] sm:$0xff] %v2923
      %2956 = vst [vmem:[#allocation2 + $0x38] sm:$0xff] %v2924
      %2957 = vst [vmem:[#allocation2 + $0x40] sm:$0xff] %v2925
      %2958 = vst [vmem:[#allocation2 + $0x48] sm:$0xff] %v2926
      %2959 = vst [vmem:[#allocation2 + $0x50] sm:$0xff] %v2927
      %2960 = vst [vmem:[#allocation2 + $0x58] sm:$0xff] %v2928
      %2961 = vst [vmem:[#allocation2 + $0x60] sm:$0xff] %v2929
      %2962 = vst [vmem:[#allocation2 + $0x68] sm:$0xff] %v2930
      %2963 = vst [vmem:[#allocation2 + $0x70] sm:$0xff] %v2931
      %2964 = vst [vmem:[#allocation2 + $0x78] sm:$0xff] %v2932
      %2965 = vst [vmem:[#allocation2 + $0x80] sm:$0xff] %v2933
      %2966 = vst [vmem:[#allocation2 + $0x88] sm:$0xff] %v2934
      %2967 = vst [vmem:[#allocation2 + $0x90] sm:$0xff] %v2935
      %2968 = vst [vmem:[#allocation2 + $0x98] sm:$0xff] %v2936
      %2969 = vst [vmem:[#allocation2 + $0xa0] sm:$0xff] %v2937
      %2970 = vst [vmem:[#allocation2 + $0xa8] sm:$0xff] %v2938
      %2971 = vst [vmem:[#allocation2 + $0xb0] sm:$0xff] %v2939
      %2972 = vst [vmem:[#allocation2 + $0xb8] sm:$0xff] %v2940
      %2973 = vst [vmem:[#allocation2 + $0xc0] sm:$0xff] %v2941
      %2974 = vst [vmem:[#allocation2 + $0xc8] sm:$0xff] %v2942
      %2975 = vst [vmem:[#allocation2 + $0xd0] sm:$0xff] %v2943
      %2976 = vst [vmem:[#allocation2 + $0xd8] sm:$0xff] %v2944
      %2977 = vst [vmem:[#allocation2 + $0xe0] sm:$0xff] %v2945
      %2978 = vst [vmem:[#allocation2 + $0xe8] sm:$0xff] %v2946
      %2979 = vst [vmem:[#allocation2 + $0xf0] sm:$0xff] %v2947
      %2980 = vst [vmem:[#allocation2 + $0xf8] sm:$0xff] %v2948
      %v2981 = vld [vmem:[%s1856] sm:$0xe]
      %v2982 = vld [vmem:[%s1856 + $0x4] sm:$0xf]
      %v2983 = vld [vmem:[%s1856 + $0x8] sm:$0x1]
      %v2984 = vld [vmem:[%s1856 + $0xc] sm:$0xe]
      %v2985 = vld [vmem:[%s1856 + $0x10] sm:$0xf]
      %v2986 = vld [vmem:[%s1856 + $0x14] sm:$0x1]
      %v2987 = vld [vmem:[%s1856 + $0x18] sm:$0xe]
      %v2988 = vld [vmem:[%s1856 + $0x1c] sm:$0xf]
      %v2989 = vld [vmem:[%s1856 + $0x20] sm:$0x1]
      %v2990 = vld [vmem:[%s1856 + $0x24] sm:$0xe]
      %v2991 = vld [vmem:[%s1856 + $0x28] sm:$0xf]
      %v2992 = vld [vmem:[%s1856 + $0x2c] sm:$0x1]
      %v2993 = vld [vmem:[%s1856 + $0x30] sm:$0xe]
      %v2994 = vld [vmem:[%s1856 + $0x34] sm:$0xf]
      %v2995 = vld [vmem:[%s1856 + $0x38] sm:$0x1]
      %v2996 = vld [vmem:[%s1856 + $0x3c] sm:$0xe]
      %v2997 = vld [vmem:[%s1856 + $0x40] sm:$0xf]
      %v2998 = vld [vmem:[%s1856 + $0x44] sm:$0x1]
      %v2999 = vld [vmem:[%s1856 + $0x48] sm:$0xe]
      %v3000 = vld [vmem:[%s1856 + $0x4c] sm:$0xf]
      %v3001 = vld [vmem:[%s1856 + $0x50] sm:$0x1]
      %v3002 = vld [vmem:[%s1856 + $0x54] sm:$0xe]
      %v3003 = vld [vmem:[%s1856 + $0x58] sm:$0xf]
      %v3004 = vld [vmem:[%s1856 + $0x5c] sm:$0x1]
      %v3005 = vld [vmem:[%s1856 + $0x60] sm:$0xe]
      %v3006 = vld [vmem:[%s1856 + $0x64] sm:$0xf]
      %v3007 = vld [vmem:[%s1856 + $0x68] sm:$0x1]
      %v3008 = vld [vmem:[%s1856 + $0x6c] sm:$0xe]
      %v3009 = vld [vmem:[%s1856 + $0x70] sm:$0xf]
      %v3010 = vld [vmem:[%s1856 + $0x74] sm:$0x1]
      %v3011 = vld [vmem:[%s1856 + $0x78] sm:$0xe]
      %v3012 = vld [vmem:[%s1856 + $0x7c] sm:$0xf]
      %v3013 = vld [vmem:[%s1856 + $0x80] sm:$0x1]
      %v3014 = vld [vmem:[%s1856 + $0x84] sm:$0xe]
      %v3015 = vld [vmem:[%s1856 + $0x88] sm:$0xf]
      %v3016 = vld [vmem:[%s1856 + $0x8c] sm:$0x1]
      %v3017 = vld [vmem:[%s1856 + $0x90] sm:$0xe]
      %v3018 = vld [vmem:[%s1856 + $0x94] sm:$0xf]
      %v3019 = vld [vmem:[%s1856 + $0x98] sm:$0x1]
      %v3020 = vld [vmem:[%s1856 + $0x9c] sm:$0xe]
      %v3021 = vld [vmem:[%s1856 + $0xa0] sm:$0xf]
      %v3022 = vld [vmem:[%s1856 + $0xa4] sm:$0x1]
      %v3023 = vld [vmem:[%s1856 + $0xa8] sm:$0xe]
      %v3024 = vld [vmem:[%s1856 + $0xac] sm:$0xf]
      %v3025 = vld [vmem:[%s1856 + $0xb0] sm:$0x1]
      %v3026 = vld [vmem:[%s1856 + $0xb4] sm:$0xe]
      %v3027 = vld [vmem:[%s1856 + $0xb8] sm:$0xf]
      %v3028 = vld [vmem:[%s1856 + $0xbc] sm:$0x1]
      %v3077 = vrot.slane %v2981, 5
      %v3078 = vrot.slane %v3077, 4
      %v3079 = vrot.slane %v2982, 5
      %v3080 = vsel %vm1429, %v3078, %v3079
      %v3081 = vrot.slane %v3079, 4
      %v3082 = vrot.slane %v2983, 5
      %v3083 = vsel %vm1429, %v3081, %v3082
      %v3084 = vrot.slane %v2984, 5
      %v3085 = vrot.slane %v3084, 4
      %v3086 = vrot.slane %v2985, 5
      %v3087 = vsel %vm1429, %v3085, %v3086
      %v3088 = vrot.slane %v3086, 4
      %v3089 = vrot.slane %v2986, 5
      %v3090 = vsel %vm1429, %v3088, %v3089
      %v3091 = vrot.slane %v2987, 5
      %v3092 = vrot.slane %v3091, 4
      %v3093 = vrot.slane %v2988, 5
      %v3094 = vsel %vm1429, %v3092, %v3093
      %v3095 = vrot.slane %v3093, 4
      %v3096 = vrot.slane %v2989, 5
      %v3097 = vsel %vm1429, %v3095, %v3096
      %v3098 = vrot.slane %v2990, 5
      %v3099 = vrot.slane %v3098, 4
      %v3100 = vrot.slane %v2991, 5
      %v3101 = vsel %vm1429, %v3099, %v3100
      %v3102 = vrot.slane %v3100, 4
      %v3103 = vrot.slane %v2992, 5
      %v3104 = vsel %vm1429, %v3102, %v3103
      %v3105 = vrot.slane %v2993, 5
      %v3106 = vrot.slane %v3105, 4
      %v3107 = vrot.slane %v2994, 5
      %v3108 = vsel %vm1429, %v3106, %v3107
      %v3109 = vrot.slane %v3107, 4
      %v3110 = vrot.slane %v2995, 5
      %v3111 = vsel %vm1429, %v3109, %v3110
      %v3112 = vrot.slane %v2996, 5
      %v3113 = vrot.slane %v3112, 4
      %v3114 = vrot.slane %v2997, 5
      %v3115 = vsel %vm1429, %v3113, %v3114
      %v3116 = vrot.slane %v3114, 4
      %v3117 = vrot.slane %v2998, 5
      %v3118 = vsel %vm1429, %v3116, %v3117
      %v3119 = vrot.slane %v2999, 5
      %v3120 = vrot.slane %v3119, 4
      %v3121 = vrot.slane %v3000, 5
      %v3122 = vsel %vm1429, %v3120, %v3121
      %v3123 = vrot.slane %v3121, 4
      %v3124 = vrot.slane %v3001, 5
      %v3125 = vsel %vm1429, %v3123, %v3124
      %v3126 = vrot.slane %v3002, 5
      %v3127 = vrot.slane %v3126, 4
      %v3128 = vrot.slane %v3003, 5
      %v3129 = vsel %vm1429, %v3127, %v3128
      %v3130 = vrot.slane %v3128, 4
      %v3131 = vrot.slane %v3004, 5
      %v3132 = vsel %vm1429, %v3130, %v3131
      %v3133 = vrot.slane %v3005, 5
      %v3134 = vrot.slane %v3133, 4
      %v3135 = vrot.slane %v3006, 5
      %v3136 = vsel %vm1429, %v3134, %v3135
      %v3137 = vrot.slane %v3135, 4
      %v3138 = vrot.slane %v3007, 5
      %v3139 = vsel %vm1429, %v3137, %v3138
      %v3140 = vrot.slane %v3008, 5
      %v3141 = vrot.slane %v3140, 4
      %v3142 = vrot.slane %v3009, 5
      %v3143 = vsel %vm1429, %v3141, %v3142
      %v3144 = vrot.slane %v3142, 4
      %v3145 = vrot.slane %v3010, 5
      %v3146 = vsel %vm1429, %v3144, %v3145
      %v3147 = vrot.slane %v3011, 5
      %v3148 = vrot.slane %v3147, 4
      %v3149 = vrot.slane %v3012, 5
      %v3150 = vsel %vm1429, %v3148, %v3149
      %v3151 = vrot.slane %v3149, 4
      %v3152 = vrot.slane %v3013, 5
      %v3153 = vsel %vm1429, %v3151, %v3152
      %v3154 = vrot.slane %v3014, 5
      %v3155 = vrot.slane %v3154, 4
      %v3156 = vrot.slane %v3015, 5
      %v3157 = vsel %vm1429, %v3155, %v3156
      %v3158 = vrot.slane %v3156, 4
      %v3159 = vrot.slane %v3016, 5
      %v3160 = vsel %vm1429, %v3158, %v3159
      %v3161 = vrot.slane %v3017, 5
      %v3162 = vrot.slane %v3161, 4
      %v3163 = vrot.slane %v3018, 5
      %v3164 = vsel %vm1429, %v3162, %v3163
      %v3165 = vrot.slane %v3163, 4
      %v3166 = vrot.slane %v3019, 5
      %v3167 = vsel %vm1429, %v3165, %v3166
      %v3168 = vrot.slane %v3020, 5
      %v3169 = vrot.slane %v3168, 4
      %v3170 = vrot.slane %v3021, 5
      %v3171 = vsel %vm1429, %v3169, %v3170
      %v3172 = vrot.slane %v3170, 4
      %v3173 = vrot.slane %v3022, 5
      %v3174 = vsel %vm1429, %v3172, %v3173
      %v3175 = vrot.slane %v3023, 5
      %v3176 = vrot.slane %v3175, 4
      %v3177 = vrot.slane %v3024, 5
      %v3178 = vsel %vm1429, %v3176, %v3177
      %v3179 = vrot.slane %v3177, 4
      %v3180 = vrot.slane %v3025, 5
      %v3181 = vsel %vm1429, %v3179, %v3180
      %v3182 = vrot.slane %v3026, 5
      %v3183 = vrot.slane %v3182, 4
      %v3184 = vrot.slane %v3027, 5
      %v3185 = vsel %vm1429, %v3183, %v3184
      %v3186 = vrot.slane %v3184, 4
      %v3187 = vrot.slane %v3028, 5
      %v3188 = vsel %vm1429, %v3186, %v3187
      %v3189 = vld [vmem:[#allocation2] sm:$0xff]
      %v3190 = vld [vmem:[#allocation2 + $0x8] sm:$0xff]
      %v3191 = vld [vmem:[#allocation2 + $0x10] sm:$0xff]
      %v3192 = vld [vmem:[#allocation2 + $0x18] sm:$0xff]
      %v3193 = vld [vmem:[#allocation2 + $0x20] sm:$0xff]
      %v3194 = vld [vmem:[#allocation2 + $0x28] sm:$0xff]
      %v3195 = vld [vmem:[#allocation2 + $0x30] sm:$0xff]
      %v3196 = vld [vmem:[#allocation2 + $0x38] sm:$0xff]
      %v3197 = vld [vmem:[#allocation2 + $0x40] sm:$0xff]
      %v3198 = vld [vmem:[#allocation2 + $0x48] sm:$0xff]
      %v3199 = vld [vmem:[#allocation2 + $0x50] sm:$0xff]
      %v3200 = vld [vmem:[#allocation2 + $0x58] sm:$0xff]
      %v3201 = vld [vmem:[#allocation2 + $0x60] sm:$0xff]
      %v3202 = vld [vmem:[#allocation2 + $0x68] sm:$0xff]
      %v3203 = vld [vmem:[#allocation2 + $0x70] sm:$0xff]
      %v3204 = vld [vmem:[#allocation2 + $0x78] sm:$0xff]
      %v3205 = vld [vmem:[#allocation2 + $0x80] sm:$0xff]
      %v3206 = vld [vmem:[#allocation2 + $0x88] sm:$0xff]
      %v3207 = vld [vmem:[#allocation2 + $0x90] sm:$0xff]
      %v3208 = vld [vmem:[#allocation2 + $0x98] sm:$0xff]
      %v3209 = vld [vmem:[#allocation2 + $0xa0] sm:$0xff]
      %v3210 = vld [vmem:[#allocation2 + $0xa8] sm:$0xff]
      %v3211 = vld [vmem:[#allocation2 + $0xb0] sm:$0xff]
      %v3212 = vld [vmem:[#allocation2 + $0xb8] sm:$0xff]
      %v3213 = vld [vmem:[#allocation2 + $0xc0] sm:$0xff]
      %v3214 = vld [vmem:[#allocation2 + $0xc8] sm:$0xff]
      %v3215 = vld [vmem:[#allocation2 + $0xd0] sm:$0xff]
      %v3216 = vld [vmem:[#allocation2 + $0xd8] sm:$0xff]
      %v3217 = vld [vmem:[#allocation2 + $0xe0] sm:$0xff]
      %v3218 = vld [vmem:[#allocation2 + $0xe8] sm:$0xff]
      %v3219 = vld [vmem:[#allocation2 + $0xf0] sm:$0xff]
      %v3220 = vld [vmem:[#allocation2 + $0xf8] sm:$0xff]
      %s3221 = scalar_lea.vmem %s1, 160
      %v3222 = vld [vmem:[%s3221] sm:$0xf]
      %v3223 = vld [vmem:[%s3221 + $0x4] sm:$0xf]
      %v3224 = vld [vmem:[%s3221 + $0x8] sm:$0xf]
      %v3225 = vld [vmem:[%s3221 + $0xc] sm:$0xf]
      %v3226 = vld [vmem:[%s3221 + $0x10] sm:$0xf]
      %v3227 = vld [vmem:[%s3221 + $0x14] sm:$0xf]
      %v3228 = vld [vmem:[%s3221 + $0x18] sm:$0xf]
      %v3229 = vld [vmem:[%s3221 + $0x1c] sm:$0xf]
      %v3230 = vunpack.c.l.b16 %v3080
      %v3231 = vunpack.c.l.b16 %v3083
      %v3232 = vunpack.c.l.b16 %v3087
      %v3233 = vunpack.c.l.b16 %v3090
      %v3234 = vunpack.c.l.b16 %v3094
      %v3235 = vunpack.c.l.b16 %v3097
      %v3236 = vunpack.c.l.b16 %v3101
      %v3237 = vunpack.c.l.b16 %v3104
      %v3238 = vunpack.c.l.b16 %v3108
      %v3239 = vunpack.c.l.b16 %v3111
      %v3240 = vunpack.c.l.b16 %v3115
      %v3241 = vunpack.c.l.b16 %v3118
      %v3242 = vunpack.c.l.b16 %v3122
      %v3243 = vunpack.c.l.b16 %v3125
      %v3244 = vunpack.c.l.b16 %v3129
      %v3245 = vunpack.c.l.b16 %v3132
      %v3246 = vunpack.c.l.b16 %v3136
      %v3247 = vunpack.c.l.b16 %v3139
      %v3248 = vunpack.c.l.b16 %v3143
      %v3249 = vunpack.c.l.b16 %v3146
      %v3250 = vunpack.c.l.b16 %v3150
      %v3251 = vunpack.c.l.b16 %v3153
      %v3252 = vunpack.c.l.b16 %v3157
      %v3253 = vunpack.c.l.b16 %v3160
      %v3254 = vunpack.c.l.b16 %v3164
      %v3255 = vunpack.c.l.b16 %v3167
      %v3256 = vunpack.c.l.b16 %v3171
      %v3257 = vunpack.c.l.b16 %v3174
      %v3258 = vunpack.c.l.b16 %v3178
      %v3259 = vunpack.c.l.b16 %v3181
      %v3260 = vunpack.c.l.b16 %v3185
      %v3261 = vunpack.c.l.b16 %v3188
      %v3262 = vpack.c.b16 %v3231, %v3230
      %v3263 = vpack.c.b16 %v3233, %v3232
      %v3264 = vpack.c.b16 %v3235, %v3234
      %v3265 = vpack.c.b16 %v3237, %v3236
      %v3266 = vpack.c.b16 %v3239, %v3238
      %v3267 = vpack.c.b16 %v3241, %v3240
      %v3268 = vpack.c.b16 %v3243, %v3242
      %v3269 = vpack.c.b16 %v3245, %v3244
      %v3270 = vpack.c.b16 %v3247, %v3246
      %v3271 = vpack.c.b16 %v3249, %v3248
      %v3272 = vpack.c.b16 %v3251, %v3250
      %v3273 = vpack.c.b16 %v3253, %v3252
      %v3274 = vpack.c.b16 %v3255, %v3254
      %v3275 = vpack.c.b16 %v3257, %v3256
      %v3276 = vpack.c.b16 %v3259, %v3258
      %v3277 = vpack.c.b16 %v3261, %v3260
      %v3286 = vunpack.c.l.b16 %v3222
      %v3287 = vunpack.c.l.b16 %v3223
      %v3288 = vunpack.c.l.b16 %v3224
      %v3289 = vunpack.c.l.b16 %v3225
      %v3290 = vunpack.c.l.b16 %v3226
      %v3291 = vunpack.c.l.b16 %v3227
      %v3292 = vunpack.c.l.b16 %v3228
      %v3293 = vunpack.c.l.b16 %v3229
      %v3294 = vpack.c.b16 %v3287, %v3286
      %v3295 = vpack.c.b16 %v3289, %v3288
      %v3296 = vpack.c.b16 %v3291, %v3290
      %v3297 = vpack.c.b16 %v3293, %v3292
      %v3303 = vsel %vm380, %v3262, 0
      %v3306 = vsel %vm380, %v3263, 0
      %v3309 = vsel %vm380, %v3264, 0
      %v3312 = vsel %vm380, %v3265, 0
      %v3315 = vsel %vm380, %v3266, 0
      %v3318 = vsel %vm380, %v3267, 0
      %v3321 = vsel %vm380, %v3268, 0
      %v3324 = vsel %vm380, %v3269, 0
      %v3327 = vsel %vm380, %v3270, 0
      %v3330 = vsel %vm380, %v3271, 0
      %v3333 = vsel %vm380, %v3272, 0
      %v3336 = vsel %vm380, %v3273, 0
      %v3339 = vsel %vm380, %v3274, 0
      %v3342 = vsel %vm380, %v3275, 0
      %v3345 = vsel %vm380, %v3276, 0
      %v3348 = vsel %vm380, %v3277, 0
      %3350 = vmatpush.bf16.msra.mxu0 0
      %3351 = vmatpush.bf16.msra.mxu0 0
      %3352 = vmatpush.bf16.msra.mxu0 0
      %3353 = vmatpush.bf16.msra.mxu0 0
      %3354 = vmatpush.bf16.msra.mxu0 %v3297
      %3355 = vmatpush.bf16.msra.mxu0 %v3296
      %3356 = vmatpush.bf16.msra.mxu0 %v3295
      %3357 = vmatpush.bf16.msra.mxu0 %v3294
      %3358 = vmatmul.bf16.gmra.mxu0 %v3303
      %v3359 = vpop.f32.mrf.mxu0
      %v3360 = vadd.f32 0.0, %v3359
      %v3361 = vpop.f32.mrf.mxu0
      %v3362 = vadd.f32 0.0, %v3361
      %3363 = vmatmul.bf16.gmra.mxu0 %v3306
      %v3364 = vpop.f32.mrf.mxu0
      %v3365 = vadd.f32 0.0, %v3364
      %v3366 = vpop.f32.mrf.mxu0
      %v3367 = vadd.f32 0.0, %v3366
      %3368 = vmatmul.bf16.gmra.mxu0 %v3309
      %v3369 = vpop.f32.mrf.mxu0
      %v3370 = vadd.f32 0.0, %v3369
      %v3371 = vpop.f32.mrf.mxu0
      %v3372 = vadd.f32 0.0, %v3371
      %3373 = vmatmul.bf16.gmra.mxu0 %v3312
      %v3374 = vpop.f32.mrf.mxu0
      %v3375 = vadd.f32 0.0, %v3374
      %v3376 = vpop.f32.mrf.mxu0
      %v3377 = vadd.f32 0.0, %v3376
      %3378 = vmatmul.bf16.gmra.mxu0 %v3315
      %v3379 = vpop.f32.mrf.mxu0
      %v3380 = vadd.f32 0.0, %v3379
      %v3381 = vpop.f32.mrf.mxu0
      %v3382 = vadd.f32 0.0, %v3381
      %3383 = vmatmul.bf16.gmra.mxu0 %v3318
      %v3384 = vpop.f32.mrf.mxu0
      %v3385 = vadd.f32 0.0, %v3384
      %v3386 = vpop.f32.mrf.mxu0
      %v3387 = vadd.f32 0.0, %v3386
      %3388 = vmatmul.bf16.gmra.mxu0 %v3321
      %v3389 = vpop.f32.mrf.mxu0
      %v3390 = vadd.f32 0.0, %v3389
      %v3391 = vpop.f32.mrf.mxu0
      %v3392 = vadd.f32 0.0, %v3391
      %3393 = vmatmul.bf16.gmra.mxu0 %v3324
      %v3394 = vpop.f32.mrf.mxu0
      %v3395 = vadd.f32 0.0, %v3394
      %v3396 = vpop.f32.mrf.mxu0
      %v3397 = vadd.f32 0.0, %v3396
      %3398 = vmatmul.bf16.gmra.mxu0 %v3327
      %v3399 = vpop.f32.mrf.mxu0
      %v3400 = vadd.f32 0.0, %v3399
      %v3401 = vpop.f32.mrf.mxu0
      %v3402 = vadd.f32 0.0, %v3401
      %3403 = vmatmul.bf16.gmra.mxu0 %v3330
      %v3404 = vpop.f32.mrf.mxu0
      %v3405 = vadd.f32 0.0, %v3404
      %v3406 = vpop.f32.mrf.mxu0
      %v3407 = vadd.f32 0.0, %v3406
      %3408 = vmatmul.bf16.gmra.mxu0 %v3333
      %v3409 = vpop.f32.mrf.mxu0
      %v3410 = vadd.f32 0.0, %v3409
      %v3411 = vpop.f32.mrf.mxu0
      %v3412 = vadd.f32 0.0, %v3411
      %3413 = vmatmul.bf16.gmra.mxu0 %v3336
      %v3414 = vpop.f32.mrf.mxu0
      %v3415 = vadd.f32 0.0, %v3414
      %v3416 = vpop.f32.mrf.mxu0
      %v3417 = vadd.f32 0.0, %v3416
      %3418 = vmatmul.bf16.gmra.mxu0 %v3339
      %v3419 = vpop.f32.mrf.mxu0
      %v3420 = vadd.f32 0.0, %v3419
      %v3421 = vpop.f32.mrf.mxu0
      %v3422 = vadd.f32 0.0, %v3421
      %3423 = vmatmul.bf16.gmra.mxu0 %v3342
      %v3424 = vpop.f32.mrf.mxu0
      %v3425 = vadd.f32 0.0, %v3424
      %v3426 = vpop.f32.mrf.mxu0
      %v3427 = vadd.f32 0.0, %v3426
      %3428 = vmatmul.bf16.gmra.mxu0 %v3345
      %v3429 = vpop.f32.mrf.mxu0
      %v3430 = vadd.f32 0.0, %v3429
      %v3431 = vpop.f32.mrf.mxu0
      %v3432 = vadd.f32 0.0, %v3431
      %3433 = vmatmul.bf16.gmra.mxu0 %v3348
      %v3434 = vpop.f32.mrf.mxu0
      %v3435 = vadd.f32 0.0, %v3434
      %v3436 = vpop.f32.mrf.mxu0
      %v3437 = vadd.f32 0.0, %v3436
      %3438 = vdwg.mxu0
      %v3439 = vadd.f32 %v3189, %v3360
      %v3440 = vadd.f32 %v3190, %v3362
      %v3441 = vadd.f32 %v3191, %v3365
      %v3442 = vadd.f32 %v3192, %v3367
      %v3443 = vadd.f32 %v3193, %v3370
      %v3444 = vadd.f32 %v3194, %v3372
      %v3445 = vadd.f32 %v3195, %v3375
      %v3446 = vadd.f32 %v3196, %v3377
      %v3447 = vadd.f32 %v3197, %v3380
      %v3448 = vadd.f32 %v3198, %v3382
      %v3449 = vadd.f32 %v3199, %v3385
      %v3450 = vadd.f32 %v3200, %v3387
      %v3451 = vadd.f32 %v3201, %v3390
      %v3452 = vadd.f32 %v3202, %v3392
      %v3453 = vadd.f32 %v3203, %v3395
      %v3454 = vadd.f32 %v3204, %v3397
      %v3455 = vadd.f32 %v3205, %v3400
      %v3456 = vadd.f32 %v3206, %v3402
      %v3457 = vadd.f32 %v3207, %v3405
      %v3458 = vadd.f32 %v3208, %v3407
      %v3459 = vadd.f32 %v3209, %v3410
      %v3460 = vadd.f32 %v3210, %v3412
      %v3461 = vadd.f32 %v3211, %v3415
      %v3462 = vadd.f32 %v3212, %v3417
      %v3463 = vadd.f32 %v3213, %v3420
      %v3464 = vadd.f32 %v3214, %v3422
      %v3465 = vadd.f32 %v3215, %v3425
      %v3466 = vadd.f32 %v3216, %v3427
      %v3467 = vadd.f32 %v3217, %v3430
      %v3468 = vadd.f32 %v3218, %v3432
      %v3469 = vadd.f32 %v3219, %v3435
      %v3470 = vadd.f32 %v3220, %v3437
      %3471 = vst [vmem:[#allocation2] sm:$0xff] %v3439
      %3472 = vst [vmem:[#allocation2 + $0x8] sm:$0xff] %v3440
      %3473 = vst [vmem:[#allocation2 + $0x10] sm:$0xff] %v3441
      %3474 = vst [vmem:[#allocation2 + $0x18] sm:$0xff] %v3442
      %3475 = vst [vmem:[#allocation2 + $0x20] sm:$0xff] %v3443
      %3476 = vst [vmem:[#allocation2 + $0x28] sm:$0xff] %v3444
      %3477 = vst [vmem:[#allocation2 + $0x30] sm:$0xff] %v3445
      %3478 = vst [vmem:[#allocation2 + $0x38] sm:$0xff] %v3446
      %3479 = vst [vmem:[#allocation2 + $0x40] sm:$0xff] %v3447
      %3480 = vst [vmem:[#allocation2 + $0x48] sm:$0xff] %v3448
      %3481 = vst [vmem:[#allocation2 + $0x50] sm:$0xff] %v3449
      %3482 = vst [vmem:[#allocation2 + $0x58] sm:$0xff] %v3450
      %3483 = vst [vmem:[#allocation2 + $0x60] sm:$0xff] %v3451
      %3484 = vst [vmem:[#allocation2 + $0x68] sm:$0xff] %v3452
      %3485 = vst [vmem:[#allocation2 + $0x70] sm:$0xff] %v3453
      %3486 = vst [vmem:[#allocation2 + $0x78] sm:$0xff] %v3454
      %3487 = vst [vmem:[#allocation2 + $0x80] sm:$0xff] %v3455
      %3488 = vst [vmem:[#allocation2 + $0x88] sm:$0xff] %v3456
      %3489 = vst [vmem:[#allocation2 + $0x90] sm:$0xff] %v3457
      %3490 = vst [vmem:[#allocation2 + $0x98] sm:$0xff] %v3458
      %3491 = vst [vmem:[#allocation2 + $0xa0] sm:$0xff] %v3459
      %3492 = vst [vmem:[#allocation2 + $0xa8] sm:$0xff] %v3460
      %3493 = vst [vmem:[#allocation2 + $0xb0] sm:$0xff] %v3461
      %3494 = vst [vmem:[#allocation2 + $0xb8] sm:$0xff] %v3462
      %3495 = vst [vmem:[#allocation2 + $0xc0] sm:$0xff] %v3463
      %3496 = vst [vmem:[#allocation2 + $0xc8] sm:$0xff] %v3464
      %3497 = vst [vmem:[#allocation2 + $0xd0] sm:$0xff] %v3465
      %3498 = vst [vmem:[#allocation2 + $0xd8] sm:$0xff] %v3466
      %3499 = vst [vmem:[#allocation2 + $0xe0] sm:$0xff] %v3467
      %3500 = vst [vmem:[#allocation2 + $0xe8] sm:$0xff] %v3468
      %3501 = vst [vmem:[#allocation2 + $0xf0] sm:$0xff] %v3469
      %3502 = vst [vmem:[#allocation2 + $0xf8] sm:$0xff] %v3470
      %s3503 = scalar_lea.vmem %s165, 24
      %v3504 = vld [vmem:[%s3503] sm:$0xf]
      %v3505 = vld [vmem:[%s3503 + $0x4] sm:$0xf]
      %v3506 = vld [vmem:[%s3503 + $0xc] sm:$0xf]
      %v3507 = vld [vmem:[%s3503 + $0x10] sm:$0xf]
      %v3508 = vld [vmem:[%s3503 + $0x18] sm:$0xf]
      %v3509 = vld [vmem:[%s3503 + $0x1c] sm:$0xf]
      %v3510 = vld [vmem:[%s3503 + $0x24] sm:$0xf]
      %v3511 = vld [vmem:[%s3503 + $0x28] sm:$0xf]
      %v3512 = vld [vmem:[%s3503 + $0x30] sm:$0xf]
      %v3513 = vld [vmem:[%s3503 + $0x34] sm:$0xf]
      %v3514 = vld [vmem:[%s3503 + $0x3c] sm:$0xf]
      %v3515 = vld [vmem:[%s3503 + $0x40] sm:$0xf]
      %v3516 = vld [vmem:[%s3503 + $0x48] sm:$0xf]
      %v3517 = vld [vmem:[%s3503 + $0x4c] sm:$0xf]
      %v3518 = vld [vmem:[%s3503 + $0x54] sm:$0xf]
      %v3519 = vld [vmem:[%s3503 + $0x58] sm:$0xf]
      %v3520 = vld [vmem:[%s3503 + $0x60] sm:$0xf]
      %v3521 = vld [vmem:[%s3503 + $0x64] sm:$0xf]
      %v3522 = vld [vmem:[%s3503 + $0x6c] sm:$0xf]
      %v3523 = vld [vmem:[%s3503 + $0x70] sm:$0xf]
      %v3524 = vld [vmem:[%s3503 + $0x78] sm:$0xf]
      %v3525 = vld [vmem:[%s3503 + $0x7c] sm:$0xf]
      %v3526 = vld [vmem:[%s3503 + $0x84] sm:$0xf]
      %v3527 = vld [vmem:[%s3503 + $0x88] sm:$0xf]
      %v3528 = vld [vmem:[%s3503 + $0x90] sm:$0xf]
      %v3529 = vld [vmem:[%s3503 + $0x94] sm:$0xf]
      %v3530 = vld [vmem:[%s3503 + $0x9c] sm:$0xf]
      %v3531 = vld [vmem:[%s3503 + $0xa0] sm:$0xf]
      %v3532 = vld [vmem:[%s3503 + $0xa8] sm:$0xf]
      %v3533 = vld [vmem:[%s3503 + $0xac] sm:$0xf]
      %v3534 = vld [vmem:[%s3503 + $0xb4] sm:$0xf]
      %v3535 = vld [vmem:[%s3503 + $0xb8] sm:$0xf]
      %v3536 = vld [vmem:[#allocation2] sm:$0xff]
      %v3537 = vld [vmem:[#allocation2 + $0x8] sm:$0xff]
      %v3538 = vld [vmem:[#allocation2 + $0x10] sm:$0xff]
      %v3539 = vld [vmem:[#allocation2 + $0x18] sm:$0xff]
      %v3540 = vld [vmem:[#allocation2 + $0x20] sm:$0xff]
      %v3541 = vld [vmem:[#allocation2 + $0x28] sm:$0xff]
      %v3542 = vld [vmem:[#allocation2 + $0x30] sm:$0xff]
      %v3543 = vld [vmem:[#allocation2 + $0x38] sm:$0xff]
      %v3544 = vld [vmem:[#allocation2 + $0x40] sm:$0xff]
      %v3545 = vld [vmem:[#allocation2 + $0x48] sm:$0xff]
      %v3546 = vld [vmem:[#allocation2 + $0x50] sm:$0xff]
      %v3547 = vld [vmem:[#allocation2 + $0x58] sm:$0xff]
      %v3548 = vld [vmem:[#allocation2 + $0x60] sm:$0xff]
      %v3549 = vld [vmem:[#allocation2 + $0x68] sm:$0xff]
      %v3550 = vld [vmem:[#allocation2 + $0x70] sm:$0xff]
      %v3551 = vld [vmem:[#allocation2 + $0x78] sm:$0xff]
      %v3552 = vld [vmem:[#allocation2 + $0x80] sm:$0xff]
      %v3553 = vld [vmem:[#allocation2 + $0x88] sm:$0xff]
      %v3554 = vld [vmem:[#allocation2 + $0x90] sm:$0xff]
      %v3555 = vld [vmem:[#allocation2 + $0x98] sm:$0xff]
      %v3556 = vld [vmem:[#allocation2 + $0xa0] sm:$0xff]
      %v3557 = vld [vmem:[#allocation2 + $0xa8] sm:$0xff]
      %v3558 = vld [vmem:[#allocation2 + $0xb0] sm:$0xff]
      %v3559 = vld [vmem:[#allocation2 + $0xb8] sm:$0xff]
      %v3560 = vld [vmem:[#allocation2 + $0xc0] sm:$0xff]
      %v3561 = vld [vmem:[#allocation2 + $0xc8] sm:$0xff]
      %v3562 = vld [vmem:[#allocation2 + $0xd0] sm:$0xff]
      %v3563 = vld [vmem:[#allocation2 + $0xd8] sm:$0xff]
      %v3564 = vld [vmem:[#allocation2 + $0xe0] sm:$0xff]
      %v3565 = vld [vmem:[#allocation2 + $0xe8] sm:$0xff]
      %v3566 = vld [vmem:[#allocation2 + $0xf0] sm:$0xff]
      %v3567 = vld [vmem:[#allocation2 + $0xf8] sm:$0xff]
      %s3568 = scalar_lea.vmem %s1, 192
      %v3569 = vld [vmem:[%s3568] sm:$0xf]
      %v3570 = vld [vmem:[%s3568 + $0x4] sm:$0xf]
      %v3571 = vld [vmem:[%s3568 + $0x8] sm:$0xf]
      %v3572 = vld [vmem:[%s3568 + $0xc] sm:$0xf]
      %v3573 = vld [vmem:[%s3568 + $0x10] sm:$0xf]
      %v3574 = vld [vmem:[%s3568 + $0x14] sm:$0xf]
      %v3575 = vld [vmem:[%s3568 + $0x18] sm:$0xf]
      %v3576 = vld [vmem:[%s3568 + $0x1c] sm:$0xf]
      %v3609 = vunpack.c.l.b16 %v3504
      %v3610 = vunpack.c.l.b16 %v3505
      %v3611 = vunpack.c.l.b16 %v3506
      %v3612 = vunpack.c.l.b16 %v3507
      %v3613 = vunpack.c.l.b16 %v3508
      %v3614 = vunpack.c.l.b16 %v3509
      %v3615 = vunpack.c.l.b16 %v3510
      %v3616 = vunpack.c.l.b16 %v3511
      %v3617 = vunpack.c.l.b16 %v3512
      %v3618 = vunpack.c.l.b16 %v3513
      %v3619 = vunpack.c.l.b16 %v3514
      %v3620 = vunpack.c.l.b16 %v3515
      %v3621 = vunpack.c.l.b16 %v3516
      %v3622 = vunpack.c.l.b16 %v3517
      %v3623 = vunpack.c.l.b16 %v3518
      %v3624 = vunpack.c.l.b16 %v3519
      %v3625 = vunpack.c.l.b16 %v3520
      %v3626 = vunpack.c.l.b16 %v3521
      %v3627 = vunpack.c.l.b16 %v3522
      %v3628 = vunpack.c.l.b16 %v3523
      %v3629 = vunpack.c.l.b16 %v3524
      %v3630 = vunpack.c.l.b16 %v3525
      %v3631 = vunpack.c.l.b16 %v3526
      %v3632 = vunpack.c.l.b16 %v3527
      %v3633 = vunpack.c.l.b16 %v3528
      %v3634 = vunpack.c.l.b16 %v3529
      %v3635 = vunpack.c.l.b16 %v3530
      %v3636 = vunpack.c.l.b16 %v3531
      %v3637 = vunpack.c.l.b16 %v3532
      %v3638 = vunpack.c.l.b16 %v3533
      %v3639 = vunpack.c.l.b16 %v3534
      %v3640 = vunpack.c.l.b16 %v3535
      %v3641 = vpack.c.b16 %v3610, %v3609
      %v3642 = vpack.c.b16 %v3612, %v3611
      %v3643 = vpack.c.b16 %v3614, %v3613
      %v3644 = vpack.c.b16 %v3616, %v3615
      %v3645 = vpack.c.b16 %v3618, %v3617
      %v3646 = vpack.c.b16 %v3620, %v3619
      %v3647 = vpack.c.b16 %v3622, %v3621
      %v3648 = vpack.c.b16 %v3624, %v3623
      %v3649 = vpack.c.b16 %v3626, %v3625
      %v3650 = vpack.c.b16 %v3628, %v3627
      %v3651 = vpack.c.b16 %v3630, %v3629
      %v3652 = vpack.c.b16 %v3632, %v3631
      %v3653 = vpack.c.b16 %v3634, %v3633
      %v3654 = vpack.c.b16 %v3636, %v3635
      %v3655 = vpack.c.b16 %v3638, %v3637
      %v3656 = vpack.c.b16 %v3640, %v3639
      %v3665 = vunpack.c.l.b16 %v3569
      %v3666 = vunpack.c.l.b16 %v3570
      %v3667 = vunpack.c.l.b16 %v3571
      %v3668 = vunpack.c.l.b16 %v3572
      %v3669 = vunpack.c.l.b16 %v3573
      %v3670 = vunpack.c.l.b16 %v3574
      %v3671 = vunpack.c.l.b16 %v3575
      %v3672 = vunpack.c.l.b16 %v3576
      %v3673 = vpack.c.b16 %v3666, %v3665
      %v3674 = vpack.c.b16 %v3668, %v3667
      %v3675 = vpack.c.b16 %v3670, %v3669
      %v3676 = vpack.c.b16 %v3672, %v3671
      %v3682 = vsel %vm380, %v3641, 0
      %v3685 = vsel %vm380, %v3642, 0
      %v3688 = vsel %vm380, %v3643, 0
      %v3691 = vsel %vm380, %v3644, 0
      %v3694 = vsel %vm380, %v3645, 0
      %v3697 = vsel %vm380, %v3646, 0
      %v3700 = vsel %vm380, %v3647, 0
      %v3703 = vsel %vm380, %v3648, 0
      %v3706 = vsel %vm380, %v3649, 0
      %v3709 = vsel %vm380, %v3650, 0
      %v3712 = vsel %vm380, %v3651, 0
      %v3715 = vsel %vm380, %v3652, 0
      %v3718 = vsel %vm380, %v3653, 0
      %v3721 = vsel %vm380, %v3654, 0
      %v3724 = vsel %vm380, %v3655, 0
      %v3727 = vsel %vm380, %v3656, 0
      %3729 = vmatpush.bf16.msra.mxu0 0
      %3730 = vmatpush.bf16.msra.mxu0 0
      %3731 = vmatpush.bf16.msra.mxu0 0
      %3732 = vmatpush.bf16.msra.mxu0 0
      %3733 = vmatpush.bf16.msra.mxu0 %v3676
      %3734 = vmatpush.bf16.msra.mxu0 %v3675
      %3735 = vmatpush.bf16.msra.mxu0 %v3674
      %3736 = vmatpush.bf16.msra.mxu0 %v3673
      %3737 = vmatmul.bf16.gmra.mxu0 %v3682
      %v3738 = vpop.f32.mrf.mxu0
      %v3739 = vadd.f32 0.0, %v3738
      %v3740 = vpop.f32.mrf.mxu0
      %v3741 = vadd.f32 0.0, %v3740
      %3742 = vmatmul.bf16.gmra.mxu0 %v3685
      %v3743 = vpop.f32.mrf.mxu0
      %v3744 = vadd.f32 0.0, %v3743
      %v3745 = vpop.f32.mrf.mxu0
      %v3746 = vadd.f32 0.0, %v3745
      %3747 = vmatmul.bf16.gmra.mxu0 %v3688
      %v3748 = vpop.f32.mrf.mxu0
      %v3749 = vadd.f32 0.0, %v3748
      %v3750 = vpop.f32.mrf.mxu0
      %v3751 = vadd.f32 0.0, %v3750
      %3752 = vmatmul.bf16.gmra.mxu0 %v3691
      %v3753 = vpop.f32.mrf.mxu0
      %v3754 = vadd.f32 0.0, %v3753
      %v3755 = vpop.f32.mrf.mxu0
      %v3756 = vadd.f32 0.0, %v3755
      %3757 = vmatmul.bf16.gmra.mxu0 %v3694
      %v3758 = vpop.f32.mrf.mxu0
      %v3759 = vadd.f32 0.0, %v3758
      %v3760 = vpop.f32.mrf.mxu0
      %v3761 = vadd.f32 0.0, %v3760
      %3762 = vmatmul.bf16.gmra.mxu0 %v3697
      %v3763 = vpop.f32.mrf.mxu0
      %v3764 = vadd.f32 0.0, %v3763
      %v3765 = vpop.f32.mrf.mxu0
      %v3766 = vadd.f32 0.0, %v3765
      %3767 = vmatmul.bf16.gmra.mxu0 %v3700
      %v3768 = vpop.f32.mrf.mxu0
      %v3769 = vadd.f32 0.0, %v3768
      %v3770 = vpop.f32.mrf.mxu0
      %v3771 = vadd.f32 0.0, %v3770
      %3772 = vmatmul.bf16.gmra.mxu0 %v3703
      %v3773 = vpop.f32.mrf.mxu0
      %v3774 = vadd.f32 0.0, %v3773
      %v3775 = vpop.f32.mrf.mxu0
      %v3776 = vadd.f32 0.0, %v3775
      %3777 = vmatmul.bf16.gmra.mxu0 %v3706
      %v3778 = vpop.f32.mrf.mxu0
      %v3779 = vadd.f32 0.0, %v3778
      %v3780 = vpop.f32.mrf.mxu0
      %v3781 = vadd.f32 0.0, %v3780
      %3782 = vmatmul.bf16.gmra.mxu0 %v3709
      %v3783 = vpop.f32.mrf.mxu0
      %v3784 = vadd.f32 0.0, %v3783
      %v3785 = vpop.f32.mrf.mxu0
      %v3786 = vadd.f32 0.0, %v3785
      %3787 = vmatmul.bf16.gmra.mxu0 %v3712
      %v3788 = vpop.f32.mrf.mxu0
      %v3789 = vadd.f32 0.0, %v3788
      %v3790 = vpop.f32.mrf.mxu0
      %v3791 = vadd.f32 0.0, %v3790
      %3792 = vmatmul.bf16.gmra.mxu0 %v3715
      %v3793 = vpop.f32.mrf.mxu0
      %v3794 = vadd.f32 0.0, %v3793
      %v3795 = vpop.f32.mrf.mxu0
      %v3796 = vadd.f32 0.0, %v3795
      %3797 = vmatmul.bf16.gmra.mxu0 %v3718
      %v3798 = vpop.f32.mrf.mxu0
      %v3799 = vadd.f32 0.0, %v3798
      %v3800 = vpop.f32.mrf.mxu0
      %v3801 = vadd.f32 0.0, %v3800
      %3802 = vmatmul.bf16.gmra.mxu0 %v3721
      %v3803 = vpop.f32.mrf.mxu0
      %v3804 = vadd.f32 0.0, %v3803
      %v3805 = vpop.f32.mrf.mxu0
      %v3806 = vadd.f32 0.0, %v3805
      %3807 = vmatmul.bf16.gmra.mxu0 %v3724
      %v3808 = vpop.f32.mrf.mxu0
      %v3809 = vadd.f32 0.0, %v3808
      %v3810 = vpop.f32.mrf.mxu0
      %v3811 = vadd.f32 0.0, %v3810
      %3812 = vmatmul.bf16.gmra.mxu0 %v3727
      %v3813 = vpop.f32.mrf.mxu0
      %v3814 = vadd.f32 0.0, %v3813
      %v3815 = vpop.f32.mrf.mxu0
      %v3816 = vadd.f32 0.0, %v3815
      %3817 = vdwg.mxu0
      %v3818 = vadd.f32 %v3536, %v3739
      %v3819 = vadd.f32 %v3537, %v3741
      %v3820 = vadd.f32 %v3538, %v3744
      %v3821 = vadd.f32 %v3539, %v3746
      %v3822 = vadd.f32 %v3540, %v3749
      %v3823 = vadd.f32 %v3541, %v3751
      %v3824 = vadd.f32 %v3542, %v3754
      %v3825 = vadd.f32 %v3543, %v3756
      %v3826 = vadd.f32 %v3544, %v3759
      %v3827 = vadd.f32 %v3545, %v3761
      %v3828 = vadd.f32 %v3546, %v3764
      %v3829 = vadd.f32 %v3547, %v3766
      %v3830 = vadd.f32 %v3548, %v3769
      %v3831 = vadd.f32 %v3549, %v3771
      %v3832 = vadd.f32 %v3550, %v3774
      %v3833 = vadd.f32 %v3551, %v3776
      %v3834 = vadd.f32 %v3552, %v3779
      %v3835 = vadd.f32 %v3553, %v3781
      %v3836 = vadd.f32 %v3554, %v3784
      %v3837 = vadd.f32 %v3555, %v3786
      %v3838 = vadd.f32 %v3556, %v3789
      %v3839 = vadd.f32 %v3557, %v3791
      %v3840 = vadd.f32 %v3558, %v3794
      %v3841 = vadd.f32 %v3559, %v3796
      %v3842 = vadd.f32 %v3560, %v3799
      %v3843 = vadd.f32 %v3561, %v3801
      %v3844 = vadd.f32 %v3562, %v3804
      %v3845 = vadd.f32 %v3563, %v3806
      %v3846 = vadd.f32 %v3564, %v3809
      %v3847 = vadd.f32 %v3565, %v3811
      %v3848 = vadd.f32 %v3566, %v3814
      %v3849 = vadd.f32 %v3567, %v3816
      %3850 = vst [vmem:[#allocation2] sm:$0xff] %v3818
      %3851 = vst [vmem:[#allocation2 + $0x8] sm:$0xff] %v3819
      %3852 = vst [vmem:[#allocation2 + $0x10] sm:$0xff] %v3820
      %3853 = vst [vmem:[#allocation2 + $0x18] sm:$0xff] %v3821
      %3854 = vst [vmem:[#allocation2 + $0x20] sm:$0xff] %v3822
      %3855 = vst [vmem:[#allocation2 + $0x28] sm:$0xff] %v3823
      %3856 = vst [vmem:[#allocation2 + $0x30] sm:$0xff] %v3824
      %3857 = vst [vmem:[#allocation2 + $0x38] sm:$0xff] %v3825
      %3858 = vst [vmem:[#allocation2 + $0x40] sm:$0xff] %v3826
      %3859 = vst [vmem:[#allocation2 + $0x48] sm:$0xff] %v3827
      %3860 = vst [vmem:[#allocation2 + $0x50] sm:$0xff] %v3828
      %3861 = vst [vmem:[#allocation2 + $0x58] sm:$0xff] %v3829
      %3862 = vst [vmem:[#allocation2 + $0x60] sm:$0xff] %v3830
      %3863 = vst [vmem:[#allocation2 + $0x68] sm:$0xff] %v3831
      %3864 = vst [vmem:[#allocation2 + $0x70] sm:$0xff] %v3832
      %3865 = vst [vmem:[#allocation2 + $0x78] sm:$0xff] %v3833
      %3866 = vst [vmem:[#allocation2 + $0x80] sm:$0xff] %v3834
      %3867 = vst [vmem:[#allocation2 + $0x88] sm:$0xff] %v3835
      %3868 = vst [vmem:[#allocation2 + $0x90] sm:$0xff] %v3836
      %3869 = vst [vmem:[#allocation2 + $0x98] sm:$0xff] %v3837
      %3870 = vst [vmem:[#allocation2 + $0xa0] sm:$0xff] %v3838
      %3871 = vst [vmem:[#allocation2 + $0xa8] sm:$0xff] %v3839
      %3872 = vst [vmem:[#allocation2 + $0xb0] sm:$0xff] %v3840
      %3873 = vst [vmem:[#allocation2 + $0xb8] sm:$0xff] %v3841
      %3874 = vst [vmem:[#allocation2 + $0xc0] sm:$0xff] %v3842
      %3875 = vst [vmem:[#allocation2 + $0xc8] sm:$0xff] %v3843
      %3876 = vst [vmem:[#allocation2 + $0xd0] sm:$0xff] %v3844
      %3877 = vst [vmem:[#allocation2 + $0xd8] sm:$0xff] %v3845
      %3878 = vst [vmem:[#allocation2 + $0xe0] sm:$0xff] %v3846
      %3879 = vst [vmem:[#allocation2 + $0xe8] sm:$0xff] %v3847
      %3880 = vst [vmem:[#allocation2 + $0xf0] sm:$0xff] %v3848
      %3881 = vst [vmem:[#allocation2 + $0xf8] sm:$0xff] %v3849
      %v3882 = vld [vmem:[%s3503] sm:$0xf]
      %v3883 = vld [vmem:[%s3503 + $0x4] sm:$0xf]
      %v3884 = vld [vmem:[%s3503 + $0x8] sm:$0x1]
      %v3885 = vld [vmem:[%s3503 + $0xc] sm:$0xf]
      %v3886 = vld [vmem:[%s3503 + $0x10] sm:$0xf]
      %v3887 = vld [vmem:[%s3503 + $0x14] sm:$0x1]
      %v3888 = vld [vmem:[%s3503 + $0x18] sm:$0xf]
      %v3889 = vld [vmem:[%s3503 + $0x1c] sm:$0xf]
      %v3890 = vld [vmem:[%s3503 + $0x20] sm:$0x1]
      %v3891 = vld [vmem:[%s3503 + $0x24] sm:$0xf]
      %v3892 = vld [vmem:[%s3503 + $0x28] sm:$0xf]
      %v3893 = vld [vmem:[%s3503 + $0x2c] sm:$0x1]
      %v3894 = vld [vmem:[%s3503 + $0x30] sm:$0xf]
      %v3895 = vld [vmem:[%s3503 + $0x34] sm:$0xf]
      %v3896 = vld [vmem:[%s3503 + $0x38] sm:$0x1]
      %v3897 = vld [vmem:[%s3503 + $0x3c] sm:$0xf]
      %v3898 = vld [vmem:[%s3503 + $0x40] sm:$0xf]
      %v3899 = vld [vmem:[%s3503 + $0x44] sm:$0x1]
      %v3900 = vld [vmem:[%s3503 + $0x48] sm:$0xf]
      %v3901 = vld [vmem:[%s3503 + $0x4c] sm:$0xf]
      %v3902 = vld [vmem:[%s3503 + $0x50] sm:$0x1]
      %v3903 = vld [vmem:[%s3503 + $0x54] sm:$0xf]
      %v3904 = vld [vmem:[%s3503 + $0x58] sm:$0xf]
      %v3905 = vld [vmem:[%s3503 + $0x5c] sm:$0x1]
      %v3906 = vld [vmem:[%s3503 + $0x60] sm:$0xf]
      %v3907 = vld [vmem:[%s3503 + $0x64] sm:$0xf]
      %v3908 = vld [vmem:[%s3503 + $0x68] sm:$0x1]
      %v3909 = vld [vmem:[%s3503 + $0x6c] sm:$0xf]
      %v3910 = vld [vmem:[%s3503 + $0x70] sm:$0xf]
      %v3911 = vld [vmem:[%s3503 + $0x74] sm:$0x1]
      %v3912 = vld [vmem:[%s3503 + $0x78] sm:$0xf]
      %v3913 = vld [vmem:[%s3503 + $0x7c] sm:$0xf]
      %v3914 = vld [vmem:[%s3503 + $0x80] sm:$0x1]
      %v3915 = vld [vmem:[%s3503 + $0x84] sm:$0xf]
      %v3916 = vld [vmem:[%s3503 + $0x88] sm:$0xf]
      %v3917 = vld [vmem:[%s3503 + $0x8c] sm:$0x1]
      %v3918 = vld [vmem:[%s3503 + $0x90] sm:$0xf]
      %v3919 = vld [vmem:[%s3503 + $0x94] sm:$0xf]
      %v3920 = vld [vmem:[%s3503 + $0x98] sm:$0x1]
      %v3921 = vld [vmem:[%s3503 + $0x9c] sm:$0xf]
      %v3922 = vld [vmem:[%s3503 + $0xa0] sm:$0xf]
      %v3923 = vld [vmem:[%s3503 + $0xa4] sm:$0x1]
      %v3924 = vld [vmem:[%s3503 + $0xa8] sm:$0xf]
      %v3925 = vld [vmem:[%s3503 + $0xac] sm:$0xf]
      %v3926 = vld [vmem:[%s3503 + $0xb0] sm:$0x1]
      %v3927 = vld [vmem:[%s3503 + $0xb4] sm:$0xf]
      %v3928 = vld [vmem:[%s3503 + $0xb8] sm:$0xf]
      %v3929 = vld [vmem:[%s3503 + $0xbc] sm:$0x1]
      %v3931 = vshrl.u32 %v3882, 16
      %v3933 = vrot.slane %v3931, 4
      %v3934 = vshll.u32 %v3882, 16
      %v3936 = vrot.slane %v3934, 5
      %v3937 = vor.u32 %v3933, %v3936
      %v3938 = vrot.slane %v3937, 4
      %v3940 = vshll.u32 %v3883, 16
      %v3942 = vrot.slane %v3940, 5
      %v3943 = vsel %vm632, %v3938, %v3942
      %v3944 = vshrl.u32 %v3883, 16
      %v3946 = vrot.slane %v3944, 4
      %v3947 = vor.u32 %v3946, %v3942
      %v3948 = vrot.slane %v3947, 4
      %v3950 = vshll.u32 %v3884, 16
      %v3952 = vrot.slane %v3950, 5
      %v3953 = vsel %vm632, %v3948, %v3952
      %v3955 = vshrl.u32 %v3885, 16
      %v3957 = vrot.slane %v3955, 4
      %v3958 = vshll.u32 %v3885, 16
      %v3960 = vrot.slane %v3958, 5
      %v3961 = vor.u32 %v3957, %v3960
      %v3962 = vrot.slane %v3961, 4
      %v3964 = vshll.u32 %v3886, 16
      %v3966 = vrot.slane %v3964, 5
      %v3967 = vsel %vm632, %v3962, %v3966
      %v3968 = vshrl.u32 %v3886, 16
      %v3970 = vrot.slane %v3968, 4
      %v3971 = vor.u32 %v3970, %v3966
      %v3972 = vrot.slane %v3971, 4
      %v3974 = vshll.u32 %v3887, 16
      %v3976 = vrot.slane %v3974, 5
      %v3977 = vsel %vm632, %v3972, %v3976
      %v3979 = vshrl.u32 %v3888, 16
      %v3981 = vrot.slane %v3979, 4
      %v3982 = vshll.u32 %v3888, 16
      %v3984 = vrot.slane %v3982, 5
      %v3985 = vor.u32 %v3981, %v3984
      %v3986 = vrot.slane %v3985, 4
      %v3988 = vshll.u32 %v3889, 16
      %v3990 = vrot.slane %v3988, 5
      %v3991 = vsel %vm632, %v3986, %v3990
      %v3992 = vshrl.u32 %v3889, 16
      %v3994 = vrot.slane %v3992, 4
      %v3995 = vor.u32 %v3994, %v3990
      %v3996 = vrot.slane %v3995, 4
      %v3998 = vshll.u32 %v3890, 16
      %v4000 = vrot.slane %v3998, 5
      %v4001 = vsel %vm632, %v3996, %v4000
      %v4003 = vshrl.u32 %v3891, 16
      %v4005 = vrot.slane %v4003, 4
      %v4006 = vshll.u32 %v3891, 16
      %v4008 = vrot.slane %v4006, 5
      %v4009 = vor.u32 %v4005, %v4008
      %v4010 = vrot.slane %v4009, 4
      %v4012 = vshll.u32 %v3892, 16
      %v4014 = vrot.slane %v4012, 5
      %v4015 = vsel %vm632, %v4010, %v4014
      %v4016 = vshrl.u32 %v3892, 16
      %v4018 = vrot.slane %v4016, 4
      %v4019 = vor.u32 %v4018, %v4014
      %v4020 = vrot.slane %v4019, 4
      %v4022 = vshll.u32 %v3893, 16
      %v4024 = vrot.slane %v4022, 5
      %v4025 = vsel %vm632, %v4020, %v4024
      %v4027 = vshrl.u32 %v3894, 16
      %v4029 = vrot.slane %v4027, 4
      %v4030 = vshll.u32 %v3894, 16
      %v4032 = vrot.slane %v4030, 5
      %v4033 = vor.u32 %v4029, %v4032
      %v4034 = vrot.slane %v4033, 4
      %v4036 = vshll.u32 %v3895, 16
      %v4038 = vrot.slane %v4036, 5
      %v4039 = vsel %vm632, %v4034, %v4038
      %v4040 = vshrl.u32 %v3895, 16
      %v4042 = vrot.slane %v4040, 4
      %v4043 = vor.u32 %v4042, %v4038
      %v4044 = vrot.slane %v4043, 4
      %v4046 = vshll.u32 %v3896, 16
      %v4048 = vrot.slane %v4046, 5
      %v4049 = vsel %vm632, %v4044, %v4048
      %v4051 = vshrl.u32 %v3897, 16
      %v4053 = vrot.slane %v4051, 4
      %v4054 = vshll.u32 %v3897, 16
      %v4056 = vrot.slane %v4054, 5
      %v4057 = vor.u32 %v4053, %v4056
      %v4058 = vrot.slane %v4057, 4
      %v4060 = vshll.u32 %v3898, 16
      %v4062 = vrot.slane %v4060, 5
      %v4063 = vsel %vm632, %v4058, %v4062
      %v4064 = vshrl.u32 %v3898, 16
      %v4066 = vrot.slane %v4064, 4
      %v4067 = vor.u32 %v4066, %v4062
      %v4068 = vrot.slane %v4067, 4
      %v4070 = vshll.u32 %v3899, 16
      %v4072 = vrot.slane %v4070, 5
      %v4073 = vsel %vm632, %v4068, %v4072
      %v4075 = vshrl.u32 %v3900, 16
      %v4077 = vrot.slane %v4075, 4
      %v4078 = vshll.u32 %v3900, 16
      %v4080 = vrot.slane %v4078, 5
      %v4081 = vor.u32 %v4077, %v4080
      %v4082 = vrot.slane %v4081, 4
      %v4084 = vshll.u32 %v3901, 16
      %v4086 = vrot.slane %v4084, 5
      %v4087 = vsel %vm632, %v4082, %v4086
      %v4088 = vshrl.u32 %v3901, 16
      %v4090 = vrot.slane %v4088, 4
      %v4091 = vor.u32 %v4090, %v4086
      %v4092 = vrot.slane %v4091, 4
      %v4094 = vshll.u32 %v3902, 16
      %v4096 = vrot.slane %v4094, 5
      %v4097 = vsel %vm632, %v4092, %v4096
      %v4099 = vshrl.u32 %v3903, 16
      %v4101 = vrot.slane %v4099, 4
      %v4102 = vshll.u32 %v3903, 16
      %v4104 = vrot.slane %v4102, 5
      %v4105 = vor.u32 %v4101, %v4104
      %v4106 = vrot.slane %v4105, 4
      %v4108 = vshll.u32 %v3904, 16
      %v4110 = vrot.slane %v4108, 5
      %v4111 = vsel %vm632, %v4106, %v4110
      %v4112 = vshrl.u32 %v3904, 16
      %v4114 = vrot.slane %v4112, 4
      %v4115 = vor.u32 %v4114, %v4110
      %v4116 = vrot.slane %v4115, 4
      %v4118 = vshll.u32 %v3905, 16
      %v4120 = vrot.slane %v4118, 5
      %v4121 = vsel %vm632, %v4116, %v4120
      %v4123 = vshrl.u32 %v3906, 16
      %v4125 = vrot.slane %v4123, 4
      %v4126 = vshll.u32 %v3906, 16
      %v4128 = vrot.slane %v4126, 5
      %v4129 = vor.u32 %v4125, %v4128
      %v4130 = vrot.slane %v4129, 4
      %v4132 = vshll.u32 %v3907, 16
      %v4134 = vrot.slane %v4132, 5
      %v4135 = vsel %vm632, %v4130, %v4134
      %v4136 = vshrl.u32 %v3907, 16
      %v4138 = vrot.slane %v4136, 4
      %v4139 = vor.u32 %v4138, %v4134
      %v4140 = vrot.slane %v4139, 4
      %v4142 = vshll.u32 %v3908, 16
      %v4144 = vrot.slane %v4142, 5
      %v4145 = vsel %vm632, %v4140, %v4144
      %v4147 = vshrl.u32 %v3909, 16
      %v4149 = vrot.slane %v4147, 4
      %v4150 = vshll.u32 %v3909, 16
      %v4152 = vrot.slane %v4150, 5
      %v4153 = vor.u32 %v4149, %v4152
      %v4154 = vrot.slane %v4153, 4
      %v4156 = vshll.u32 %v3910, 16
      %v4158 = vrot.slane %v4156, 5
      %v4159 = vsel %vm632, %v4154, %v4158
      %v4160 = vshrl.u32 %v3910, 16
      %v4162 = vrot.slane %v4160, 4
      %v4163 = vor.u32 %v4162, %v4158
      %v4164 = vrot.slane %v4163, 4
      %v4166 = vshll.u32 %v3911, 16
      %v4168 = vrot.slane %v4166, 5
      %v4169 = vsel %vm632, %v4164, %v4168
      %v4171 = vshrl.u32 %v3912, 16
      %v4173 = vrot.slane %v4171, 4
      %v4174 = vshll.u32 %v3912, 16
      %v4176 = vrot.slane %v4174, 5
      %v4177 = vor.u32 %v4173, %v4176
      %v4178 = vrot.slane %v4177, 4
      %v4180 = vshll.u32 %v3913, 16
      %v4182 = vrot.slane %v4180, 5
      %v4183 = vsel %vm632, %v4178, %v4182
      %v4184 = vshrl.u32 %v3913, 16
      %v4186 = vrot.slane %v4184, 4
      %v4187 = vor.u32 %v4186, %v4182
      %v4188 = vrot.slane %v4187, 4
      %v4190 = vshll.u32 %v3914, 16
      %v4192 = vrot.slane %v4190, 5
      %v4193 = vsel %vm632, %v4188, %v4192
      %v4195 = vshrl.u32 %v3915, 16
      %v4197 = vrot.slane %v4195, 4
      %v4198 = vshll.u32 %v3915, 16
      %v4200 = vrot.slane %v4198, 5
      %v4201 = vor.u32 %v4197, %v4200
      %v4202 = vrot.slane %v4201, 4
      %v4204 = vshll.u32 %v3916, 16
      %v4206 = vrot.slane %v4204, 5
      %v4207 = vsel %vm632, %v4202, %v4206
      %v4208 = vshrl.u32 %v3916, 16
      %v4210 = vrot.slane %v4208, 4
      %v4211 = vor.u32 %v4210, %v4206
      %v4212 = vrot.slane %v4211, 4
      %v4214 = vshll.u32 %v3917, 16
      %v4216 = vrot.slane %v4214, 5
      %v4217 = vsel %vm632, %v4212, %v4216
      %v4219 = vshrl.u32 %v3918, 16
      %v4221 = vrot.slane %v4219, 4
      %v4222 = vshll.u32 %v3918, 16
      %v4224 = vrot.slane %v4222, 5
      %v4225 = vor.u32 %v4221, %v4224
      %v4226 = vrot.slane %v4225, 4
      %v4228 = vshll.u32 %v3919, 16
      %v4230 = vrot.slane %v4228, 5
      %v4231 = vsel %vm632, %v4226, %v4230
      %v4232 = vshrl.u32 %v3919, 16
      %v4234 = vrot.slane %v4232, 4
      %v4235 = vor.u32 %v4234, %v4230
      %v4236 = vrot.slane %v4235, 4
      %v4238 = vshll.u32 %v3920, 16
      %v4240 = vrot.slane %v4238, 5
      %v4241 = vsel %vm632, %v4236, %v4240
      %v4243 = vshrl.u32 %v3921, 16
      %v4245 = vrot.slane %v4243, 4
      %v4246 = vshll.u32 %v3921, 16
      %v4248 = vrot.slane %v4246, 5
      %v4249 = vor.u32 %v4245, %v4248
      %v4250 = vrot.slane %v4249, 4
      %v4252 = vshll.u32 %v3922, 16
      %v4254 = vrot.slane %v4252, 5
      %v4255 = vsel %vm632, %v4250, %v4254
      %v4256 = vshrl.u32 %v3922, 16
      %v4258 = vrot.slane %v4256, 4
      %v4259 = vor.u32 %v4258, %v4254
      %v4260 = vrot.slane %v4259, 4
      %v4262 = vshll.u32 %v3923, 16
      %v4264 = vrot.slane %v4262, 5
      %v4265 = vsel %vm632, %v4260, %v4264
      %v4267 = vshrl.u32 %v3924, 16
      %v4269 = vrot.slane %v4267, 4
      %v4270 = vshll.u32 %v3924, 16
      %v4272 = vrot.slane %v4270, 5
      %v4273 = vor.u32 %v4269, %v4272
      %v4274 = vrot.slane %v4273, 4
      %v4276 = vshll.u32 %v3925, 16
      %v4278 = vrot.slane %v4276, 5
      %v4279 = vsel %vm632, %v4274, %v4278
      %v4280 = vshrl.u32 %v3925, 16
      %v4282 = vrot.slane %v4280, 4
      %v4283 = vor.u32 %v4282, %v4278
      %v4284 = vrot.slane %v4283, 4
      %v4286 = vshll.u32 %v3926, 16
      %v4288 = vrot.slane %v4286, 5
      %v4289 = vsel %vm632, %v4284, %v4288
      %v4291 = vshrl.u32 %v3927, 16
      %v4293 = vrot.slane %v4291, 4
      %v4294 = vshll.u32 %v3927, 16
      %v4296 = vrot.slane %v4294, 5
      %v4297 = vor.u32 %v4293, %v4296
      %v4298 = vrot.slane %v4297, 4
      %v4300 = vshll.u32 %v3928, 16
      %v4302 = vrot.slane %v4300, 5
      %v4303 = vsel %vm632, %v4298, %v4302
      %v4304 = vshrl.u32 %v3928, 16
      %v4306 = vrot.slane %v4304, 4
      %v4307 = vor.u32 %v4306, %v4302
      %v4308 = vrot.slane %v4307, 4
      %v4310 = vshll.u32 %v3929, 16
      %v4312 = vrot.slane %v4310, 5
      %v4313 = vsel %vm632, %v4308, %v4312
      %v4314 = vld [vmem:[#allocation2] sm:$0xff]
      %v4315 = vld [vmem:[#allocation2 + $0x8] sm:$0xff]
      %v4316 = vld [vmem:[#allocation2 + $0x10] sm:$0xff]
      %v4317 = vld [vmem:[#allocation2 + $0x18] sm:$0xff]
      %v4318 = vld [vmem:[#allocation2 + $0x20] sm:$0xff]
      %v4319 = vld [vmem:[#allocation2 + $0x28] sm:$0xff]
      %v4320 = vld [vmem:[#allocation2 + $0x30] sm:$0xff]
      %v4321 = vld [vmem:[#allocation2 + $0x38] sm:$0xff]
      %v4322 = vld [vmem:[#allocation2 + $0x40] sm:$0xff]
      %v4323 = vld [vmem:[#allocation2 + $0x48] sm:$0xff]
      %v4324 = vld [vmem:[#allocation2 + $0x50] sm:$0xff]
      %v4325 = vld [vmem:[#allocation2 + $0x58] sm:$0xff]
      %v4326 = vld [vmem:[#allocation2 + $0x60] sm:$0xff]
      %v4327 = vld [vmem:[#allocation2 + $0x68] sm:$0xff]
      %v4328 = vld [vmem:[#allocation2 + $0x70] sm:$0xff]
      %v4329 = vld [vmem:[#allocation2 + $0x78] sm:$0xff]
      %v4330 = vld [vmem:[#allocation2 + $0x80] sm:$0xff]
      %v4331 = vld [vmem:[#allocation2 + $0x88] sm:$0xff]
      %v4332 = vld [vmem:[#allocation2 + $0x90] sm:$0xff]
      %v4333 = vld [vmem:[#allocation2 + $0x98] sm:$0xff]
      %v4334 = vld [vmem:[#allocation2 + $0xa0] sm:$0xff]
      %v4335 = vld [vmem:[#allocation2 + $0xa8] sm:$0xff]
      %v4336 = vld [vmem:[#allocation2 + $0xb0] sm:$0xff]
      %v4337 = vld [vmem:[#allocation2 + $0xb8] sm:$0xff]
      %v4338 = vld [vmem:[#allocation2 + $0xc0] sm:$0xff]
      %v4339 = vld [vmem:[#allocation2 + $0xc8] sm:$0xff]
      %v4340 = vld [vmem:[#allocation2 + $0xd0] sm:$0xff]
      %v4341 = vld [vmem:[#allocation2 + $0xd8] sm:$0xff]
      %v4342 = vld [vmem:[#allocation2 + $0xe0] sm:$0xff]
      %v4343 = vld [vmem:[#allocation2 + $0xe8] sm:$0xff]
      %v4344 = vld [vmem:[#allocation2 + $0xf0] sm:$0xff]
      %v4345 = vld [vmem:[#allocation2 + $0xf8] sm:$0xff]
      %s4346 = scalar_lea.vmem %s1, 224
      %v4347 = vld [vmem:[%s4346] sm:$0xf]
      %v4348 = vld [vmem:[%s4346 + $0x4] sm:$0xf]
      %v4349 = vld [vmem:[%s4346 + $0x8] sm:$0xf]
      %v4350 = vld [vmem:[%s4346 + $0xc] sm:$0xf]
      %v4351 = vld [vmem:[%s4346 + $0x10] sm:$0xf]
      %v4352 = vld [vmem:[%s4346 + $0x14] sm:$0xf]
      %v4353 = vld [vmem:[%s4346 + $0x18] sm:$0xf]
      %v4354 = vld [vmem:[%s4346 + $0x1c] sm:$0xf]
      %v4355 = vunpack.c.l.b16 %v3943
      %v4356 = vunpack.c.l.b16 %v3953
      %v4357 = vunpack.c.l.b16 %v3967
      %v4358 = vunpack.c.l.b16 %v3977
      %v4359 = vunpack.c.l.b16 %v3991
      %v4360 = vunpack.c.l.b16 %v4001
      %v4361 = vunpack.c.l.b16 %v4015
      %v4362 = vunpack.c.l.b16 %v4025
      %v4363 = vunpack.c.l.b16 %v4039
      %v4364 = vunpack.c.l.b16 %v4049
      %v4365 = vunpack.c.l.b16 %v4063
      %v4366 = vunpack.c.l.b16 %v4073
      %v4367 = vunpack.c.l.b16 %v4087
      %v4368 = vunpack.c.l.b16 %v4097
      %v4369 = vunpack.c.l.b16 %v4111
      %v4370 = vunpack.c.l.b16 %v4121
      %v4371 = vunpack.c.l.b16 %v4135
      %v4372 = vunpack.c.l.b16 %v4145
      %v4373 = vunpack.c.l.b16 %v4159
      %v4374 = vunpack.c.l.b16 %v4169
      %v4375 = vunpack.c.l.b16 %v4183
      %v4376 = vunpack.c.l.b16 %v4193
      %v4377 = vunpack.c.l.b16 %v4207
      %v4378 = vunpack.c.l.b16 %v4217
      %v4379 = vunpack.c.l.b16 %v4231
      %v4380 = vunpack.c.l.b16 %v4241
      %v4381 = vunpack.c.l.b16 %v4255
      %v4382 = vunpack.c.l.b16 %v4265
      %v4383 = vunpack.c.l.b16 %v4279
      %v4384 = vunpack.c.l.b16 %v4289
      %v4385 = vunpack.c.l.b16 %v4303
      %v4386 = vunpack.c.l.b16 %v4313
      %v4387 = vpack.c.b16 %v4356, %v4355
      %v4388 = vpack.c.b16 %v4358, %v4357
      %v4389 = vpack.c.b16 %v4360, %v4359
      %v4390 = vpack.c.b16 %v4362, %v4361
      %v4391 = vpack.c.b16 %v4364, %v4363
      %v4392 = vpack.c.b16 %v4366, %v4365
      %v4393 = vpack.c.b16 %v4368, %v4367
      %v4394 = vpack.c.b16 %v4370, %v4369
      %v4395 = vpack.c.b16 %v4372, %v4371
      %v4396 = vpack.c.b16 %v4374, %v4373
      %v4397 = vpack.c.b16 %v4376, %v4375
      %v4398 = vpack.c.b16 %v4378, %v4377
      %v4399 = vpack.c.b16 %v4380, %v4379
      %v4400 = vpack.c.b16 %v4382, %v4381
      %v4401 = vpack.c.b16 %v4384, %v4383
      %v4402 = vpack.c.b16 %v4386, %v4385
      %v4411 = vunpack.c.l.b16 %v4347
      %v4412 = vunpack.c.l.b16 %v4348
      %v4413 = vunpack.c.l.b16 %v4349
      %v4414 = vunpack.c.l.b16 %v4350
      %v4415 = vunpack.c.l.b16 %v4351
      %v4416 = vunpack.c.l.b16 %v4352
      %v4417 = vunpack.c.l.b16 %v4353
      %v4418 = vunpack.c.l.b16 %v4354
      %v4419 = vpack.c.b16 %v4412, %v4411
      %v4420 = vpack.c.b16 %v4414, %v4413
      %v4421 = vpack.c.b16 %v4416, %v4415
      %v4422 = vpack.c.b16 %v4418, %v4417
      %v4428 = vsel %vm380, %v4387, 0
      %v4431 = vsel %vm380, %v4388, 0
      %v4434 = vsel %vm380, %v4389, 0
      %v4437 = vsel %vm380, %v4390, 0
      %v4440 = vsel %vm380, %v4391, 0
      %v4443 = vsel %vm380, %v4392, 0
      %v4446 = vsel %vm380, %v4393, 0
      %v4449 = vsel %vm380, %v4394, 0
      %v4452 = vsel %vm380, %v4395, 0
      %v4455 = vsel %vm380, %v4396, 0
      %v4458 = vsel %vm380, %v4397, 0
      %v4461 = vsel %vm380, %v4398, 0
      %v4464 = vsel %vm380, %v4399, 0
      %v4467 = vsel %vm380, %v4400, 0
      %v4470 = vsel %vm380, %v4401, 0
      %v4473 = vsel %vm380, %v4402, 0
      %4475 = vmatpush.bf16.msra.mxu0 0
      %4476 = vmatpush.bf16.msra.mxu0 0
      %4477 = vmatpush.bf16.msra.mxu0 0
      %4478 = vmatpush.bf16.msra.mxu0 0
      %4479 = vmatpush.bf16.msra.mxu0 %v4422
      %4480 = vmatpush.bf16.msra.mxu0 %v4421
      %4481 = vmatpush.bf16.msra.mxu0 %v4420
      %4482 = vmatpush.bf16.msra.mxu0 %v4419
      %4483 = vmatmul.bf16.gmra.mxu0 %v4428
      %v4484 = vpop.f32.mrf.mxu0
      %v4485 = vadd.f32 0.0, %v4484
      %v4486 = vpop.f32.mrf.mxu0
      %v4487 = vadd.f32 0.0, %v4486
      %4488 = vmatmul.bf16.gmra.mxu0 %v4431
      %v4489 = vpop.f32.mrf.mxu0
      %v4490 = vadd.f32 0.0, %v4489
      %v4491 = vpop.f32.mrf.mxu0
      %v4492 = vadd.f32 0.0, %v4491
      %4493 = vmatmul.bf16.gmra.mxu0 %v4434
      %v4494 = vpop.f32.mrf.mxu0
      %v4495 = vadd.f32 0.0, %v4494
      %v4496 = vpop.f32.mrf.mxu0
      %v4497 = vadd.f32 0.0, %v4496
      %4498 = vmatmul.bf16.gmra.mxu0 %v4437
      %v4499 = vpop.f32.mrf.mxu0
      %v4500 = vadd.f32 0.0, %v4499
      %v4501 = vpop.f32.mrf.mxu0
      %v4502 = vadd.f32 0.0, %v4501
      %4503 = vmatmul.bf16.gmra.mxu0 %v4440
      %v4504 = vpop.f32.mrf.mxu0
      %v4505 = vadd.f32 0.0, %v4504
      %v4506 = vpop.f32.mrf.mxu0
      %v4507 = vadd.f32 0.0, %v4506
      %4508 = vmatmul.bf16.gmra.mxu0 %v4443
      %v4509 = vpop.f32.mrf.mxu0
      %v4510 = vadd.f32 0.0, %v4509
      %v4511 = vpop.f32.mrf.mxu0
      %v4512 = vadd.f32 0.0, %v4511
      %4513 = vmatmul.bf16.gmra.mxu0 %v4446
      %v4514 = vpop.f32.mrf.mxu0
      %v4515 = vadd.f32 0.0, %v4514
      %v4516 = vpop.f32.mrf.mxu0
      %v4517 = vadd.f32 0.0, %v4516
      %4518 = vmatmul.bf16.gmra.mxu0 %v4449
      %v4519 = vpop.f32.mrf.mxu0
      %v4520 = vadd.f32 0.0, %v4519
      %v4521 = vpop.f32.mrf.mxu0
      %v4522 = vadd.f32 0.0, %v4521
      %4523 = vmatmul.bf16.gmra.mxu0 %v4452
      %v4524 = vpop.f32.mrf.mxu0
      %v4525 = vadd.f32 0.0, %v4524
      %v4526 = vpop.f32.mrf.mxu0
      %v4527 = vadd.f32 0.0, %v4526
      %4528 = vmatmul.bf16.gmra.mxu0 %v4455
      %v4529 = vpop.f32.mrf.mxu0
      %v4530 = vadd.f32 0.0, %v4529
      %v4531 = vpop.f32.mrf.mxu0
      %v4532 = vadd.f32 0.0, %v4531
      %4533 = vmatmul.bf16.gmra.mxu0 %v4458
      %v4534 = vpop.f32.mrf.mxu0
      %v4535 = vadd.f32 0.0, %v4534
      %v4536 = vpop.f32.mrf.mxu0
      %v4537 = vadd.f32 0.0, %v4536
      %4538 = vmatmul.bf16.gmra.mxu0 %v4461
      %v4539 = vpop.f32.mrf.mxu0
      %v4540 = vadd.f32 0.0, %v4539
      %v4541 = vpop.f32.mrf.mxu0
      %v4542 = vadd.f32 0.0, %v4541
      %4543 = vmatmul.bf16.gmra.mxu0 %v4464
      %v4544 = vpop.f32.mrf.mxu0
      %v4545 = vadd.f32 0.0, %v4544
      %v4546 = vpop.f32.mrf.mxu0
      %v4547 = vadd.f32 0.0, %v4546
      %4548 = vmatmul.bf16.gmra.mxu0 %v4467
      %v4549 = vpop.f32.mrf.mxu0
      %v4550 = vadd.f32 0.0, %v4549
      %v4551 = vpop.f32.mrf.mxu0
      %v4552 = vadd.f32 0.0, %v4551
      %4553 = vmatmul.bf16.gmra.mxu0 %v4470
      %v4554 = vpop.f32.mrf.mxu0
      %v4555 = vadd.f32 0.0, %v4554
      %v4556 = vpop.f32.mrf.mxu0
      %v4557 = vadd.f32 0.0, %v4556
      %4558 = vmatmul.bf16.gmra.mxu0 %v4473
      %v4559 = vpop.f32.mrf.mxu0
      %v4560 = vadd.f32 0.0, %v4559
      %v4561 = vpop.f32.mrf.mxu0
      %v4562 = vadd.f32 0.0, %v4561
      %4563 = vdwg.mxu0
      %v4564 = vadd.f32 %v4314, %v4485
      %v4565 = vadd.f32 %v4315, %v4487
      %v4566 = vadd.f32 %v4316, %v4490
      %v4567 = vadd.f32 %v4317, %v4492
      %v4568 = vadd.f32 %v4318, %v4495
      %v4569 = vadd.f32 %v4319, %v4497
      %v4570 = vadd.f32 %v4320, %v4500
      %v4571 = vadd.f32 %v4321, %v4502
      %v4572 = vadd.f32 %v4322, %v4505
      %v4573 = vadd.f32 %v4323, %v4507
      %v4574 = vadd.f32 %v4324, %v4510
      %v4575 = vadd.f32 %v4325, %v4512
      %v4576 = vadd.f32 %v4326, %v4515
      %v4577 = vadd.f32 %v4327, %v4517
      %v4578 = vadd.f32 %v4328, %v4520
      %v4579 = vadd.f32 %v4329, %v4522
      %v4580 = vadd.f32 %v4330, %v4525
      %v4581 = vadd.f32 %v4331, %v4527
      %v4582 = vadd.f32 %v4332, %v4530
      %v4583 = vadd.f32 %v4333, %v4532
      %v4584 = vadd.f32 %v4334, %v4535
      %v4585 = vadd.f32 %v4335, %v4537
      %v4586 = vadd.f32 %v4336, %v4540
      %v4587 = vadd.f32 %v4337, %v4542
      %v4588 = vadd.f32 %v4338, %v4545
      %v4589 = vadd.f32 %v4339, %v4547
      %v4590 = vadd.f32 %v4340, %v4550
      %v4591 = vadd.f32 %v4341, %v4552
      %v4592 = vadd.f32 %v4342, %v4555
      %v4593 = vadd.f32 %v4343, %v4557
      %v4594 = vadd.f32 %v4344, %v4560
      %v4595 = vadd.f32 %v4345, %v4562
      %4596 = vst [vmem:[#allocation2] sm:$0xff] %v4564
      %4597 = vst [vmem:[#allocation2 + $0x8] sm:$0xff] %v4565
      %4598 = vst [vmem:[#allocation2 + $0x10] sm:$0xff] %v4566
      %4599 = vst [vmem:[#allocation2 + $0x18] sm:$0xff] %v4567
      %4600 = vst [vmem:[#allocation2 + $0x20] sm:$0xff] %v4568
      %4601 = vst [vmem:[#allocation2 + $0x28] sm:$0xff] %v4569
      %4602 = vst [vmem:[#allocation2 + $0x30] sm:$0xff] %v4570
      %4603 = vst [vmem:[#allocation2 + $0x38] sm:$0xff] %v4571
      %4604 = vst [vmem:[#allocation2 + $0x40] sm:$0xff] %v4572
      %4605 = vst [vmem:[#allocation2 + $0x48] sm:$0xff] %v4573
      %4606 = vst [vmem:[#allocation2 + $0x50] sm:$0xff] %v4574
      %4607 = vst [vmem:[#allocation2 + $0x58] sm:$0xff] %v4575
      %4608 = vst [vmem:[#allocation2 + $0x60] sm:$0xff] %v4576
      %4609 = vst [vmem:[#allocation2 + $0x68] sm:$0xff] %v4577
      %4610 = vst [vmem:[#allocation2 + $0x70] sm:$0xff] %v4578
      %4611 = vst [vmem:[#allocation2 + $0x78] sm:$0xff] %v4579
      %4612 = vst [vmem:[#allocation2 + $0x80] sm:$0xff] %v4580
      %4613 = vst [vmem:[#allocation2 + $0x88] sm:$0xff] %v4581
      %4614 = vst [vmem:[#allocation2 + $0x90] sm:$0xff] %v4582
      %4615 = vst [vmem:[#allocation2 + $0x98] sm:$0xff] %v4583
      %4616 = vst [vmem:[#allocation2 + $0xa0] sm:$0xff] %v4584
      %4617 = vst [vmem:[#allocation2 + $0xa8] sm:$0xff] %v4585
      %4618 = vst [vmem:[#allocation2 + $0xb0] sm:$0xff] %v4586
      %4619 = vst [vmem:[#allocation2 + $0xb8] sm:$0xff] %v4587
      %4620 = vst [vmem:[#allocation2 + $0xc0] sm:$0xff] %v4588
      %4621 = vst [vmem:[#allocation2 + $0xc8] sm:$0xff] %v4589
      %4622 = vst [vmem:[#allocation2 + $0xd0] sm:$0xff] %v4590
      %4623 = vst [vmem:[#allocation2 + $0xd8] sm:$0xff] %v4591
      %4624 = vst [vmem:[#allocation2 + $0xe0] sm:$0xff] %v4592
      %4625 = vst [vmem:[#allocation2 + $0xe8] sm:$0xff] %v4593
      %4626 = vst [vmem:[#allocation2 + $0xf0] sm:$0xff] %v4594
      %4627 = vst [vmem:[#allocation2 + $0xf8] sm:$0xff] %v4595
      %v4628 = vld [vmem:[%s3503] sm:$0xe]
      %v4629 = vld [vmem:[%s3503 + $0x4] sm:$0xf]
      %v4630 = vld [vmem:[%s3503 + $0x8] sm:$0x1]
      %v4631 = vld [vmem:[%s3503 + $0xc] sm:$0xe]
      %v4632 = vld [vmem:[%s3503 + $0x10] sm:$0xf]
      %v4633 = vld [vmem:[%s3503 + $0x14] sm:$0x1]
      %v4634 = vld [vmem:[%s3503 + $0x18] sm:$0xe]
      %v4635 = vld [vmem:[%s3503 + $0x1c] sm:$0xf]
      %v4636 = vld [vmem:[%s3503 + $0x20] sm:$0x1]
      %v4637 = vld [vmem:[%s3503 + $0x24] sm:$0xe]
      %v4638 = vld [vmem:[%s3503 + $0x28] sm:$0xf]
      %v4639 = vld [vmem:[%s3503 + $0x2c] sm:$0x1]
      %v4640 = vld [vmem:[%s3503 + $0x30] sm:$0xe]
      %v4641 = vld [vmem:[%s3503 + $0x34] sm:$0xf]
      %v4642 = vld [vmem:[%s3503 + $0x38] sm:$0x1]
      %v4643 = vld [vmem:[%s3503 + $0x3c] sm:$0xe]
      %v4644 = vld [vmem:[%s3503 + $0x40] sm:$0xf]
      %v4645 = vld [vmem:[%s3503 + $0x44] sm:$0x1]
      %v4646 = vld [vmem:[%s3503 + $0x48] sm:$0xe]
      %v4647 = vld [vmem:[%s3503 + $0x4c] sm:$0xf]
      %v4648 = vld [vmem:[%s3503 + $0x50] sm:$0x1]
      %v4649 = vld [vmem:[%s3503 + $0x54] sm:$0xe]
      %v4650 = vld [vmem:[%s3503 + $0x58] sm:$0xf]
      %v4651 = vld [vmem:[%s3503 + $0x5c] sm:$0x1]
      %v4652 = vld [vmem:[%s3503 + $0x60] sm:$0xe]
      %v4653 = vld [vmem:[%s3503 + $0x64] sm:$0xf]
      %v4654 = vld [vmem:[%s3503 + $0x68] sm:$0x1]
      %v4655 = vld [vmem:[%s3503 + $0x6c] sm:$0xe]
      %v4656 = vld [vmem:[%s3503 + $0x70] sm:$0xf]
      %v4657 = vld [vmem:[%s3503 + $0x74] sm:$0x1]
      %v4658 = vld [vmem:[%s3503 + $0x78] sm:$0xe]
      %v4659 = vld [vmem:[%s3503 + $0x7c] sm:$0xf]
      %v4660 = vld [vmem:[%s3503 + $0x80] sm:$0x1]
      %v4661 = vld [vmem:[%s3503 + $0x84] sm:$0xe]
      %v4662 = vld [vmem:[%s3503 + $0x88] sm:$0xf]
      %v4663 = vld [vmem:[%s3503 + $0x8c] sm:$0x1]
      %v4664 = vld [vmem:[%s3503 + $0x90] sm:$0xe]
      %v4665 = vld [vmem:[%s3503 + $0x94] sm:$0xf]
      %v4666 = vld [vmem:[%s3503 + $0x98] sm:$0x1]
      %v4667 = vld [vmem:[%s3503 + $0x9c] sm:$0xe]
      %v4668 = vld [vmem:[%s3503 + $0xa0] sm:$0xf]
      %v4669 = vld [vmem:[%s3503 + $0xa4] sm:$0x1]
      %v4670 = vld [vmem:[%s3503 + $0xa8] sm:$0xe]
      %v4671 = vld [vmem:[%s3503 + $0xac] sm:$0xf]
      %v4672 = vld [vmem:[%s3503 + $0xb0] sm:$0x1]
      %v4673 = vld [vmem:[%s3503 + $0xb4] sm:$0xe]
      %v4674 = vld [vmem:[%s3503 + $0xb8] sm:$0xf]
      %v4675 = vld [vmem:[%s3503 + $0xbc] sm:$0x1]
      %v4724 = vrot.slane %v4628, 5
      %v4725 = vrot.slane %v4724, 4
      %v4726 = vrot.slane %v4629, 5
      %v4727 = vsel %vm1429, %v4725, %v4726
      %v4728 = vrot.slane %v4726, 4
      %v4729 = vrot.slane %v4630, 5
      %v4730 = vsel %vm1429, %v4728, %v4729
      %v4731 = vrot.slane %v4631, 5
      %v4732 = vrot.slane %v4731, 4
      %v4733 = vrot.slane %v4632, 5
      %v4734 = vsel %vm1429, %v4732, %v4733
      %v4735 = vrot.slane %v4733, 4
      %v4736 = vrot.slane %v4633, 5
      %v4737 = vsel %vm1429, %v4735, %v4736
      %v4738 = vrot.slane %v4634, 5
      %v4739 = vrot.slane %v4738, 4
      %v4740 = vrot.slane %v4635, 5
      %v4741 = vsel %vm1429, %v4739, %v4740
      %v4742 = vrot.slane %v4740, 4
      %v4743 = vrot.slane %v4636, 5
      %v4744 = vsel %vm1429, %v4742, %v4743
      %v4745 = vrot.slane %v4637, 5
      %v4746 = vrot.slane %v4745, 4
      %v4747 = vrot.slane %v4638, 5
      %v4748 = vsel %vm1429, %v4746, %v4747
      %v4749 = vrot.slane %v4747, 4
      %v4750 = vrot.slane %v4639, 5
      %v4751 = vsel %vm1429, %v4749, %v4750
      %v4752 = vrot.slane %v4640, 5
      %v4753 = vrot.slane %v4752, 4
      %v4754 = vrot.slane %v4641, 5
      %v4755 = vsel %vm1429, %v4753, %v4754
      %v4756 = vrot.slane %v4754, 4
      %v4757 = vrot.slane %v4642, 5
      %v4758 = vsel %vm1429, %v4756, %v4757
      %v4759 = vrot.slane %v4643, 5
      %v4760 = vrot.slane %v4759, 4
      %v4761 = vrot.slane %v4644, 5
      %v4762 = vsel %vm1429, %v4760, %v4761
      %v4763 = vrot.slane %v4761, 4
      %v4764 = vrot.slane %v4645, 5
      %v4765 = vsel %vm1429, %v4763, %v4764
      %v4766 = vrot.slane %v4646, 5
      %v4767 = vrot.slane %v4766, 4
      %v4768 = vrot.slane %v4647, 5
      %v4769 = vsel %vm1429, %v4767, %v4768
      %v4770 = vrot.slane %v4768, 4
      %v4771 = vrot.slane %v4648, 5
      %v4772 = vsel %vm1429, %v4770, %v4771
      %v4773 = vrot.slane %v4649, 5
      %v4774 = vrot.slane %v4773, 4
      %v4775 = vrot.slane %v4650, 5
      %v4776 = vsel %vm1429, %v4774, %v4775
      %v4777 = vrot.slane %v4775, 4
      %v4778 = vrot.slane %v4651, 5
      %v4779 = vsel %vm1429, %v4777, %v4778
      %v4780 = vrot.slane %v4652, 5
      %v4781 = vrot.slane %v4780, 4
      %v4782 = vrot.slane %v4653, 5
      %v4783 = vsel %vm1429, %v4781, %v4782
      %v4784 = vrot.slane %v4782, 4
      %v4785 = vrot.slane %v4654, 5
      %v4786 = vsel %vm1429, %v4784, %v4785
      %v4787 = vrot.slane %v4655, 5
      %v4788 = vrot.slane %v4787, 4
      %v4789 = vrot.slane %v4656, 5
      %v4790 = vsel %vm1429, %v4788, %v4789
      %v4791 = vrot.slane %v4789, 4
      %v4792 = vrot.slane %v4657, 5
      %v4793 = vsel %vm1429, %v4791, %v4792
      %v4794 = vrot.slane %v4658, 5
      %v4795 = vrot.slane %v4794, 4
      %v4796 = vrot.slane %v4659, 5
      %v4797 = vsel %vm1429, %v4795, %v4796
      %v4798 = vrot.slane %v4796, 4
      %v4799 = vrot.slane %v4660, 5
      %v4800 = vsel %vm1429, %v4798, %v4799
      %v4801 = vrot.slane %v4661, 5
      %v4802 = vrot.slane %v4801, 4
      %v4803 = vrot.slane %v4662, 5
      %v4804 = vsel %vm1429, %v4802, %v4803
      %v4805 = vrot.slane %v4803, 4
      %v4806 = vrot.slane %v4663, 5
      %v4807 = vsel %vm1429, %v4805, %v4806
      %v4808 = vrot.slane %v4664, 5
      %v4809 = vrot.slane %v4808, 4
      %v4810 = vrot.slane %v4665, 5
      %v4811 = vsel %vm1429, %v4809, %v4810
      %v4812 = vrot.slane %v4810, 4
      %v4813 = vrot.slane %v4666, 5
      %v4814 = vsel %vm1429, %v4812, %v4813
      %v4815 = vrot.slane %v4667, 5
      %v4816 = vrot.slane %v4815, 4
      %v4817 = vrot.slane %v4668, 5
      %v4818 = vsel %vm1429, %v4816, %v4817
      %v4819 = vrot.slane %v4817, 4
      %v4820 = vrot.slane %v4669, 5
      %v4821 = vsel %vm1429, %v4819, %v4820
      %v4822 = vrot.slane %v4670, 5
      %v4823 = vrot.slane %v4822, 4
      %v4824 = vrot.slane %v4671, 5
      %v4825 = vsel %vm1429, %v4823, %v4824
      %v4826 = vrot.slane %v4824, 4
      %v4827 = vrot.slane %v4672, 5
      %v4828 = vsel %vm1429, %v4826, %v4827
      %v4829 = vrot.slane %v4673, 5
      %v4830 = vrot.slane %v4829, 4
      %v4831 = vrot.slane %v4674, 5
      %v4832 = vsel %vm1429, %v4830, %v4831
      %v4833 = vrot.slane %v4831, 4
      %v4834 = vrot.slane %v4675, 5
      %v4835 = vsel %vm1429, %v4833, %v4834
      %v4836 = vld [vmem:[#allocation2] sm:$0xff]
      %v4837 = vld [vmem:[#allocation2 + $0x8] sm:$0xff]
      %v4838 = vld [vmem:[#allocation2 + $0x10] sm:$0xff]
      %v4839 = vld [vmem:[#allocation2 + $0x18] sm:$0xff]
      %v4840 = vld [vmem:[#allocation2 + $0x20] sm:$0xff]
      %v4841 = vld [vmem:[#allocation2 + $0x28] sm:$0xff]
      %v4842 = vld [vmem:[#allocation2 + $0x30] sm:$0xff]
      %v4843 = vld [vmem:[#allocation2 + $0x38] sm:$0xff]
      %v4844 = vld [vmem:[#allocation2 + $0x40] sm:$0xff]
      %v4845 = vld [vmem:[#allocation2 + $0x48] sm:$0xff]
      %v4846 = vld [vmem:[#allocation2 + $0x50] sm:$0xff]
      %v4847 = vld [vmem:[#allocation2 + $0x58] sm:$0xff]
      %v4848 = vld [vmem:[#allocation2 + $0x60] sm:$0xff]
      %v4849 = vld [vmem:[#allocation2 + $0x68] sm:$0xff]
      %v4850 = vld [vmem:[#allocation2 + $0x70] sm:$0xff]
      %v4851 = vld [vmem:[#allocation2 + $0x78] sm:$0xff]
      %v4852 = vld [vmem:[#allocation2 + $0x80] sm:$0xff]
      %v4853 = vld [vmem:[#allocation2 + $0x88] sm:$0xff]
      %v4854 = vld [vmem:[#allocation2 + $0x90] sm:$0xff]
      %v4855 = vld [vmem:[#allocation2 + $0x98] sm:$0xff]
      %v4856 = vld [vmem:[#allocation2 + $0xa0] sm:$0xff]
      %v4857 = vld [vmem:[#allocation2 + $0xa8] sm:$0xff]
      %v4858 = vld [vmem:[#allocation2 + $0xb0] sm:$0xff]
      %v4859 = vld [vmem:[#allocation2 + $0xb8] sm:$0xff]
      %v4860 = vld [vmem:[#allocation2 + $0xc0] sm:$0xff]
      %v4861 = vld [vmem:[#allocation2 + $0xc8] sm:$0xff]
      %v4862 = vld [vmem:[#allocation2 + $0xd0] sm:$0xff]
      %v4863 = vld [vmem:[#allocation2 + $0xd8] sm:$0xff]
      %v4864 = vld [vmem:[#allocation2 + $0xe0] sm:$0xff]
      %v4865 = vld [vmem:[#allocation2 + $0xe8] sm:$0xff]
      %v4866 = vld [vmem:[#allocation2 + $0xf0] sm:$0xff]
      %v4867 = vld [vmem:[#allocation2 + $0xf8] sm:$0xff]
      %s4868 = scalar_lea.vmem %s1, 256
      %v4869 = vld [vmem:[%s4868] sm:$0xf]
      %v4870 = vld [vmem:[%s4868 + $0x4] sm:$0xf]
      %v4871 = vld [vmem:[%s4868 + $0x8] sm:$0xf]
      %v4872 = vld [vmem:[%s4868 + $0xc] sm:$0xf]
      %v4873 = vld [vmem:[%s4868 + $0x10] sm:$0xf]
      %v4874 = vld [vmem:[%s4868 + $0x14] sm:$0xf]
      %v4875 = vld [vmem:[%s4868 + $0x18] sm:$0xf]
      %v4876 = vld [vmem:[%s4868 + $0x1c] sm:$0xf]
      %v4877 = vunpack.c.l.b16 %v4727
      %v4878 = vunpack.c.l.b16 %v4730
      %v4879 = vunpack.c.l.b16 %v4734
      %v4880 = vunpack.c.l.b16 %v4737
      %v4881 = vunpack.c.l.b16 %v4741
      %v4882 = vunpack.c.l.b16 %v4744
      %v4883 = vunpack.c.l.b16 %v4748
      %v4884 = vunpack.c.l.b16 %v4751
      %v4885 = vunpack.c.l.b16 %v4755
      %v4886 = vunpack.c.l.b16 %v4758
      %v4887 = vunpack.c.l.b16 %v4762
      %v4888 = vunpack.c.l.b16 %v4765
      %v4889 = vunpack.c.l.b16 %v4769
      %v4890 = vunpack.c.l.b16 %v4772
      %v4891 = vunpack.c.l.b16 %v4776
      %v4892 = vunpack.c.l.b16 %v4779
      %v4893 = vunpack.c.l.b16 %v4783
      %v4894 = vunpack.c.l.b16 %v4786
      %v4895 = vunpack.c.l.b16 %v4790
      %v4896 = vunpack.c.l.b16 %v4793
      %v4897 = vunpack.c.l.b16 %v4797
      %v4898 = vunpack.c.l.b16 %v4800
      %v4899 = vunpack.c.l.b16 %v4804
      %v4900 = vunpack.c.l.b16 %v4807
      %v4901 = vunpack.c.l.b16 %v4811
      %v4902 = vunpack.c.l.b16 %v4814
      %v4903 = vunpack.c.l.b16 %v4818
      %v4904 = vunpack.c.l.b16 %v4821
      %v4905 = vunpack.c.l.b16 %v4825
      %v4906 = vunpack.c.l.b16 %v4828
      %v4907 = vunpack.c.l.b16 %v4832
      %v4908 = vunpack.c.l.b16 %v4835
      %v4909 = vpack.c.b16 %v4878, %v4877
      %v4910 = vpack.c.b16 %v4880, %v4879
      %v4911 = vpack.c.b16 %v4882, %v4881
      %v4912 = vpack.c.b16 %v4884, %v4883
      %v4913 = vpack.c.b16 %v4886, %v4885
      %v4914 = vpack.c.b16 %v4888, %v4887
      %v4915 = vpack.c.b16 %v4890, %v4889
      %v4916 = vpack.c.b16 %v4892, %v4891
      %v4917 = vpack.c.b16 %v4894, %v4893
      %v4918 = vpack.c.b16 %v4896, %v4895
      %v4919 = vpack.c.b16 %v4898, %v4897
      %v4920 = vpack.c.b16 %v4900, %v4899
      %v4921 = vpack.c.b16 %v4902, %v4901
      %v4922 = vpack.c.b16 %v4904, %v4903
      %v4923 = vpack.c.b16 %v4906, %v4905
      %v4924 = vpack.c.b16 %v4908, %v4907
      %v4933 = vunpack.c.l.b16 %v4869
      %v4934 = vunpack.c.l.b16 %v4870
      %v4935 = vunpack.c.l.b16 %v4871
      %v4936 = vunpack.c.l.b16 %v4872
      %v4937 = vunpack.c.l.b16 %v4873
      %v4938 = vunpack.c.l.b16 %v4874
      %v4939 = vunpack.c.l.b16 %v4875
      %v4940 = vunpack.c.l.b16 %v4876
      %v4941 = vpack.c.b16 %v4934, %v4933
      %v4942 = vpack.c.b16 %v4936, %v4935
      %v4943 = vpack.c.b16 %v4938, %v4937
      %v4944 = vpack.c.b16 %v4940, %v4939
      %v4950 = vsel %vm380, %v4909, 0
      %v4953 = vsel %vm380, %v4910, 0
      %v4956 = vsel %vm380, %v4911, 0
      %v4959 = vsel %vm380, %v4912, 0
      %v4962 = vsel %vm380, %v4913, 0
      %v4965 = vsel %vm380, %v4914, 0
      %v4968 = vsel %vm380, %v4915, 0
      %v4971 = vsel %vm380, %v4916, 0
      %v4974 = vsel %vm380, %v4917, 0
      %v4977 = vsel %vm380, %v4918, 0
      %v4980 = vsel %vm380, %v4919, 0
      %v4983 = vsel %vm380, %v4920, 0
      %v4986 = vsel %vm380, %v4921, 0
      %v4989 = vsel %vm380, %v4922, 0
      %v4992 = vsel %vm380, %v4923, 0
      %v4995 = vsel %vm380, %v4924, 0
      %4997 = vmatpush.bf16.msra.mxu0 0
      %4998 = vmatpush.bf16.msra.mxu0 0
      %4999 = vmatpush.bf16.msra.mxu0 0
      %5000 = vmatpush.bf16.msra.mxu0 0
      %5001 = vmatpush.bf16.msra.mxu0 %v4944
      %5002 = vmatpush.bf16.msra.mxu0 %v4943
      %5003 = vmatpush.bf16.msra.mxu0 %v4942
      %5004 = vmatpush.bf16.msra.mxu0 %v4941
      %5005 = vmatmul.bf16.gmra.mxu0 %v4950
      %v5006 = vpop.f32.mrf.mxu0
      %v5007 = vadd.f32 0.0, %v5006
      %v5008 = vpop.f32.mrf.mxu0
      %v5009 = vadd.f32 0.0, %v5008
      %5010 = vmatmul.bf16.gmra.mxu0 %v4953
      %v5011 = vpop.f32.mrf.mxu0
      %v5012 = vadd.f32 0.0, %v5011
      %v5013 = vpop.f32.mrf.mxu0
      %v5014 = vadd.f32 0.0, %v5013
      %5015 = vmatmul.bf16.gmra.mxu0 %v4956
      %v5016 = vpop.f32.mrf.mxu0
      %v5017 = vadd.f32 0.0, %v5016
      %v5018 = vpop.f32.mrf.mxu0
      %v5019 = vadd.f32 0.0, %v5018
      %5020 = vmatmul.bf16.gmra.mxu0 %v4959
      %v5021 = vpop.f32.mrf.mxu0
      %v5022 = vadd.f32 0.0, %v5021
      %v5023 = vpop.f32.mrf.mxu0
      %v5024 = vadd.f32 0.0, %v5023
      %5025 = vmatmul.bf16.gmra.mxu0 %v4962
      %v5026 = vpop.f32.mrf.mxu0
      %v5027 = vadd.f32 0.0, %v5026
      %v5028 = vpop.f32.mrf.mxu0
      %v5029 = vadd.f32 0.0, %v5028
      %5030 = vmatmul.bf16.gmra.mxu0 %v4965
      %v5031 = vpop.f32.mrf.mxu0
      %v5032 = vadd.f32 0.0, %v5031
      %v5033 = vpop.f32.mrf.mxu0
      %v5034 = vadd.f32 0.0, %v5033
      %5035 = vmatmul.bf16.gmra.mxu0 %v4968
      %v5036 = vpop.f32.mrf.mxu0
      %v5037 = vadd.f32 0.0, %v5036
      %v5038 = vpop.f32.mrf.mxu0
      %v5039 = vadd.f32 0.0, %v5038
      %5040 = vmatmul.bf16.gmra.mxu0 %v4971
      %v5041 = vpop.f32.mrf.mxu0
      %v5042 = vadd.f32 0.0, %v5041
      %v5043 = vpop.f32.mrf.mxu0
      %v5044 = vadd.f32 0.0, %v5043
      %5045 = vmatmul.bf16.gmra.mxu0 %v4974
      %v5046 = vpop.f32.mrf.mxu0
      %v5047 = vadd.f32 0.0, %v5046
      %v5048 = vpop.f32.mrf.mxu0
      %v5049 = vadd.f32 0.0, %v5048
      %5050 = vmatmul.bf16.gmra.mxu0 %v4977
      %v5051 = vpop.f32.mrf.mxu0
      %v5052 = vadd.f32 0.0, %v5051
      %v5053 = vpop.f32.mrf.mxu0
      %v5054 = vadd.f32 0.0, %v5053
      %5055 = vmatmul.bf16.gmra.mxu0 %v4980
      %v5056 = vpop.f32.mrf.mxu0
      %v5057 = vadd.f32 0.0, %v5056
      %v5058 = vpop.f32.mrf.mxu0
      %v5059 = vadd.f32 0.0, %v5058
      %5060 = vmatmul.bf16.gmra.mxu0 %v4983
      %v5061 = vpop.f32.mrf.mxu0
      %v5062 = vadd.f32 0.0, %v5061
      %v5063 = vpop.f32.mrf.mxu0
      %v5064 = vadd.f32 0.0, %v5063
      %5065 = vmatmul.bf16.gmra.mxu0 %v4986
      %v5066 = vpop.f32.mrf.mxu0
      %v5067 = vadd.f32 0.0, %v5066
      %v5068 = vpop.f32.mrf.mxu0
      %v5069 = vadd.f32 0.0, %v5068
      %5070 = vmatmul.bf16.gmra.mxu0 %v4989
      %v5071 = vpop.f32.mrf.mxu0
      %v5072 = vadd.f32 0.0, %v5071
      %v5073 = vpop.f32.mrf.mxu0
      %v5074 = vadd.f32 0.0, %v5073
      %5075 = vmatmul.bf16.gmra.mxu0 %v4992
      %v5076 = vpop.f32.mrf.mxu0
      %v5077 = vadd.f32 0.0, %v5076
      %v5078 = vpop.f32.mrf.mxu0
      %v5079 = vadd.f32 0.0, %v5078
      %5080 = vmatmul.bf16.gmra.mxu0 %v4995
      %v5081 = vpop.f32.mrf.mxu0
      %v5082 = vadd.f32 0.0, %v5081
      %v5083 = vpop.f32.mrf.mxu0
      %v5084 = vadd.f32 0.0, %v5083
      %5085 = vdwg.mxu0
      %v5086 = vadd.f32 %v4836, %v5007
      %v5087 = vadd.f32 %v4837, %v5009
      %v5088 = vadd.f32 %v4838, %v5012
      %v5089 = vadd.f32 %v4839, %v5014
      %v5090 = vadd.f32 %v4840, %v5017
      %v5091 = vadd.f32 %v4841, %v5019
      %v5092 = vadd.f32 %v4842, %v5022
      %v5093 = vadd.f32 %v4843, %v5024
      %v5094 = vadd.f32 %v4844, %v5027
      %v5095 = vadd.f32 %v4845, %v5029
      %v5096 = vadd.f32 %v4846, %v5032
      %v5097 = vadd.f32 %v4847, %v5034
      %v5098 = vadd.f32 %v4848, %v5037
      %v5099 = vadd.f32 %v4849, %v5039
      %v5100 = vadd.f32 %v4850, %v5042
      %v5101 = vadd.f32 %v4851, %v5044
      %v5102 = vadd.f32 %v4852, %v5047
      %v5103 = vadd.f32 %v4853, %v5049
      %v5104 = vadd.f32 %v4854, %v5052
      %v5105 = vadd.f32 %v4855, %v5054
      %v5106 = vadd.f32 %v4856, %v5057
      %v5107 = vadd.f32 %v4857, %v5059
      %v5108 = vadd.f32 %v4858, %v5062
      %v5109 = vadd.f32 %v4859, %v5064
      %v5110 = vadd.f32 %v4860, %v5067
      %v5111 = vadd.f32 %v4861, %v5069
      %v5112 = vadd.f32 %v4862, %v5072
      %v5113 = vadd.f32 %v4863, %v5074
      %v5114 = vadd.f32 %v4864, %v5077
      %v5115 = vadd.f32 %v4865, %v5079
      %v5116 = vadd.f32 %v4866, %v5082
      %v5117 = vadd.f32 %v4867, %v5084
      %5118 = vst [vmem:[#allocation2] sm:$0xff] %v5086
      %5119 = vst [vmem:[#allocation2 + $0x8] sm:$0xff] %v5087
      %5120 = vst [vmem:[#allocation2 + $0x10] sm:$0xff] %v5088
      %5121 = vst [vmem:[#allocation2 + $0x18] sm:$0xff] %v5089
      %5122 = vst [vmem:[#allocation2 + $0x20] sm:$0xff] %v5090
      %5123 = vst [vmem:[#allocation2 + $0x28] sm:$0xff] %v5091
      %5124 = vst [vmem:[#allocation2 + $0x30] sm:$0xff] %v5092
      %5125 = vst [vmem:[#allocation2 + $0x38] sm:$0xff] %v5093
      %5126 = vst [vmem:[#allocation2 + $0x40] sm:$0xff] %v5094
      %5127 = vst [vmem:[#allocation2 + $0x48] sm:$0xff] %v5095
      %5128 = vst [vmem:[#allocation2 + $0x50] sm:$0xff] %v5096
      %5129 = vst [vmem:[#allocation2 + $0x58] sm:$0xff] %v5097
      %5130 = vst [vmem:[#allocation2 + $0x60] sm:$0xff] %v5098
      %5131 = vst [vmem:[#allocation2 + $0x68] sm:$0xff] %v5099
      %5132 = vst [vmem:[#allocation2 + $0x70] sm:$0xff] %v5100
      %5133 = vst [vmem:[#allocation2 + $0x78] sm:$0xff] %v5101
      %5134 = vst [vmem:[#allocation2 + $0x80] sm:$0xff] %v5102
      %5135 = vst [vmem:[#allocation2 + $0x88] sm:$0xff] %v5103
      %5136 = vst [vmem:[#allocation2 + $0x90] sm:$0xff] %v5104
      %5137 = vst [vmem:[#allocation2 + $0x98] sm:$0xff] %v5105
      %5138 = vst [vmem:[#allocation2 + $0xa0] sm:$0xff] %v5106
      %5139 = vst [vmem:[#allocation2 + $0xa8] sm:$0xff] %v5107
      %5140 = vst [vmem:[#allocation2 + $0xb0] sm:$0xff] %v5108
      %5141 = vst [vmem:[#allocation2 + $0xb8] sm:$0xff] %v5109
      %5142 = vst [vmem:[#allocation2 + $0xc0] sm:$0xff] %v5110
      %5143 = vst [vmem:[#allocation2 + $0xc8] sm:$0xff] %v5111
      %5144 = vst [vmem:[#allocation2 + $0xd0] sm:$0xff] %v5112
      %5145 = vst [vmem:[#allocation2 + $0xd8] sm:$0xff] %v5113
      %5146 = vst [vmem:[#allocation2 + $0xe0] sm:$0xff] %v5114
      %5147 = vst [vmem:[#allocation2 + $0xe8] sm:$0xff] %v5115
      %5148 = vst [vmem:[#allocation2 + $0xf0] sm:$0xff] %v5116
      %5149 = vst [vmem:[#allocation2 + $0xf8] sm:$0xff] %v5117
      %v5150 = vld [vmem:[#allocation2] sm:$0xff]
      %v5151 = vld [vmem:[#allocation2 + $0x8] sm:$0xff]
      %v5152 = vld [vmem:[#allocation2 + $0x10] sm:$0xff]
      %v5153 = vld [vmem:[#allocation2 + $0x18] sm:$0xff]
      %v5154 = vld [vmem:[#allocation2 + $0x20] sm:$0xff]
      %v5155 = vld [vmem:[#allocation2 + $0x28] sm:$0xff]
      %v5156 = vld [vmem:[#allocation2 + $0x30] sm:$0xff]
      %v5157 = vld [vmem:[#allocation2 + $0x38] sm:$0xff]
      %v5158 = vld [vmem:[#allocation2 + $0x40] sm:$0xff]
      %v5159 = vld [vmem:[#allocation2 + $0x48] sm:$0xff]
      %v5160 = vld [vmem:[#allocation2 + $0x50] sm:$0xff]
      %v5161 = vld [vmem:[#allocation2 + $0x58] sm:$0xff]
      %v5162 = vld [vmem:[#allocation2 + $0x60] sm:$0xff]
      %v5163 = vld [vmem:[#allocation2 + $0x68] sm:$0xff]
      %v5164 = vld [vmem:[#allocation2 + $0x70] sm:$0xff]
      %v5165 = vld [vmem:[#allocation2 + $0x78] sm:$0xff]
      %v5166 = vld [vmem:[#allocation2 + $0x80] sm:$0xff]
      %v5167 = vld [vmem:[#allocation2 + $0x88] sm:$0xff]
      %v5168 = vld [vmem:[#allocation2 + $0x90] sm:$0xff]
      %v5169 = vld [vmem:[#allocation2 + $0x98] sm:$0xff]
      %v5170 = vld [vmem:[#allocation2 + $0xa0] sm:$0xff]
      %v5171 = vld [vmem:[#allocation2 + $0xa8] sm:$0xff]
      %v5172 = vld [vmem:[#allocation2 + $0xb0] sm:$0xff]
      %v5173 = vld [vmem:[#allocation2 + $0xb8] sm:$0xff]
      %v5174 = vld [vmem:[#allocation2 + $0xc0] sm:$0xff]
      %v5175 = vld [vmem:[#allocation2 + $0xc8] sm:$0xff]
      %v5176 = vld [vmem:[#allocation2 + $0xd0] sm:$0xff]
      %v5177 = vld [vmem:[#allocation2 + $0xd8] sm:$0xff]
      %v5178 = vld [vmem:[#allocation2 + $0xe0] sm:$0xff]
      %v5179 = vld [vmem:[#allocation2 + $0xe8] sm:$0xff]
      %v5180 = vld [vmem:[#allocation2 + $0xf0] sm:$0xff]
      %v5181 = vld [vmem:[#allocation2 + $0xf8] sm:$0xff]
      %v5182 = vld [vmem:[%s2] sm:$0x1]
      %v5184 = vperm.slane %v5182, 0
      %v5186 = vadd.f32 %v5150, %v5184
      %v5187 = vadd.f32 %v5151, %v5184
      %v5188 = vadd.f32 %v5152, %v5184
      %v5189 = vadd.f32 %v5153, %v5184
      %v5190 = vadd.f32 %v5154, %v5184
      %v5191 = vadd.f32 %v5155, %v5184
      %v5192 = vadd.f32 %v5156, %v5184
      %v5193 = vadd.f32 %v5157, %v5184
      %v5194 = vadd.f32 %v5158, %v5184
      %v5195 = vadd.f32 %v5159, %v5184
      %v5196 = vadd.f32 %v5160, %v5184
      %v5197 = vadd.f32 %v5161, %v5184
      %v5198 = vadd.f32 %v5162, %v5184
      %v5199 = vadd.f32 %v5163, %v5184
      %v5200 = vadd.f32 %v5164, %v5184
      %v5201 = vadd.f32 %v5165, %v5184
      %v5202 = vadd.f32 %v5166, %v5184
      %v5203 = vadd.f32 %v5167, %v5184
      %v5204 = vadd.f32 %v5168, %v5184
      %v5205 = vadd.f32 %v5169, %v5184
      %v5206 = vadd.f32 %v5170, %v5184
      %v5207 = vadd.f32 %v5171, %v5184
      %v5208 = vadd.f32 %v5172, %v5184
      %v5209 = vadd.f32 %v5173, %v5184
      %v5210 = vadd.f32 %v5174, %v5184
      %v5211 = vadd.f32 %v5175, %v5184
      %v5212 = vadd.f32 %v5176, %v5184
      %v5213 = vadd.f32 %v5177, %v5184
      %v5214 = vadd.f32 %v5178, %v5184
      %v5215 = vadd.f32 %v5179, %v5184
      %v5216 = vadd.f32 %v5180, %v5184
      %v5217 = vadd.f32 %v5181, %v5184
      %vm5218 = vcmp.ge.f32.partialorder %v5186, 0.0
      %vm5219 = vcmp.ge.f32.partialorder %v5187, 0.0
      %vm5220 = vcmp.ge.f32.partialorder %v5188, 0.0
      %vm5221 = vcmp.ge.f32.partialorder %v5189, 0.0
      %vm5222 = vcmp.ge.f32.partialorder %v5190, 0.0
      %vm5223 = vcmp.ge.f32.partialorder %v5191, 0.0
      %vm5224 = vcmp.ge.f32.partialorder %v5192, 0.0
      %vm5225 = vcmp.ge.f32.partialorder %v5193, 0.0
      %vm5226 = vcmp.ge.f32.partialorder %v5194, 0.0
      %vm5227 = vcmp.ge.f32.partialorder %v5195, 0.0
      %vm5228 = vcmp.ge.f32.partialorder %v5196, 0.0
      %vm5229 = vcmp.ge.f32.partialorder %v5197, 0.0
      %vm5230 = vcmp.ge.f32.partialorder %v5198, 0.0
      %vm5231 = vcmp.ge.f32.partialorder %v5199, 0.0
      %vm5232 = vcmp.ge.f32.partialorder %v5200, 0.0
      %vm5233 = vcmp.ge.f32.partialorder %v5201, 0.0
      %vm5234 = vcmp.ge.f32.partialorder %v5202, 0.0
      %vm5235 = vcmp.ge.f32.partialorder %v5203, 0.0
      %vm5236 = vcmp.ge.f32.partialorder %v5204, 0.0
      %vm5237 = vcmp.ge.f32.partialorder %v5205, 0.0
      %vm5238 = vcmp.ge.f32.partialorder %v5206, 0.0
      %vm5239 = vcmp.ge.f32.partialorder %v5207, 0.0
      %vm5240 = vcmp.ge.f32.partialorder %v5208, 0.0
      %vm5241 = vcmp.ge.f32.partialorder %v5209, 0.0
      %vm5242 = vcmp.ge.f32.partialorder %v5210, 0.0
      %vm5243 = vcmp.ge.f32.partialorder %v5211, 0.0
      %vm5244 = vcmp.ge.f32.partialorder %v5212, 0.0
      %vm5245 = vcmp.ge.f32.partialorder %v5213, 0.0
      %vm5246 = vcmp.ge.f32.partialorder %v5214, 0.0
      %vm5247 = vcmp.ge.f32.partialorder %v5215, 0.0
      %vm5248 = vcmp.ge.f32.partialorder %v5216, 0.0
      %vm5249 = vcmp.ge.f32.partialorder %v5217, 0.0
      %v5250 = vmul.f32 %v5186, 0.2
      %v5251 = vmul.f32 %v5187, 0.2
      %v5252 = vmul.f32 %v5188, 0.2
      %v5253 = vmul.f32 %v5189, 0.2
      %v5254 = vmul.f32 %v5190, 0.2
      %v5255 = vmul.f32 %v5191, 0.2
      %v5256 = vmul.f32 %v5192, 0.2
      %v5257 = vmul.f32 %v5193, 0.2
      %v5258 = vmul.f32 %v5194, 0.2
      %v5259 = vmul.f32 %v5195, 0.2
      %v5260 = vmul.f32 %v5196, 0.2
      %v5261 = vmul.f32 %v5197, 0.2
      %v5262 = vmul.f32 %v5198, 0.2
      %v5263 = vmul.f32 %v5199, 0.2
      %v5264 = vmul.f32 %v5200, 0.2
      %v5265 = vmul.f32 %v5201, 0.2
      %v5266 = vmul.f32 %v5202, 0.2
      %v5267 = vmul.f32 %v5203, 0.2
      %v5268 = vmul.f32 %v5204, 0.2
      %v5269 = vmul.f32 %v5205, 0.2
      %v5270 = vmul.f32 %v5206, 0.2
      %v5271 = vmul.f32 %v5207, 0.2
      %v5272 = vmul.f32 %v5208, 0.2
      %v5273 = vmul.f32 %v5209, 0.2
      %v5274 = vmul.f32 %v5210, 0.2
      %v5275 = vmul.f32 %v5211, 0.2
      %v5276 = vmul.f32 %v5212, 0.2
      %v5277 = vmul.f32 %v5213, 0.2
      %v5278 = vmul.f32 %v5214, 0.2
      %v5279 = vmul.f32 %v5215, 0.2
      %v5280 = vmul.f32 %v5216, 0.2
      %v5281 = vmul.f32 %v5217, 0.2
      %v5282 = vsel %vm5218, %v5186, %v5250
      %v5283 = vsel %vm5219, %v5187, %v5251
      %v5284 = vsel %vm5220, %v5188, %v5252
      %v5285 = vsel %vm5221, %v5189, %v5253
      %v5286 = vsel %vm5222, %v5190, %v5254
      %v5287 = vsel %vm5223, %v5191, %v5255
      %v5288 = vsel %vm5224, %v5192, %v5256
      %v5289 = vsel %vm5225, %v5193, %v5257
      %v5290 = vsel %vm5226, %v5194, %v5258
      %v5291 = vsel %vm5227, %v5195, %v5259
      %v5292 = vsel %vm5228, %v5196, %v5260
      %v5293 = vsel %vm5229, %v5197, %v5261
      %v5294 = vsel %vm5230, %v5198, %v5262
      %v5295 = vsel %vm5231, %v5199, %v5263
      %v5296 = vsel %vm5232, %v5200, %v5264
      %v5297 = vsel %vm5233, %v5201, %v5265
      %v5298 = vsel %vm5234, %v5202, %v5266
      %v5299 = vsel %vm5235, %v5203, %v5267
      %v5300 = vsel %vm5236, %v5204, %v5268
      %v5301 = vsel %vm5237, %v5205, %v5269
      %v5302 = vsel %vm5238, %v5206, %v5270
      %v5303 = vsel %vm5239, %v5207, %v5271
      %v5304 = vsel %vm5240, %v5208, %v5272
      %v5305 = vsel %vm5241, %v5209, %v5273
      %v5306 = vsel %vm5242, %v5210, %v5274
      %v5307 = vsel %vm5243, %v5211, %v5275
      %v5308 = vsel %vm5244, %v5212, %v5276
      %v5309 = vsel %vm5245, %v5213, %v5277
      %v5310 = vsel %vm5246, %v5214, %v5278
      %v5311 = vsel %vm5247, %v5215, %v5279
      %v5312 = vsel %vm5248, %v5216, %v5280
      %v5313 = vsel %vm5249, %v5217, %v5281
      %5314 = vxpose.xlu0.b32.start [1/16] %v5282, 128
      %5315 = vxpose.xlu0.b32.cont [2/16] %v5283, 128
      %5316 = vxpose.xlu0.b32.cont [3/16] %v5284, 128
      %5317 = vxpose.xlu0.b32.cont [4/16] %v5285, 128
      %5318 = vxpose.xlu0.b32.cont [5/16] %v5286, 128
      %5319 = vxpose.xlu0.b32.cont [6/16] %v5287, 128
      %5320 = vxpose.xlu0.b32.cont [7/16] %v5288, 128
      %5321 = vxpose.xlu0.b32.cont [8/16] %v5289, 128
      %5322 = vxpose.xlu0.b32.cont [9/16] %v5290, 128
      %5323 = vxpose.xlu0.b32.cont [10/16] %v5291, 128
      %5324 = vxpose.xlu0.b32.cont [11/16] %v5292, 128
      %5325 = vxpose.xlu0.b32.cont [12/16] %v5293, 128
      %5326 = vxpose.xlu0.b32.cont [13/16] %v5294, 128
      %5327 = vxpose.xlu0.b32.cont [14/16] %v5295, 128
      %5328 = vxpose.xlu0.b32.cont [15/16] %v5296, 128
      %5329 = vxpose.xlu0.b32.end [16/16] %v5297, 128
      %v5330 = vpop.trf.xlu0
      %v5331 = vpop.trf.xlu0
      %v5332 = vpop.trf.xlu0
      %v5333 = vpop.trf.xlu0
      %v5334 = vpop.trf.xlu0
      %v5335 = vpop.trf.xlu0
      %v5336 = vpop.trf.xlu0
      %v5337 = vpop.trf.xlu0
      %v5338 = vpop.trf.xlu0
      %v5339 = vpop.trf.xlu0
      %v5340 = vpop.trf.xlu0
      %v5341 = vpop.trf.xlu0
      %v5342 = vpop.trf.xlu0
      %v5343 = vpop.trf.xlu0
      %v5344 = vpop.trf.xlu0
      %v5345 = vpop.trf.xlu0
      %5346 = vxpose.xlu0.b32.start [1/16] %v5298, 128
      %5347 = vxpose.xlu0.b32.cont [2/16] %v5299, 128
      %5348 = vxpose.xlu0.b32.cont [3/16] %v5300, 128
      %5349 = vxpose.xlu0.b32.cont [4/16] %v5301, 128
      %5350 = vxpose.xlu0.b32.cont [5/16] %v5302, 128
      %5351 = vxpose.xlu0.b32.cont [6/16] %v5303, 128
      %5352 = vxpose.xlu0.b32.cont [7/16] %v5304, 128
      %5353 = vxpose.xlu0.b32.cont [8/16] %v5305, 128
      %5354 = vxpose.xlu0.b32.cont [9/16] %v5306, 128
      %5355 = vxpose.xlu0.b32.cont [10/16] %v5307, 128
      %5356 = vxpose.xlu0.b32.cont [11/16] %v5308, 128
      %5357 = vxpose.xlu0.b32.cont [12/16] %v5309, 128
      %5358 = vxpose.xlu0.b32.cont [13/16] %v5310, 128
      %5359 = vxpose.xlu0.b32.cont [14/16] %v5311, 128
      %5360 = vxpose.xlu0.b32.cont [15/16] %v5312, 128
      %5361 = vxpose.xlu0.b32.end [16/16] %v5313, 128
      %v5362 = vpop.trf.xlu0
      %v5363 = vpop.trf.xlu0
      %v5364 = vpop.trf.xlu0
      %v5365 = vpop.trf.xlu0
      %v5366 = vpop.trf.xlu0
      %v5367 = vpop.trf.xlu0
      %v5368 = vpop.trf.xlu0
      %v5369 = vpop.trf.xlu0
      %v5370 = vpop.trf.xlu0
      %v5371 = vpop.trf.xlu0
      %v5372 = vpop.trf.xlu0
      %v5373 = vpop.trf.xlu0
      %v5374 = vpop.trf.xlu0
      %v5375 = vpop.trf.xlu0
      %v5376 = vpop.trf.xlu0
      %v5377 = vpop.trf.xlu0
      %5378 = vst [vmem:[%s170] sm:$0xff] %v5330
      %5379 = vst [vmem:[%s170 + $0x8] sm:$0xff] %v5362
      %5380 = vst [vmem:[%s170 + $0x10] sm:$0xff] %v5331
      %5381 = vst [vmem:[%s170 + $0x18] sm:$0xff] %v5363
      %5382 = vst [vmem:[%s170 + $0x20] sm:$0xff] %v5332
      %5383 = vst [vmem:[%s170 + $0x28] sm:$0xff] %v5364
      %5384 = vst [vmem:[%s170 + $0x30] sm:$0xff] %v5333
      %5385 = vst [vmem:[%s170 + $0x38] sm:$0xff] %v5365
      %5386 = vst [vmem:[%s170 + $0x40] sm:$0xff] %v5334
      %5387 = vst [vmem:[%s170 + $0x48] sm:$0xff] %v5366
      %5388 = vst [vmem:[%s170 + $0x50] sm:$0xff] %v5335
      %5389 = vst [vmem:[%s170 + $0x58] sm:$0xff] %v5367
      %5390 = vst [vmem:[%s170 + $0x60] sm:$0xff] %v5336
      %5391 = vst [vmem:[%s170 + $0x68] sm:$0xff] %v5368
      %5392 = vst [vmem:[%s170 + $0x70] sm:$0xff] %v5337
      %5393 = vst [vmem:[%s170 + $0x78] sm:$0xff] %v5369
      %5394 = vst [vmem:[%s170 + $0x80] sm:$0xff] %v5338
      %5395 = vst [vmem:[%s170 + $0x88] sm:$0xff] %v5370
      %5396 = vst [vmem:[%s170 + $0x90] sm:$0xff] %v5339
      %5397 = vst [vmem:[%s170 + $0x98] sm:$0xff] %v5371
      %5398 = vst [vmem:[%s170 + $0xa0] sm:$0xff] %v5340
      %5399 = vst [vmem:[%s170 + $0xa8] sm:$0xff] %v5372
      %5400 = vst [vmem:[%s170 + $0xb0] sm:$0xff] %v5341
      %5401 = vst [vmem:[%s170 + $0xb8] sm:$0xff] %v5373
      %5402 = vst [vmem:[%s170 + $0xc0] sm:$0xff] %v5342
      %5403 = vst [vmem:[%s170 + $0xc8] sm:$0xff] %v5374
      %5404 = vst [vmem:[%s170 + $0xd0] sm:$0xff] %v5343
      %5405 = vst [vmem:[%s170 + $0xd8] sm:$0xff] %v5375
      %5406 = vst [vmem:[%s170 + $0xe0] sm:$0xff] %v5344
      %5407 = vst [vmem:[%s170 + $0xe8] sm:$0xff] %v5376
      %5408 = vst [vmem:[%s170 + $0xf0] sm:$0xff] %v5345
      %5409 = vst [vmem:[%s170 + $0xf8] sm:$0xff] %v5377
      %p5410 = scmp.lt.s32.totalorder %s14, 1
      %s5411 = scalar_select %p5410, %s14, 1
      %s5412 = smul.addr %s5411, 32
      %s5413 = smul.addr %s5412, 8
      %s5414 = scalar_lea.vmem %s3, %s5413
      // Predicated region
      $region33: #{conv_with_activation.1} parent=31 // pred_check
        %p5415 = pneg %p100
      $region34: #{conv_with_activation.1} parent=31 // pred_check_branch
        %5417 = sbr.rel (%p5415) target = $region36
      $region35: #{conv_with_activation.1} parent=31 // pred_region
        _
      $region36: #{conv_with_activation.1} parent=31 // pred_fallthru
        _
    $region32: #{conv_with_activation.1} parent=5 // pred_fallthru
      _
    %p5418 = scmp.le.s32.totalorder 2, %s9
    // Predicated region
    $region37: #{conv_with_activation.1} parent=5 // pred_check
      %p5419 = pneg %p5418
    $region38: #{conv_with_activation.1} parent=5 // pred_check_branch
      %5421 = sbr.rel (%p5419) target = $region40
    $region39: #{conv_with_activation.1} parent=5 // pred_region
      %s5422 = ssub.s32 %s9, 2
      // Predicated region
      $region41: #{conv_with_activation.1} parent=39 // pred_check
        %p5423 = pneg %p106
      $region42: #{conv_with_activation.1} parent=39 // pred_check_branch
        %5425 = sbr.rel (%p5423) target = $region44
      $region43: #{conv_with_activation.1} parent=39 // pred_region
        %p5426 = scmp.lt.s32.totalorder %s15, 1
        %s5427 = scalar_select %p5426, %s15, 1
        %s5428 = smul.addr %s5427, 32
        %s5429 = smul.addr %s5428, 8
        %s5430 = scalar_lea.vmem %s3, %s5429
      $region44: #{conv_with_activation.1} parent=39 // pred_fallthru
        _
    $region40: #{conv_with_activation.1} parent=5 // pred_fallthru
      _
  $region6: #{conv_with_activation.1} parent=0 // loop_footer
    %s13 = sadd.s32 1, %s9
  $region7: #{conv_with_activation.1} parent=0 // loop_footer_branch
    %8 = sbr.rel target = $region3
  $region8: #{conv_with_activation.1} parent=0 // loop_exit
    _

</llo_original>
